<compile_context>
chip_gen: v6e
topology: v6e:2x2x1
jax: 0.10.0
libtpu: 0.0.40
codegen_flags: <defaults>
</compile_context>

<pallas_src>
import functools

import jax
import jax.numpy as jnp
from jax import lax
from jax.experimental import pallas as pl
from jax.experimental.pallas import tpu as pltpu


def _round_up(x, m):
    return ((x + m - 1) // m) * m


def _largest_divisor_leq(n, cap):
    best = 1
    for c in range(1, min(n, cap) + 1):
        if n % c == 0:
            best = c
    return best


# ----------------------------------------------------------------------------
# Kernel: chunked input projection + GRU recurrence + attention + FC head
# ----------------------------------------------------------------------------
def _gru_attn_fc_kernel(x_ref, len_ref, wih_ref, whh_ref, bih_ref, bhh_ref,
                        watt_ref, batt_ref, v_ref, wfc_ref, bfc_ref,
                        out_ref, gx_scr, rnn_scr, s_scr, *, tc):
    T, Bt, D = x_ref.shape
    Hp = whh_ref.shape[0]          # lane-padded hidden size (multiple of 128)
    n_chunks = T // tc

    # Hoisted weight loads (constant across every loop below).
    wih = wih_ref[...]; bih = bih_ref[...]          # bf16 / f32
    whh = whh_ref[...]; bhh = bhh_ref[...]
    watt = watt_ref[...]; batt = batt_ref[...]
    vrow = v_ref[...]                                # (1, Hp) f32

    # ---- Phase 1: hoisted input projection, T-chunked (bounds f32 temps) ---
    def p1(c, carry):
        t0 = pl.multiple_of(c * tc, tc)
        xc = x_ref[pl.ds(t0, tc)]                            # (tc, Bt, D) bf16
        gx = jnp.dot(xc.reshape(tc * Bt, D), wih,
                     preferred_element_type=jnp.float32) + bih
        gx_scr[pl.ds(t0, tc)] = gx.reshape(tc, Bt, 3 * Hp).astype(gx_scr.dtype)
        return carry
    lax.fori_loop(0, n_chunks, p1, 0, unroll=(n_chunks <= 8))

    # ---- Phase 2: GRU recurrence (serial over time) ------------------------
    def step(t, h_prev):
        gx = gx_scr[t].astype(jnp.float32)                   # (Bt, 3Hp)
        gh = jnp.dot(h_prev.astype(jnp.bfloat16), whh,
                     preferred_element_type=jnp.float32) + bhh
        r = jax.nn.sigmoid(gx[:, 0:Hp] + gh[:, 0:Hp])
        z = jax.nn.sigmoid(gx[:, Hp:2 * Hp] + gh[:, Hp:2 * Hp])
        n = jnp.tanh(gx[:, 2 * Hp:3 * Hp] + r * gh[:, 2 * Hp:3 * Hp])
        h_new = (1.0 - z) * n + z * h_prev                   # blend in f32
        rnn_scr[t] = h_new.astype(rnn_scr.dtype)
        return h_new

    h0 = jnp.zeros((Bt, Hp), jnp.float32)
    # Full unroll for short sequences; partial unroll otherwise so the LLO
    # scheduler can pack the next step's loads under the EUP tail.
    lax.fori_loop(0, T, step, h0, unroll=(T if T <= 32 else 8))

    # ---- Phase 3a: additive-attention scores, T-chunked --------------------
    def p3(c, carry):
        t0 = pl.multiple_of(c * tc, tc)
        rc = rnn_scr[pl.ds(t0, tc)]                          # (tc, Bt, Hp) bf16
        u = jnp.tanh(jnp.dot(rc.reshape(tc * Bt, Hp), watt,
                             preferred_element_type=jnp.float32) + batt)
        s_scr[pl.ds(t0, tc)] = jnp.sum(u.reshape(tc, Bt, Hp) * vrow, axis=-1)
        return carry
    lax.fori_loop(0, n_chunks, p3, 0, unroll=(n_chunks <= 8))

    # ---- Phase 3b: masked softmax over time (f32) ---------------------------
    # Padding bias built from lengths (batch on sublanes) and transposed once.
    ti = lax.broadcasted_iota(jnp.int32, (Bt, T), 1)
    bias_bt = jnp.where(ti >= len_ref[...], -1e30, 0.0)      # (Bt, T) f32
    bias = jnp.transpose(bias_bt)                            # (T, Bt), one XLU op

    s = s_scr[...] + bias                                    # (T, Bt) f32
    m = jnp.max(s, axis=0, keepdims=True)
    e = jnp.exp(s - m)
    denom = jnp.sum(e, axis=0, keepdims=True)
    alpha = e * pl.reciprocal(denom, approx=True)            # EUP reciprocal
    s_scr[...] = alpha                                       # reuse score buffer

    # ---- Phase 3c: context accumulation, T-chunked --------------------------
    def ctx_step(c, acc):
        t0 = pl.multiple_of(c * tc, tc)
        al = s_scr[pl.ds(t0, tc)]                            # (tc, Bt) f32
        rc = rnn_scr[pl.ds(t0, tc)].astype(jnp.float32)      # (tc, Bt, Hp)
        return acc + jnp.sum(al[:, :, None] * rc, axis=0)
    ctx = lax.fori_loop(0, n_chunks, ctx_step,
                        jnp.zeros((Bt, Hp), jnp.float32),
                        unroll=(n_chunks <= 8))

    # ---- Phase 4: classification heads (lane-dense 128-multiple output) -----
    out_ref[...] = jnp.dot(ctx.astype(jnp.bfloat16), wfc_ref[...],
                           preferred_element_type=jnp.float32) + bfc_ref[...]


# ----------------------------------------------------------------------------
# Parameters (deterministic, PyTorch-like init) and wrapper
# ----------------------------------------------------------------------------
def init_params(key, input_size, hidden_size, output_size, num_targets):
    k = 1.0 / jnp.sqrt(hidden_size)
    keys = jax.random.split(key, 9)
    uni = lambda kk, shape: jax.random.uniform(kk, shape, jnp.float32, -k, k)
    return dict(
        w_ih=uni(keys[0], (input_size, 3 * hidden_size)),
        w_hh=uni(keys[1], (hidden_size, 3 * hidden_size)),
        b_ih=uni(keys[2], (1, 3 * hidden_size)),
        b_hh=uni(keys[3], (1, 3 * hidden_size)),
        w_att=uni(keys[4], (hidden_size, hidden_size)),
        b_att=uni(keys[5], (1, hidden_size)),
        v_att=uni(keys[6], (hidden_size, 1)),
        w_fc=uni(keys[7], (hidden_size, num_targets * output_size)),
        b_fc=uni(keys[8], (1, num_targets * output_size)),
    )


def attentive_sequential_classifier(x, lengths, params, *,
                                    hidden_size, output_size, num_targets):
    """x: (B, T, D) float32, lengths: (B,) int32 or None. Returns list of (B, O)."""
    B, T, D = x.shape
    H = hidden_size
    Hp = _round_up(H, 128)
    NO = num_targets * output_size
    NOp = _round_up(NO, 128)

    # ---- per-generation VMEM budget ----------------------------------------
    try:
        vmem_cap = int(pltpu.get_tpu_info().vmem_capacity_bytes)
    except Exception:
        vmem_cap = 64 * 1024 * 1024          # conservative (v7x-sized) fallback
    vmem_limit = max(32 * 1024 * 1024,
                     min(int(vmem_cap * 0.75), 112 * 1024 * 1024))
    two_cores = vmem_cap <= 80 * 1024 * 1024   # v7x heuristic (64 MiB / TC)

    # Time chunk for Phase 1/3 matmuls (bounds in-kernel f32 temporaries).
    tc = _largest_divisor_leq(T, 32)
    assert T % tc == 0

    # ---- batch-tile selection ------------------------------------------------
    if two_cores and B >= 16:
        bt = min(_round_up(-(-B // 2), 8), 128)   # >=2 tiles -> both TCs busy
    else:
        bt = min(_round_up(B, 8), 128)            # single-TC: biggest tile

    def vmem_estimate(btc):
        lane = lambda n: _round_up(max(n, 1), 128)
        sub = lambda n: _round_up(max(n, 1), 16)
        x_blk = 2 * T * sub(btc) * lane(D) * 2               # bf16, dbl-buffered
        gx = T * sub(btc) * lane(3 * Hp) * 2                 # bf16 scratch
        rnn = T * sub(btc) * lane(Hp) * 2                    # bf16 scratch
        s = _round_up(T, 8) * lane(btc) * 4                  # f32 scores
        w = (sub(D) * 3 * Hp + sub(Hp) * 3 * Hp
             + sub(Hp) * Hp + sub(Hp) * NOp) * 2             # bf16, 1-buffered
        bias = 8 * (3 * Hp * 2 + 2 * Hp + NOp) * 4           # f32 biases / v
        out = 2 * sub(btc) * lane(NOp) * 4                   # f32, dbl-buffered
        tmp = 2 * tc * sub(btc) * lane(3 * Hp) * 4           # chunk temporaries
        return x_blk + gx + rnn + s + w + bias + out + tmp

    while bt > 8 and vmem_estimate(bt) > int(vmem_limit * 0.9):
        bt = max(8, _round_up(bt // 2, 8))

    Bp = _round_up(B, bt)
    grid = (Bp // bt,)

    # ---- operand packing -----------------------------------------------------
    if lengths is None:
        lengths = jnp.full((B,), T, jnp.int32)
    # lengths with batch on SUBLANES: legal block for any bt (>=8); padded
    # batch rows get length 0 -> fully masked -> uniform softmax, discarded.
    lens = jnp.zeros((Bp, 1), jnp.int32).at[:B, 0].set(lengths.astype(jnp.int32))

    # Time-major, batch-padded, bf16 input (halves the x double-buffer).
    x_tm = jnp.zeros((T, Bp, D), jnp.bfloat16).at[:, :B, :].set(
        jnp.transpose(x, (1, 0, 2)).astype(jnp.bfloat16))

    def pad_gates(w, rows_p):       # re-pack gates to 128-lane-aligned slabs
        rows = w.shape[0]
        out = jnp.zeros((rows_p, 3 * Hp), jnp.float32)
        for g in range(3):
            out = out.at[:rows, g * Hp:g * Hp + H].set(w[:, g * H:(g + 1) * H])
        return out

    def pad2(a, r, c):
        out = jnp.zeros((r, c), jnp.float32)
        return out.at[:a.shape[0], :a.shape[1]].set(a)

    w_ih_p = pad_gates(params["w_ih"], D).astype(jnp.bfloat16)
    w_hh_p = pad_gates(params["w_hh"], Hp).astype(jnp.bfloat16)
    b_ih_p = pad_gates(params["b_ih"], 1)                      # f32
    b_hh_p = pad_gates(params["b_hh"], 1)                      # f32
    w_att_p = pad2(params["w_att"], Hp, Hp).astype(jnp.bfloat16)
    b_att_p = pad2(params["b_att"], 1, Hp)                     # f32
    v_row = pad2(params["v_att"].T, 1, Hp)                     # f32
    w_fc_p = pad2(params["w_fc"], Hp, NOp).astype(jnp.bfloat16)
    b_fc_p = pad2(params["b_fc"], 1, NOp)                      # f32

    kernel = functools.partial(_gru_attn_fc_kernel, tc=tc)

    def run(single_buffer_weights):
        def wspec(shape):
            if single_buffer_weights:
                # Constant-index weights: no point double-buffering them.
                return pl.BlockSpec(shape, lambda i: (0, 0),
                                    pipeline_mode=pl.Buffered(1))
            return pl.BlockSpec(shape, lambda i: (0, 0))

        return pl.pallas_call(
            kernel,
            out_shape=jax.ShapeDtypeStruct((Bp, NOp), jnp.float32),
            grid=grid,
            in_specs=[
                pl.BlockSpec((T, bt, D), lambda i: (0, i, 0)),   # x (time-major)
                pl.BlockSpec((bt, 1), lambda i: (i, 0)),         # lengths
                wspec((D, 3 * Hp)),                              # w_ih
                wspec((Hp, 3 * Hp)),                             # w_hh
                wspec((1, 3 * Hp)),                              # b_ih
                wspec((1, 3 * Hp)),                              # b_hh
                wspec((Hp, Hp)),                                 # w_att
                wspec((1, Hp)),                                  # b_att
                wspec((1, Hp)),                                  # v
                wspec((Hp, NOp)),                                # w_fc
                wspec((1, NOp)),                                 # b_fc
            ],
            out_specs=pl.BlockSpec((bt, NOp), lambda i: (i, 0)),
            scratch_shapes=[
                pltpu.VMEM((T, bt, 3 * Hp), jnp.bfloat16),       # hoisted gx
                pltpu.VMEM((T, bt, Hp), jnp.bfloat16),           # rnn outputs
                pltpu.VMEM((T, bt), jnp.float32),                # scores / alpha
            ],
            compiler_params=pltpu.CompilerParams(
                dimension_semantics=("parallel",),
                vmem_limit_bytes=int(vmem_limit),
            ),
        )(x_tm, lens, w_ih_p, w_hh_p, b_ih_p, b_hh_p,
          w_att_p, b_att_p, v_row, w_fc_p, b_fc_p)

    try:
        out = run(True)
    except Exception:
        # pipeline_mode / Buffered(1) not supported by this JAX: default buffering.
        out = run(False)

    out = out[:B, :NO]
    return [out[:, t * output_size:(t + 1) * output_size]
            for t in range(num_targets)]


# ----------------------------------------------------------------------------
# Pure-JAX f32 reference for validation
# ----------------------------------------------------------------------------
def reference(x, lengths, params, *, hidden_size, output_size, num_targets):
    B, T, D = x.shape
    H = hidden_size
    mask = (jnp.arange(T)[None, :] >= lengths[:, None])

    def step(h, x_t):
        gx = x_t @ params["w_ih"] + params["b_ih"]
        gh = h @ params["w_hh"] + params["b_hh"]
        r = jax.nn.sigmoid(gx[:, :H] + gh[:, :H])
        z = jax.nn.sigmoid(gx[:, H:2 * H] + gh[:, H:2 * H])
        n = jnp.tanh(gx[:, 2 * H:] + r * gh[:, 2 * H:])
        h_new = (1.0 - z) * n + z * h
        return h_new, h_new

    _, rnn = lax.scan(step, jnp.zeros((B, H), jnp.float32),
                      jnp.transpose(x, (1, 0, 2)))
    rnn = jnp.transpose(rnn, (1, 0, 2))                       # (B, T, H)

    u = jnp.tanh(rnn @ params["w_att"] + params["b_att"])
    s = (u @ params["v_att"])[:, :, 0]
    s = jnp.where(mask, -1e30, s)
    alpha = jax.nn.softmax(s, axis=1)
    ctx = jnp.einsum("bt,bth->bh", alpha, rnn)
    out = ctx @ params["w_fc"] + params["b_fc"]
    return [out[:, t * output_size:(t + 1) * output_size]
            for t in range(num_targets)]


# ----------------------------------------------------------------------------
if __name__ == "__main__":
    B, T, D = 2, 8, 16          # batch, seq, input_size
    H, O, NT = 32, 5, 1         # hidden_size, output_size, num_targets

    key = jax.random.PRNGKey(0)
    k_x, k_p = jax.random.split(key)
    x = jax.random.normal(k_x, (B, T, D), dtype=jnp.float32)
    lengths = jnp.array([8, 5], dtype=jnp.int32)
    params = init_params(k_p, D, H, O, NT)

    outs = attentive_sequential_classifier(
        x, lengths, params, hidden_size=H, output_size=O, num_targets=NT)
    outs = [jax.block_until_ready(o) for o in outs]

    refs = reference(x, lengths, params,
                     hidden_size=H, output_size=O, num_targets=NT)
    # Tolerance covers bf16 matmul operands / bf16 scratch storage and the
    # approx (EUP) reciprocal in the in-kernel softmax (reference is full f32).
    for o, r in zip(outs, refs):
        assert o.shape == (B, O)
        assert jnp.allclose(o, r, atol=2e-2, rtol=2e-2), "mismatch vs reference"

    print("KERNEL_OK")
</pallas_src>

<mosaic_0001>
module attributes {stable_mosaic.version = 11 : i64} {
  func.func @_gru_attn_fc_kernel(%arg0: i32, %arg1: memref<8x8x16xbf16, #tpu.memory_space<vmem>>, %arg2: memref<8x1xi32, #tpu.memory_space<vmem>>, %arg3: memref<16x384xbf16, #tpu.memory_space<vmem>>, %arg4: memref<128x384xbf16, #tpu.memory_space<vmem>>, %arg5: memref<1x384xf32, #tpu.memory_space<vmem>>, %arg6: memref<1x384xf32, #tpu.memory_space<vmem>>, %arg7: memref<128x128xbf16, #tpu.memory_space<vmem>>, %arg8: memref<1x128xf32, #tpu.memory_space<vmem>>, %arg9: memref<1x128xf32, #tpu.memory_space<vmem>>, %arg10: memref<128x128xbf16, #tpu.memory_space<vmem>>, %arg11: memref<1x128xf32, #tpu.memory_space<vmem>>, %arg12: memref<8x128xf32, #tpu.memory_space<vmem>>, %arg13: memref<8x8x384xbf16, #tpu.memory_space<vmem>>, %arg14: memref<8x8x128xbf16, #tpu.memory_space<vmem>>, %arg15: memref<8x8xf32, #tpu.memory_space<vmem>>) attributes {dimension_semantics = [#tpu.dimension_semantics<parallel>], iteration_bounds = array<i64: 1>, scalar_prefetch = 0 : i64, scratch_operands = 3 : i64, tpu.core_type = #tpu.core_type<tc>, window_params = [{transform_indices = @transform_0, window_bounds = array<i64: 8, 8, 16>}, {transform_indices = @transform_1, window_bounds = array<i64: 8, 1>}, {pipeline_mode = #tpu.pipeline_mode<synchronous>, transform_indices = @transform_2, window_bounds = array<i64: 16, 384>}, {pipeline_mode = #tpu.pipeline_mode<synchronous>, transform_indices = @transform_3, window_bounds = array<i64: 128, 384>}, {pipeline_mode = #tpu.pipeline_mode<synchronous>, transform_indices = @transform_4, window_bounds = array<i64: 1, 384>}, {pipeline_mode = #tpu.pipeline_mode<synchronous>, transform_indices = @transform_5, window_bounds = array<i64: 1, 384>}, {pipeline_mode = #tpu.pipeline_mode<synchronous>, transform_indices = @transform_6, window_bounds = array<i64: 128, 128>}, {pipeline_mode = #tpu.pipeline_mode<synchronous>, transform_indices = @transform_7, window_bounds = array<i64: 1, 128>}, {pipeline_mode = #tpu.pipeline_mode<synchronous>, transform_indices = @transform_8, window_bounds = array<i64: 1, 128>}, {pipeline_mode = #tpu.pipeline_mode<synchronous>, transform_indices = @transform_9, window_bounds = array<i64: 128, 128>}, {pipeline_mode = #tpu.pipeline_mode<synchronous>, transform_indices = @transform_10, window_bounds = array<i64: 1, 128>}, {transform_indices = @transform_11, window_bounds = array<i64: 8, 128>}]} {
    %c0 = arith.constant 0 : index
    %c0_0 = arith.constant 0 : index
    %0 = vector.load %arg3[%c0, %c0_0] : memref<16x384xbf16, #tpu.memory_space<vmem>>, vector<16x384xbf16>
    %c0_1 = arith.constant 0 : index
    %c0_2 = arith.constant 0 : index
    %1 = vector.load %arg5[%c0_1, %c0_2] : memref<1x384xf32, #tpu.memory_space<vmem>>, vector<1x384xf32>
    %c0_3 = arith.constant 0 : index
    %c0_4 = arith.constant 0 : index
    %2 = vector.load %arg4[%c0_3, %c0_4] : memref<128x384xbf16, #tpu.memory_space<vmem>>, vector<128x384xbf16>
    %c0_5 = arith.constant 0 : index
    %c0_6 = arith.constant 0 : index
    %3 = vector.load %arg6[%c0_5, %c0_6] : memref<1x384xf32, #tpu.memory_space<vmem>>, vector<1x384xf32>
    %c0_7 = arith.constant 0 : index
    %c0_8 = arith.constant 0 : index
    %4 = vector.load %arg7[%c0_7, %c0_8] : memref<128x128xbf16, #tpu.memory_space<vmem>>, vector<128x128xbf16>
    %c0_9 = arith.constant 0 : index
    %c0_10 = arith.constant 0 : index
    %5 = vector.load %arg8[%c0_9, %c0_10] : memref<1x128xf32, #tpu.memory_space<vmem>>, vector<1x128xf32>
    %c0_11 = arith.constant 0 : index
    %c0_12 = arith.constant 0 : index
    %6 = vector.load %arg9[%c0_11, %c0_12] : memref<1x128xf32, #tpu.memory_space<vmem>>, vector<1x128xf32>
    %c0_i32 = arith.constant 0 : i32
    %c8_i32 = arith.constant 8 : i32
    %7 = arith.muli %c0_i32, %c8_i32 : i32
    %8 = tpu.assume_multiple %7, 8 : i32
    %9 = arith.index_cast %8 : i32 to index
    %c0_13 = arith.constant 0 : index
    %c0_14 = arith.constant 0 : index
    %10 = vector.load %arg1[%9, %c0_13, %c0_14] : memref<8x8x16xbf16, #tpu.memory_space<vmem>>, vector<8x8x16xbf16>
    %11 = vector.shape_cast %10 : vector<8x8x16xbf16> to vector<64x16xbf16>
    %cst = arith.constant dense<0.000000e+00> : vector<64x384xf32>
    %12 = tpu.matmul %11, %0, %cst {dimension_numbers = #tpu.dot_dimension_numbers<[1], [0], [0], [1], [0, 0, 1, 1], [], []>} : vector<64x16xbf16>, vector<16x384xbf16>, vector<64x384xf32> -> vector<64x384xf32>
    %13 = vector.broadcast %1 : vector<1x384xf32> to vector<64x384xf32>
    %14 = arith.addf %12, %13 : vector<64x384xf32>
    %15 = vector.shape_cast %14 : vector<64x384xf32> to vector<8x8x384xf32>
    %16 = arith.truncf %15 : vector<8x8x384xf32> to vector<8x8x384xbf16>
    %17 = arith.index_cast %8 : i32 to index
    %c0_15 = arith.constant 0 : index
    %c0_16 = arith.constant 0 : index
    %18 = vector.load %arg13[%17, %c0_15, %c0_16] : memref<8x8x384xbf16, #tpu.memory_space<vmem>>, vector<8x8x384xbf16>
    tpu.vector_store %arg13[%17, %c0_15, %c0_16], %16 {strides = array<i32>} : memref<8x8x384xbf16, #tpu.memory_space<vmem>>, vector<8x8x384xbf16>,
    %c1_i32 = arith.constant 1 : i32
    %cst_17 = arith.constant 0.000000e+00 : f32
    %19 = vector.broadcast %cst_17 : f32 to vector<8x128xf32>
    %c0_i32_18 = arith.constant 0 : i32
    %20 = arith.index_cast %c0_i32_18 : i32 to index
    %c0_19 = arith.constant 0 : index
    %c0_20 = arith.constant 0 : index
    %21 = vector.load %arg13[%20, %c0_19, %c0_20] : memref<8x8x384xbf16, #tpu.memory_space<vmem>>, vector<1x8x384xbf16>
    %22 = vector.shape_cast %21 : vector<1x8x384xbf16> to vector<8x384xbf16>
    %23 = arith.extf %22 : vector<8x384xbf16> to vector<8x384xf32>
    %24 = arith.truncf %19 : vector<8x128xf32> to vector<8x128xbf16>
    %cst_21 = arith.constant dense<0.000000e+00> : vector<8x384xf32>
    %25 = tpu.matmul %24, %2, %cst_21 {dimension_numbers = #tpu.dot_dimension_numbers<[1], [0], [0], [1], [0, 0, 1, 1], [], []>} : vector<8x128xbf16>, vector<128x384xbf16>, vector<8x384xf32> -> vector<8x384xf32>
    %26 = vector.broadcast %3 : vector<1x384xf32> to vector<8x384xf32>
    %27 = arith.addf %25, %26 : vector<8x384xf32>
    %28 = vector.extract_strided_slice %23 {offsets = [0, 0], sizes = [8, 128], strides = [1, 1]} : vector<8x384xf32> to vector<8x128xf32>
    %29 = vector.extract_strided_slice %27 {offsets = [0, 0], sizes = [8, 128], strides = [1, 1]} : vector<8x384xf32> to vector<8x128xf32>
    %30 = arith.addf %28, %29 : vector<8x128xf32>
    %31 = arith.negf %30 : vector<8x128xf32>
    %32 = math.exp %31 : vector<8x128xf32>
    %cst_22 = arith.constant 1.000000e+00 : f32
    %33 = vector.broadcast %cst_22 : f32 to vector<8x128xf32>
    %34 = arith.addf %33, %32 : vector<8x128xf32>
    %35 = arith.divf %33, %34 : vector<8x128xf32>
    %36 = vector.extract_strided_slice %23 {offsets = [0, 128], sizes = [8, 128], strides = [1, 1]} : vector<8x384xf32> to vector<8x128xf32>
    %37 = vector.extract_strided_slice %27 {offsets = [0, 128], sizes = [8, 128], strides = [1, 1]} : vector<8x384xf32> to vector<8x128xf32>
    %38 = arith.addf %36, %37 : vector<8x128xf32>
    %39 = arith.negf %38 : vector<8x128xf32>
    %40 = math.exp %39 : vector<8x128xf32>
    %cst_23 = arith.constant 1.000000e+00 : f32
    %41 = vector.broadcast %cst_23 : f32 to vector<8x128xf32>
    %42 = arith.addf %41, %40 : vector<8x128xf32>
    %43 = arith.divf %41, %42 : vector<8x128xf32>
    %44 = vector.extract_strided_slice %23 {offsets = [0, 256], sizes = [8, 128], strides = [1, 1]} : vector<8x384xf32> to vector<8x128xf32>
    %45 = vector.extract_strided_slice %27 {offsets = [0, 256], sizes = [8, 128], strides = [1, 1]} : vector<8x384xf32> to vector<8x128xf32>
    %46 = arith.mulf %35, %45 : vector<8x128xf32>
    %47 = arith.addf %44, %46 : vector<8x128xf32>
    %48 = math.tanh %47 : vector<8x128xf32>
    %cst_24 = arith.constant 1.000000e+00 : f32
    %49 = vector.broadcast %cst_24 : f32 to vector<8x128xf32>
    %50 = arith.subf %49, %43 : vector<8x128xf32>
    %51 = arith.mulf %50, %48 : vector<8x128xf32>
    %52 = arith.mulf %43, %19 : vector<8x128xf32>
    %53 = arith.addf %51, %52 : vector<8x128xf32>
    %54 = arith.truncf %53 : vector<8x128xf32> to vector<8x128xbf16>
    %55 = arith.index_cast %c0_i32_18 : i32 to index
    %c0_25 = arith.constant 0 : index
    %c0_26 = arith.constant 0 : index
    %56 = vector.load %arg14[%55, %c0_25, %c0_26] : memref<8x8x128xbf16, #tpu.memory_space<vmem>>, vector<1x8x128xbf16>
    %57 = vector.shape_cast %56 : vector<1x8x128xbf16> to vector<8x128xbf16>
    %58 = vector.shape_cast %54 : vector<8x128xbf16> to vector<1x8x128xbf16>
    tpu.vector_store %arg14[%55, %c0_25, %c0_26], %58 {strides = array<i32>} : memref<8x8x128xbf16, #tpu.memory_space<vmem>>, vector<1x8x128xbf16>,
    %c1_i32_27 = arith.constant 1 : i32
    %59 = arith.index_cast %c1_i32_27 : i32 to index
    %c0_28 = arith.constant 0 : index
    %c0_29 = arith.constant 0 : index
    %60 = vector.load %arg13[%59, %c0_28, %c0_29] : memref<8x8x384xbf16, #tpu.memory_space<vmem>>, vector<1x8x384xbf16>
    %61 = vector.shape_cast %60 : vector<1x8x384xbf16> to vector<8x384xbf16>
    %62 = arith.extf %61 : vector<8x384xbf16> to vector<8x384xf32>
    %63 = arith.truncf %53 : vector<8x128xf32> to vector<8x128xbf16>
    %cst_30 = arith.constant dense<0.000000e+00> : vector<8x384xf32>
    %64 = tpu.matmul %63, %2, %cst_30 {dimension_numbers = #tpu.dot_dimension_numbers<[1], [0], [0], [1], [0, 0, 1, 1], [], []>} : vector<8x128xbf16>, vector<128x384xbf16>, vector<8x384xf32> -> vector<8x384xf32>
    %65 = vector.broadcast %3 : vector<1x384xf32> to vector<8x384xf32>
    %66 = arith.addf %64, %65 : vector<8x384xf32>
    %67 = vector.extract_strided_slice %62 {offsets = [0, 0], sizes = [8, 128], strides = [1, 1]} : vector<8x384xf32> to vector<8x128xf32>
    %68 = vector.extract_strided_slice %66 {offsets = [0, 0], sizes = [8, 128], strides = [1, 1]} : vector<8x384xf32> to vector<8x128xf32>
    %69 = arith.addf %67, %68 : vector<8x128xf32>
    %70 = arith.negf %69 : vector<8x128xf32>
    %71 = math.exp %70 : vector<8x128xf32>
    %cst_31 = arith.constant 1.000000e+00 : f32
    %72 = vector.broadcast %cst_31 : f32 to vector<8x128xf32>
    %73 = arith.addf %72, %71 : vector<8x128xf32>
    %74 = arith.divf %72, %73 : vector<8x128xf32>
    %75 = vector.extract_strided_slice %62 {offsets = [0, 128], sizes = [8, 128], strides = [1, 1]} : vector<8x384xf32> to vector<8x128xf32>
    %76 = vector.extract_strided_slice %66 {offsets = [0, 128], sizes = [8, 128], strides = [1, 1]} : vector<8x384xf32> to vector<8x128xf32>
    %77 = arith.addf %75, %76 : vector<8x128xf32>
    %78 = arith.negf %77 : vector<8x128xf32>
    %79 = math.exp %78 : vector<8x128xf32>
    %cst_32 = arith.constant 1.000000e+00 : f32
    %80 = vector.broadcast %cst_32 : f32 to vector<8x128xf32>
    %81 = arith.addf %80, %79 : vector<8x128xf32>
    %82 = arith.divf %80, %81 : vector<8x128xf32>
    %83 = vector.extract_strided_slice %62 {offsets = [0, 256], sizes = [8, 128], strides = [1, 1]} : vector<8x384xf32> to vector<8x128xf32>
    %84 = vector.extract_strided_slice %66 {offsets = [0, 256], sizes = [8, 128], strides = [1, 1]} : vector<8x384xf32> to vector<8x128xf32>
    %85 = arith.mulf %74, %84 : vector<8x128xf32>
    %86 = arith.addf %83, %85 : vector<8x128xf32>
    %87 = math.tanh %86 : vector<8x128xf32>
    %cst_33 = arith.constant 1.000000e+00 : f32
    %88 = vector.broadcast %cst_33 : f32 to vector<8x128xf32>
    %89 = arith.subf %88, %82 : vector<8x128xf32>
    %90 = arith.mulf %89, %87 : vector<8x128xf32>
    %91 = arith.mulf %82, %53 : vector<8x128xf32>
    %92 = arith.addf %90, %91 : vector<8x128xf32>
    %93 = arith.truncf %92 : vector<8x128xf32> to vector<8x128xbf16>
    %94 = arith.index_cast %c1_i32_27 : i32 to index
    %c0_34 = arith.constant 0 : index
    %c0_35 = arith.constant 0 : index
    %95 = vector.load %arg14[%94, %c0_34, %c0_35] : memref<8x8x128xbf16, #tpu.memory_space<vmem>>, vector<1x8x128xbf16>
    %96 = vector.shape_cast %95 : vector<1x8x128xbf16> to vector<8x128xbf16>
    %97 = vector.shape_cast %93 : vector<8x128xbf16> to vector<1x8x128xbf16>
    tpu.vector_store %arg14[%94, %c0_34, %c0_35], %97 {strides = array<i32>} : memref<8x8x128xbf16, #tpu.memory_space<vmem>>, vector<1x8x128xbf16>,
    %c2_i32 = arith.constant 2 : i32
    %98 = arith.index_cast %c2_i32 : i32 to index
    %c0_36 = arith.constant 0 : index
    %c0_37 = arith.constant 0 : index
    %99 = vector.load %arg13[%98, %c0_36, %c0_37] : memref<8x8x384xbf16, #tpu.memory_space<vmem>>, vector<1x8x384xbf16>
    %100 = vector.shape_cast %99 : vector<1x8x384xbf16> to vector<8x384xbf16>
    %101 = arith.extf %100 : vector<8x384xbf16> to vector<8x384xf32>
    %102 = arith.truncf %92 : vector<8x128xf32> to vector<8x128xbf16>
    %cst_38 = arith.constant dense<0.000000e+00> : vector<8x384xf32>
    %103 = tpu.matmul %102, %2, %cst_38 {dimension_numbers = #tpu.dot_dimension_numbers<[1], [0], [0], [1], [0, 0, 1, 1], [], []>} : vector<8x128xbf16>, vector<128x384xbf16>, vector<8x384xf32> -> vector<8x384xf32>
    %104 = vector.broadcast %3 : vector<1x384xf32> to vector<8x384xf32>
    %105 = arith.addf %103, %104 : vector<8x384xf32>
    %106 = vector.extract_strided_slice %101 {offsets = [0, 0], sizes = [8, 128], strides = [1, 1]} : vector<8x384xf32> to vector<8x128xf32>
    %107 = vector.extract_strided_slice %105 {offsets = [0, 0], sizes = [8, 128], strides = [1, 1]} : vector<8x384xf32> to vector<8x128xf32>
    %108 = arith.addf %106, %107 : vector<8x128xf32>
    %109 = arith.negf %108 : vector<8x128xf32>
    %110 = math.exp %109 : vector<8x128xf32>
    %cst_39 = arith.constant 1.000000e+00 : f32
    %111 = vector.broadcast %cst_39 : f32 to vector<8x128xf32>
    %112 = arith.addf %111, %110 : vector<8x128xf32>
    %113 = arith.divf %111, %112 : vector<8x128xf32>
    %114 = vector.extract_strided_slice %101 {offsets = [0, 128], sizes = [8, 128], strides = [1, 1]} : vector<8x384xf32> to vector<8x128xf32>
    %115 = vector.extract_strided_slice %105 {offsets = [0, 128], sizes = [8, 128], strides = [1, 1]} : vector<8x384xf32> to vector<8x128xf32>
    %116 = arith.addf %114, %115 : vector<8x128xf32>
    %117 = arith.negf %116 : vector<8x128xf32>
    %118 = math.exp %117 : vector<8x128xf32>
    %cst_40 = arith.constant 1.000000e+00 : f32
    %119 = vector.broadcast %cst_40 : f32 to vector<8x128xf32>
    %120 = arith.addf %119, %118 : vector<8x128xf32>
    %121 = arith.divf %119, %120 : vector<8x128xf32>
    %122 = vector.extract_strided_slice %101 {offsets = [0, 256], sizes = [8, 128], strides = [1, 1]} : vector<8x384xf32> to vector<8x128xf32>
    %123 = vector.extract_strided_slice %105 {offsets = [0, 256], sizes = [8, 128], strides = [1, 1]} : vector<8x384xf32> to vector<8x128xf32>
    %124 = arith.mulf %113, %123 : vector<8x128xf32>
    %125 = arith.addf %122, %124 : vector<8x128xf32>
    %126 = math.tanh %125 : vector<8x128xf32>
    %cst_41 = arith.constant 1.000000e+00 : f32
    %127 = vector.broadcast %cst_41 : f32 to vector<8x128xf32>
    %128 = arith.subf %127, %121 : vector<8x128xf32>
    %129 = arith.mulf %128, %126 : vector<8x128xf32>
    %130 = arith.mulf %121, %92 : vector<8x128xf32>
    %131 = arith.addf %129, %130 : vector<8x128xf32>
    %132 = arith.truncf %131 : vector<8x128xf32> to vector<8x128xbf16>
    %133 = arith.index_cast %c2_i32 : i32 to index
    %c0_42 = arith.constant 0 : index
    %c0_43 = arith.constant 0 : index
    %134 = vector.load %arg14[%133, %c0_42, %c0_43] : memref<8x8x128xbf16, #tpu.memory_space<vmem>>, vector<1x8x128xbf16>
    %135 = vector.shape_cast %134 : vector<1x8x128xbf16> to vector<8x128xbf16>
    %136 = vector.shape_cast %132 : vector<8x128xbf16> to vector<1x8x128xbf16>
    tpu.vector_store %arg14[%133, %c0_42, %c0_43], %136 {strides = array<i32>} : memref<8x8x128xbf16, #tpu.memory_space<vmem>>, vector<1x8x128xbf16>,
    %c3_i32 = arith.constant 3 : i32
    %137 = arith.index_cast %c3_i32 : i32 to index
    %c0_44 = arith.constant 0 : index
    %c0_45 = arith.constant 0 : index
    %138 = vector.load %arg13[%137, %c0_44, %c0_45] : memref<8x8x384xbf16, #tpu.memory_space<vmem>>, vector<1x8x384xbf16>
    %139 = vector.shape_cast %138 : vector<1x8x384xbf16> to vector<8x384xbf16>
    %140 = arith.extf %139 : vector<8x384xbf16> to vector<8x384xf32>
    %141 = arith.truncf %131 : vector<8x128xf32> to vector<8x128xbf16>
    %cst_46 = arith.constant dense<0.000000e+00> : vector<8x384xf32>
    %142 = tpu.matmul %141, %2, %cst_46 {dimension_numbers = #tpu.dot_dimension_numbers<[1], [0], [0], [1], [0, 0, 1, 1], [], []>} : vector<8x128xbf16>, vector<128x384xbf16>, vector<8x384xf32> -> vector<8x384xf32>
    %143 = vector.broadcast %3 : vector<1x384xf32> to vector<8x384xf32>
    %144 = arith.addf %142, %143 : vector<8x384xf32>
    %145 = vector.extract_strided_slice %140 {offsets = [0, 0], sizes = [8, 128], strides = [1, 1]} : vector<8x384xf32> to vector<8x128xf32>
    %146 = vector.extract_strided_slice %144 {offsets = [0, 0], sizes = [8, 128], strides = [1, 1]} : vector<8x384xf32> to vector<8x128xf32>
    %147 = arith.addf %145, %146 : vector<8x128xf32>
    %148 = arith.negf %147 : vector<8x128xf32>
    %149 = math.exp %148 : vector<8x128xf32>
    %cst_47 = arith.constant 1.000000e+00 : f32
    %150 = vector.broadcast %cst_47 : f32 to vector<8x128xf32>
    %151 = arith.addf %150, %149 : vector<8x128xf32>
    %152 = arith.divf %150, %151 : vector<8x128xf32>
    %153 = vector.extract_strided_slice %140 {offsets = [0, 128], sizes = [8, 128], strides = [1, 1]} : vector<8x384xf32> to vector<8x128xf32>
    %154 = vector.extract_strided_slice %144 {offsets = [0, 128], sizes = [8, 128], strides = [1, 1]} : vector<8x384xf32> to vector<8x128xf32>
    %155 = arith.addf %153, %154 : vector<8x128xf32>
    %156 = arith.negf %155 : vector<8x128xf32>
    %157 = math.exp %156 : vector<8x128xf32>
    %cst_48 = arith.constant 1.000000e+00 : f32
    %158 = vector.broadcast %cst_48 : f32 to vector<8x128xf32>
    %159 = arith.addf %158, %157 : vector<8x128xf32>
    %160 = arith.divf %158, %159 : vector<8x128xf32>
    %161 = vector.extract_strided_slice %140 {offsets = [0, 256], sizes = [8, 128], strides = [1, 1]} : vector<8x384xf32> to vector<8x128xf32>
    %162 = vector.extract_strided_slice %144 {offsets = [0, 256], sizes = [8, 128], strides = [1, 1]} : vector<8x384xf32> to vector<8x128xf32>
    %163 = arith.mulf %152, %162 : vector<8x128xf32>
    %164 = arith.addf %161, %163 : vector<8x128xf32>
    %165 = math.tanh %164 : vector<8x128xf32>
    %cst_49 = arith.constant 1.000000e+00 : f32
    %166 = vector.broadcast %cst_49 : f32 to vector<8x128xf32>
    %167 = arith.subf %166, %160 : vector<8x128xf32>
    %168 = arith.mulf %167, %165 : vector<8x128xf32>
    %169 = arith.mulf %160, %131 : vector<8x128xf32>
    %170 = arith.addf %168, %169 : vector<8x128xf32>
    %171 = arith.truncf %170 : vector<8x128xf32> to vector<8x128xbf16>
    %172 = arith.index_cast %c3_i32 : i32 to index
    %c0_50 = arith.constant 0 : index
    %c0_51 = arith.constant 0 : index
    %173 = vector.load %arg14[%172, %c0_50, %c0_51] : memref<8x8x128xbf16, #tpu.memory_space<vmem>>, vector<1x8x128xbf16>
    %174 = vector.shape_cast %173 : vector<1x8x128xbf16> to vector<8x128xbf16>
    %175 = vector.shape_cast %171 : vector<8x128xbf16> to vector<1x8x128xbf16>
    tpu.vector_store %arg14[%172, %c0_50, %c0_51], %175 {strides = array<i32>} : memref<8x8x128xbf16, #tpu.memory_space<vmem>>, vector<1x8x128xbf16>,
    %c4_i32 = arith.constant 4 : i32
    %176 = arith.index_cast %c4_i32 : i32 to index
    %c0_52 = arith.constant 0 : index
    %c0_53 = arith.constant 0 : index
    %177 = vector.load %arg13[%176, %c0_52, %c0_53] : memref<8x8x384xbf16, #tpu.memory_space<vmem>>, vector<1x8x384xbf16>
    %178 = vector.shape_cast %177 : vector<1x8x384xbf16> to vector<8x384xbf16>
    %179 = arith.extf %178 : vector<8x384xbf16> to vector<8x384xf32>
    %180 = arith.truncf %170 : vector<8x128xf32> to vector<8x128xbf16>
    %cst_54 = arith.constant dense<0.000000e+00> : vector<8x384xf32>
    %181 = tpu.matmul %180, %2, %cst_54 {dimension_numbers = #tpu.dot_dimension_numbers<[1], [0], [0], [1], [0, 0, 1, 1], [], []>} : vector<8x128xbf16>, vector<128x384xbf16>, vector<8x384xf32> -> vector<8x384xf32>
    %182 = vector.broadcast %3 : vector<1x384xf32> to vector<8x384xf32>
    %183 = arith.addf %181, %182 : vector<8x384xf32>
    %184 = vector.extract_strided_slice %179 {offsets = [0, 0], sizes = [8, 128], strides = [1, 1]} : vector<8x384xf32> to vector<8x128xf32>
    %185 = vector.extract_strided_slice %183 {offsets = [0, 0], sizes = [8, 128], strides = [1, 1]} : vector<8x384xf32> to vector<8x128xf32>
    %186 = arith.addf %184, %185 : vector<8x128xf32>
    %187 = arith.negf %186 : vector<8x128xf32>
    %188 = math.exp %187 : vector<8x128xf32>
    %cst_55 = arith.constant 1.000000e+00 : f32
    %189 = vector.broadcast %cst_55 : f32 to vector<8x128xf32>
    %190 = arith.addf %189, %188 : vector<8x128xf32>
    %191 = arith.divf %189, %190 : vector<8x128xf32>
    %192 = vector.extract_strided_slice %179 {offsets = [0, 128], sizes = [8, 128], strides = [1, 1]} : vector<8x384xf32> to vector<8x128xf32>
    %193 = vector.extract_strided_slice %183 {offsets = [0, 128], sizes = [8, 128], strides = [1, 1]} : vector<8x384xf32> to vector<8x128xf32>
    %194 = arith.addf %192, %193 : vector<8x128xf32>
    %195 = arith.negf %194 : vector<8x128xf32>
    %196 = math.exp %195 : vector<8x128xf32>
    %cst_56 = arith.constant 1.000000e+00 : f32
    %197 = vector.broadcast %cst_56 : f32 to vector<8x128xf32>
    %198 = arith.addf %197, %196 : vector<8x128xf32>
    %199 = arith.divf %197, %198 : vector<8x128xf32>
    %200 = vector.extract_strided_slice %179 {offsets = [0, 256], sizes = [8, 128], strides = [1, 1]} : vector<8x384xf32> to vector<8x128xf32>
    %201 = vector.extract_strided_slice %183 {offsets = [0, 256], sizes = [8, 128], strides = [1, 1]} : vector<8x384xf32> to vector<8x128xf32>
    %202 = arith.mulf %191, %201 : vector<8x128xf32>
    %203 = arith.addf %200, %202 : vector<8x128xf32>
    %204 = math.tanh %203 : vector<8x128xf32>
    %cst_57 = arith.constant 1.000000e+00 : f32
    %205 = vector.broadcast %cst_57 : f32 to vector<8x128xf32>
    %206 = arith.subf %205, %199 : vector<8x128xf32>
    %207 = arith.mulf %206, %204 : vector<8x128xf32>
    %208 = arith.mulf %199, %170 : vector<8x128xf32>
    %209 = arith.addf %207, %208 : vector<8x128xf32>
    %210 = arith.truncf %209 : vector<8x128xf32> to vector<8x128xbf16>
    %211 = arith.index_cast %c4_i32 : i32 to index
    %c0_58 = arith.constant 0 : index
    %c0_59 = arith.constant 0 : index
    %212 = vector.load %arg14[%211, %c0_58, %c0_59] : memref<8x8x128xbf16, #tpu.memory_space<vmem>>, vector<1x8x128xbf16>
    %213 = vector.shape_cast %212 : vector<1x8x128xbf16> to vector<8x128xbf16>
    %214 = vector.shape_cast %210 : vector<8x128xbf16> to vector<1x8x128xbf16>
    tpu.vector_store %arg14[%211, %c0_58, %c0_59], %214 {strides = array<i32>} : memref<8x8x128xbf16, #tpu.memory_space<vmem>>, vector<1x8x128xbf16>,
    %c5_i32 = arith.constant 5 : i32
    %215 = arith.index_cast %c5_i32 : i32 to index
    %c0_60 = arith.constant 0 : index
    %c0_61 = arith.constant 0 : index
    %216 = vector.load %arg13[%215, %c0_60, %c0_61] : memref<8x8x384xbf16, #tpu.memory_space<vmem>>, vector<1x8x384xbf16>
    %217 = vector.shape_cast %216 : vector<1x8x384xbf16> to vector<8x384xbf16>
    %218 = arith.extf %217 : vector<8x384xbf16> to vector<8x384xf32>
    %219 = arith.truncf %209 : vector<8x128xf32> to vector<8x128xbf16>
    %cst_62 = arith.constant dense<0.000000e+00> : vector<8x384xf32>
    %220 = tpu.matmul %219, %2, %cst_62 {dimension_numbers = #tpu.dot_dimension_numbers<[1], [0], [0], [1], [0, 0, 1, 1], [], []>} : vector<8x128xbf16>, vector<128x384xbf16>, vector<8x384xf32> -> vector<8x384xf32>
    %221 = vector.broadcast %3 : vector<1x384xf32> to vector<8x384xf32>
    %222 = arith.addf %220, %221 : vector<8x384xf32>
    %223 = vector.extract_strided_slice %218 {offsets = [0, 0], sizes = [8, 128], strides = [1, 1]} : vector<8x384xf32> to vector<8x128xf32>
    %224 = vector.extract_strided_slice %222 {offsets = [0, 0], sizes = [8, 128], strides = [1, 1]} : vector<8x384xf32> to vector<8x128xf32>
    %225 = arith.addf %223, %224 : vector<8x128xf32>
    %226 = arith.negf %225 : vector<8x128xf32>
    %227 = math.exp %226 : vector<8x128xf32>
    %cst_63 = arith.constant 1.000000e+00 : f32
    %228 = vector.broadcast %cst_63 : f32 to vector<8x128xf32>
    %229 = arith.addf %228, %227 : vector<8x128xf32>
    %230 = arith.divf %228, %229 : vector<8x128xf32>
    %231 = vector.extract_strided_slice %218 {offsets = [0, 128], sizes = [8, 128], strides = [1, 1]} : vector<8x384xf32> to vector<8x128xf32>
    %232 = vector.extract_strided_slice %222 {offsets = [0, 128], sizes = [8, 128], strides = [1, 1]} : vector<8x384xf32> to vector<8x128xf32>
    %233 = arith.addf %231, %232 : vector<8x128xf32>
    %234 = arith.negf %233 : vector<8x128xf32>
    %235 = math.exp %234 : vector<8x128xf32>
    %cst_64 = arith.constant 1.000000e+00 : f32
    %236 = vector.broadcast %cst_64 : f32 to vector<8x128xf32>
    %237 = arith.addf %236, %235 : vector<8x128xf32>
    %238 = arith.divf %236, %237 : vector<8x128xf32>
    %239 = vector.extract_strided_slice %218 {offsets = [0, 256], sizes = [8, 128], strides = [1, 1]} : vector<8x384xf32> to vector<8x128xf32>
    %240 = vector.extract_strided_slice %222 {offsets = [0, 256], sizes = [8, 128], strides = [1, 1]} : vector<8x384xf32> to vector<8x128xf32>
    %241 = arith.mulf %230, %240 : vector<8x128xf32>
    %242 = arith.addf %239, %241 : vector<8x128xf32>
    %243 = math.tanh %242 : vector<8x128xf32>
    %cst_65 = arith.constant 1.000000e+00 : f32
    %244 = vector.broadcast %cst_65 : f32 to vector<8x128xf32>
    %245 = arith.subf %244, %238 : vector<8x128xf32>
    %246 = arith.mulf %245, %243 : vector<8x128xf32>
    %247 = arith.mulf %238, %209 : vector<8x128xf32>
    %248 = arith.addf %246, %247 : vector<8x128xf32>
    %249 = arith.truncf %248 : vector<8x128xf32> to vector<8x128xbf16>
    %250 = arith.index_cast %c5_i32 : i32 to index
    %c0_66 = arith.constant 0 : index
    %c0_67 = arith.constant 0 : index
    %251 = vector.load %arg14[%250, %c0_66, %c0_67] : memref<8x8x128xbf16, #tpu.memory_space<vmem>>, vector<1x8x128xbf16>
    %252 = vector.shape_cast %251 : vector<1x8x128xbf16> to vector<8x128xbf16>
    %253 = vector.shape_cast %249 : vector<8x128xbf16> to vector<1x8x128xbf16>
    tpu.vector_store %arg14[%250, %c0_66, %c0_67], %253 {strides = array<i32>} : memref<8x8x128xbf16, #tpu.memory_space<vmem>>, vector<1x8x128xbf16>,
    %c6_i32 = arith.constant 6 : i32
    %254 = arith.index_cast %c6_i32 : i32 to index
    %c0_68 = arith.constant 0 : index
    %c0_69 = arith.constant 0 : index
    %255 = vector.load %arg13[%254, %c0_68, %c0_69] : memref<8x8x384xbf16, #tpu.memory_space<vmem>>, vector<1x8x384xbf16>
    %256 = vector.shape_cast %255 : vector<1x8x384xbf16> to vector<8x384xbf16>
    %257 = arith.extf %256 : vector<8x384xbf16> to vector<8x384xf32>
    %258 = arith.truncf %248 : vector<8x128xf32> to vector<8x128xbf16>
    %cst_70 = arith.constant dense<0.000000e+00> : vector<8x384xf32>
    %259 = tpu.matmul %258, %2, %cst_70 {dimension_numbers = #tpu.dot_dimension_numbers<[1], [0], [0], [1], [0, 0, 1, 1], [], []>} : vector<8x128xbf16>, vector<128x384xbf16>, vector<8x384xf32> -> vector<8x384xf32>
    %260 = vector.broadcast %3 : vector<1x384xf32> to vector<8x384xf32>
    %261 = arith.addf %259, %260 : vector<8x384xf32>
    %262 = vector.extract_strided_slice %257 {offsets = [0, 0], sizes = [8, 128], strides = [1, 1]} : vector<8x384xf32> to vector<8x128xf32>
    %263 = vector.extract_strided_slice %261 {offsets = [0, 0], sizes = [8, 128], strides = [1, 1]} : vector<8x384xf32> to vector<8x128xf32>
    %264 = arith.addf %262, %263 : vector<8x128xf32>
    %265 = arith.negf %264 : vector<8x128xf32>
    %266 = math.exp %265 : vector<8x128xf32>
    %cst_71 = arith.constant 1.000000e+00 : f32
    %267 = vector.broadcast %cst_71 : f32 to vector<8x128xf32>
    %268 = arith.addf %267, %266 : vector<8x128xf32>
    %269 = arith.divf %267, %268 : vector<8x128xf32>
    %270 = vector.extract_strided_slice %257 {offsets = [0, 128], sizes = [8, 128], strides = [1, 1]} : vector<8x384xf32> to vector<8x128xf32>
    %271 = vector.extract_strided_slice %261 {offsets = [0, 128], sizes = [8, 128], strides = [1, 1]} : vector<8x384xf32> to vector<8x128xf32>
    %272 = arith.addf %270, %271 : vector<8x128xf32>
    %273 = arith.negf %272 : vector<8x128xf32>
    %274 = math.exp %273 : vector<8x128xf32>
    %cst_72 = arith.constant 1.000000e+00 : f32
    %275 = vector.broadcast %cst_72 : f32 to vector<8x128xf32>
    %276 = arith.addf %275, %274 : vector<8x128xf32>
    %277 = arith.divf %275, %276 : vector<8x128xf32>
    %278 = vector.extract_strided_slice %257 {offsets = [0, 256], sizes = [8, 128], strides = [1, 1]} : vector<8x384xf32> to vector<8x128xf32>
    %279 = vector.extract_strided_slice %261 {offsets = [0, 256], sizes = [8, 128], strides = [1, 1]} : vector<8x384xf32> to vector<8x128xf32>
    %280 = arith.mulf %269, %279 : vector<8x128xf32>
    %281 = arith.addf %278, %280 : vector<8x128xf32>
    %282 = math.tanh %281 : vector<8x128xf32>
    %cst_73 = arith.constant 1.000000e+00 : f32
    %283 = vector.broadcast %cst_73 : f32 to vector<8x128xf32>
    %284 = arith.subf %283, %277 : vector<8x128xf32>
    %285 = arith.mulf %284, %282 : vector<8x128xf32>
    %286 = arith.mulf %277, %248 : vector<8x128xf32>
    %287 = arith.addf %285, %286 : vector<8x128xf32>
    %288 = arith.truncf %287 : vector<8x128xf32> to vector<8x128xbf16>
    %289 = arith.index_cast %c6_i32 : i32 to index
    %c0_74 = arith.constant 0 : index
    %c0_75 = arith.constant 0 : index
    %290 = vector.load %arg14[%289, %c0_74, %c0_75] : memref<8x8x128xbf16, #tpu.memory_space<vmem>>, vector<1x8x128xbf16>
    %291 = vector.shape_cast %290 : vector<1x8x128xbf16> to vector<8x128xbf16>
    %292 = vector.shape_cast %288 : vector<8x128xbf16> to vector<1x8x128xbf16>
    tpu.vector_store %arg14[%289, %c0_74, %c0_75], %292 {strides = array<i32>} : memref<8x8x128xbf16, #tpu.memory_space<vmem>>, vector<1x8x128xbf16>,
    %c7_i32 = arith.constant 7 : i32
    %293 = arith.index_cast %c7_i32 : i32 to index
    %c0_76 = arith.constant 0 : index
    %c0_77 = arith.constant 0 : index
    %294 = vector.load %arg13[%293, %c0_76, %c0_77] : memref<8x8x384xbf16, #tpu.memory_space<vmem>>, vector<1x8x384xbf16>
    %295 = vector.shape_cast %294 : vector<1x8x384xbf16> to vector<8x384xbf16>
    %296 = arith.extf %295 : vector<8x384xbf16> to vector<8x384xf32>
    %297 = arith.truncf %287 : vector<8x128xf32> to vector<8x128xbf16>
    %cst_78 = arith.constant dense<0.000000e+00> : vector<8x384xf32>
    %298 = tpu.matmul %297, %2, %cst_78 {dimension_numbers = #tpu.dot_dimension_numbers<[1], [0], [0], [1], [0, 0, 1, 1], [], []>} : vector<8x128xbf16>, vector<128x384xbf16>, vector<8x384xf32> -> vector<8x384xf32>
    %299 = vector.broadcast %3 : vector<1x384xf32> to vector<8x384xf32>
    %300 = arith.addf %298, %299 : vector<8x384xf32>
    %301 = vector.extract_strided_slice %296 {offsets = [0, 0], sizes = [8, 128], strides = [1, 1]} : vector<8x384xf32> to vector<8x128xf32>
    %302 = vector.extract_strided_slice %300 {offsets = [0, 0], sizes = [8, 128], strides = [1, 1]} : vector<8x384xf32> to vector<8x128xf32>
    %303 = arith.addf %301, %302 : vector<8x128xf32>
    %304 = arith.negf %303 : vector<8x128xf32>
    %305 = math.exp %304 : vector<8x128xf32>
    %cst_79 = arith.constant 1.000000e+00 : f32
    %306 = vector.broadcast %cst_79 : f32 to vector<8x128xf32>
    %307 = arith.addf %306, %305 : vector<8x128xf32>
    %308 = arith.divf %306, %307 : vector<8x128xf32>
    %309 = vector.extract_strided_slice %296 {offsets = [0, 128], sizes = [8, 128], strides = [1, 1]} : vector<8x384xf32> to vector<8x128xf32>
    %310 = vector.extract_strided_slice %300 {offsets = [0, 128], sizes = [8, 128], strides = [1, 1]} : vector<8x384xf32> to vector<8x128xf32>
    %311 = arith.addf %309, %310 : vector<8x128xf32>
    %312 = arith.negf %311 : vector<8x128xf32>
    %313 = math.exp %312 : vector<8x128xf32>
    %cst_80 = arith.constant 1.000000e+00 : f32
    %314 = vector.broadcast %cst_80 : f32 to vector<8x128xf32>
    %315 = arith.addf %314, %313 : vector<8x128xf32>
    %316 = arith.divf %314, %315 : vector<8x128xf32>
    %317 = vector.extract_strided_slice %296 {offsets = [0, 256], sizes = [8, 128], strides = [1, 1]} : vector<8x384xf32> to vector<8x128xf32>
    %318 = vector.extract_strided_slice %300 {offsets = [0, 256], sizes = [8, 128], strides = [1, 1]} : vector<8x384xf32> to vector<8x128xf32>
    %319 = arith.mulf %308, %318 : vector<8x128xf32>
    %320 = arith.addf %317, %319 : vector<8x128xf32>
    %321 = math.tanh %320 : vector<8x128xf32>
    %cst_81 = arith.constant 1.000000e+00 : f32
    %322 = vector.broadcast %cst_81 : f32 to vector<8x128xf32>
    %323 = arith.subf %322, %316 : vector<8x128xf32>
    %324 = arith.mulf %323, %321 : vector<8x128xf32>
    %325 = arith.mulf %316, %287 : vector<8x128xf32>
    %326 = arith.addf %324, %325 : vector<8x128xf32>
    %327 = arith.truncf %326 : vector<8x128xf32> to vector<8x128xbf16>
    %328 = arith.index_cast %c7_i32 : i32 to index
    %c0_82 = arith.constant 0 : index
    %c0_83 = arith.constant 0 : index
    %329 = vector.load %arg14[%328, %c0_82, %c0_83] : memref<8x8x128xbf16, #tpu.memory_space<vmem>>, vector<1x8x128xbf16>
    %330 = vector.shape_cast %329 : vector<1x8x128xbf16> to vector<8x128xbf16>
    %331 = vector.shape_cast %327 : vector<8x128xbf16> to vector<1x8x128xbf16>
    tpu.vector_store %arg14[%328, %c0_82, %c0_83], %331 {strides = array<i32>} : memref<8x8x128xbf16, #tpu.memory_space<vmem>>, vector<1x8x128xbf16>,
    %c8_i32_84 = arith.constant 8 : i32
    %c0_i32_85 = arith.constant 0 : i32
    %c8_i32_86 = arith.constant 8 : i32
    %332 = arith.muli %c0_i32_85, %c8_i32_86 : i32
    %333 = tpu.assume_multiple %332, 8 : i32
    %334 = arith.index_cast %333 : i32 to index
    %c0_87 = arith.constant 0 : index
    %c0_88 = arith.constant 0 : index
    %335 = vector.load %arg14[%334, %c0_87, %c0_88] : memref<8x8x128xbf16, #tpu.memory_space<vmem>>, vector<8x8x128xbf16>
    %336 = vector.shape_cast %335 : vector<8x8x128xbf16> to vector<64x128xbf16>
    %cst_89 = arith.constant dense<0.000000e+00> : vector<64x128xf32>
    %337 = tpu.matmul %336, %4, %cst_89 {dimension_numbers = #tpu.dot_dimension_numbers<[1], [0], [0], [1], [0, 0, 1, 1], [], []>} : vector<64x128xbf16>, vector<128x128xbf16>, vector<64x128xf32> -> vector<64x128xf32>
    %338 = vector.broadcast %5 : vector<1x128xf32> to vector<64x128xf32>
    %339 = arith.addf %337, %338 : vector<64x128xf32>
    %340 = math.tanh %339 : vector<64x128xf32>
    %341 = vector.shape_cast %340 : vector<64x128xf32> to vector<8x8x128xf32>
    %342 = vector.shape_cast %6 : vector<1x128xf32> to vector<1x1x128xf32>
    %343 = vector.broadcast %342 : vector<1x1x128xf32> to vector<8x8x128xf32>
    %344 = arith.mulf %341, %343 : vector<8x8x128xf32>
    %cst_90 = arith.constant dense<0.000000e+00> : vector<8x8xf32>
    %345 = vector.multi_reduction <add>, %344, %cst_90 [2] : vector<8x8x128xf32> to vector<8x8xf32>
    %346 = arith.index_cast %333 : i32 to index
    %c0_91 = arith.constant 0 : index
    %347 = vector.load %arg15[%346, %c0_91] : memref<8x8xf32, #tpu.memory_space<vmem>>, vector<8x8xf32>
    tpu.vector_store %arg15[%346, %c0_91], %345 {strides = array<i32>} : memref<8x8xf32, #tpu.memory_space<vmem>>, vector<8x8xf32>,
    %c1_i32_92 = arith.constant 1 : i32
    %348 = tpu.iota {dimensions = array<i32: 1>} : vector<8x8xi32>
    %c0_93 = arith.constant 0 : index
    %c0_94 = arith.constant 0 : index
    %349 = vector.load %arg2[%c0_93, %c0_94] : memref<8x1xi32, #tpu.memory_space<vmem>>, vector<8x1xi32>
    %350 = vector.broadcast %349 : vector<8x1xi32> to vector<8x8xi32>
    %351 = arith.cmpi sge, %348, %350 : vector<8x8xi32>
    %cst_95 = arith.constant -1.000000e+30 : f32
    %cst_96 = arith.constant 0.000000e+00 : f32
    %352 = vector.broadcast %cst_95 : f32 to vector<8x8xf32>
    %353 = vector.broadcast %cst_96 : f32 to vector<8x8xf32>
    %354 = arith.select %351, %352, %353 : vector<8x8xi1>, vector<8x8xf32>
    %355 = tpu.transpose %354, [1, 0] : vector<8x8xf32> -> vector<8x8xf32>
    %c0_97 = arith.constant 0 : index
    %c0_98 = arith.constant 0 : index
    %356 = vector.load %arg15[%c0_97, %c0_98] : memref<8x8xf32, #tpu.memory_space<vmem>>, vector<8x8xf32>
    %357 = arith.addf %356, %355 : vector<8x8xf32>
    %cst_99 = arith.constant dense<0xFF800000> : vector<8xf32>
    %358 = vector.multi_reduction <maximumf>, %357, %cst_99 [0] : vector<8x8xf32> to vector<8xf32>
    %359 = vector.shape_cast %358 : vector<8xf32> to vector<1x8xf32>
    %360 = vector.broadcast %359 : vector<1x8xf32> to vector<8x8xf32>
    %361 = arith.subf %357, %360 : vector<8x8xf32>
    %362 = math.exp %361 : vector<8x8xf32>
    %cst_100 = arith.constant dense<0.000000e+00> : vector<8xf32>
    %363 = vector.multi_reduction <add>, %362, %cst_100 [0] : vector<8x8xf32> to vector<8xf32>
    %364 = vector.shape_cast %363 : vector<8xf32> to vector<1x8xf32>
    %365 = tpu.reciprocal %364 {approx = true} : vector<1x8xf32> -> vector<1x8xf32>
    %366 = vector.broadcast %365 : vector<1x8xf32> to vector<8x8xf32>
    %367 = arith.mulf %362, %366 : vector<8x8xf32>
    %c0_101 = arith.constant 0 : index
    %c0_102 = arith.constant 0 : index
    %368 = vector.load %arg15[%c0_101, %c0_102] : memref<8x8xf32, #tpu.memory_space<vmem>>, vector<8x8xf32>
    tpu.vector_store %arg15[%c0_101, %c0_102], %367 {strides = array<i32>} : memref<8x8xf32, #tpu.memory_space<vmem>>, vector<8x8xf32>,
    %cst_103 = arith.constant 0.000000e+00 : f32
    %369 = vector.broadcast %cst_103 : f32 to vector<8x128xf32>
    %c0_i32_104 = arith.constant 0 : i32
    %c8_i32_105 = arith.constant 8 : i32
    %370 = arith.muli %c0_i32_104, %c8_i32_105 : i32
    %371 = tpu.assume_multiple %370, 8 : i32
    %372 = arith.index_cast %371 : i32 to index
    %c0_106 = arith.constant 0 : index
    %373 = vector.load %arg15[%372, %c0_106] : memref<8x8xf32, #tpu.memory_space<vmem>>, vector<8x8xf32>
    %374 = arith.index_cast %371 : i32 to index
    %c0_107 = arith.constant 0 : index
    %c0_108 = arith.constant 0 : index
    %375 = vector.load %arg14[%374, %c0_107, %c0_108] : memref<8x8x128xbf16, #tpu.memory_space<vmem>>, vector<8x8x128xbf16>
    %376 = arith.extf %375 : vector<8x8x128xbf16> to vector<8x8x128xf32>
    %377 = vector.shape_cast %373 : vector<8x8xf32> to vector<8x8x1xf32>
    %378 = vector.broadcast %377 : vector<8x8x1xf32> to vector<8x8x128xf32>
    %379 = arith.mulf %378, %376 : vector<8x8x128xf32>
    %cst_109 = arith.constant dense<0.000000e+00> : vector<8x128xf32>
    %380 = vector.multi_reduction <add>, %379, %cst_109 [0] : vector<8x8x128xf32> to vector<8x128xf32>
    %381 = arith.addf %369, %380 : vector<8x128xf32>
    %c1_i32_110 = arith.constant 1 : i32
    %382 = arith.truncf %381 : vector<8x128xf32> to vector<8x128xbf16>
    %c0_111 = arith.constant 0 : index
    %c0_112 = arith.constant 0 : index
    %383 = vector.load %arg10[%c0_111, %c0_112] : memref<128x128xbf16, #tpu.memory_space<vmem>>, vector<128x128xbf16>
    %cst_113 = arith.constant dense<0.000000e+00> : vector<8x128xf32>
    %384 = tpu.matmul %382, %383, %cst_113 {dimension_numbers = #tpu.dot_dimension_numbers<[1], [0], [0], [1], [0, 0, 1, 1], [], []>} : vector<8x128xbf16>, vector<128x128xbf16>, vector<8x128xf32> -> vector<8x128xf32>
    %c0_114 = arith.constant 0 : index
    %c0_115 = arith.constant 0 : index
    %385 = vector.load %arg11[%c0_114, %c0_115] : memref<1x128xf32, #tpu.memory_space<vmem>>, vector<1x128xf32>
    %386 = vector.broadcast %385 : vector<1x128xf32> to vector<8x128xf32>
    %387 = arith.addf %384, %386 : vector<8x128xf32>
    %c0_116 = arith.constant 0 : index
    %c0_117 = arith.constant 0 : index
    %388 = vector.load %arg12[%c0_116, %c0_117] : memref<8x128xf32, #tpu.memory_space<vmem>>, vector<8x128xf32>
    tpu.vector_store %arg12[%c0_116, %c0_117], %387 {strides = array<i32>} : memref<8x128xf32, #tpu.memory_space<vmem>>, vector<8x128xf32>,
    return
  }
  func.func @transform_0(%arg0: i32) -> (i32, i32, i32) {
    %c0_i32 = arith.constant 0 : i32
    %c0_i32_0 = arith.constant 0 : i32
    %c0_i32_1 = arith.constant 0 : i32
    return %c0_i32, %arg0, %c0_i32_0 : i32, i32, i32
  }
  func.func @transform_1(%arg0: i32) -> (i32, i32) {
    %c0_i32 = arith.constant 0 : i32
    %c0_i32_0 = arith.constant 0 : i32
    return %arg0, %c0_i32 : i32, i32
  }
  func.func @transform_2(%arg0: i32) -> (i32, i32) {
    %c0_i32 = arith.constant 0 : i32
    %c0_i32_0 = arith.constant 0 : i32
    %c0_i32_1 = arith.constant 0 : i32
    return %c0_i32, %c0_i32_0 : i32, i32
  }
  func.func @transform_3(%arg0: i32) -> (i32, i32) {
    %c0_i32 = arith.constant 0 : i32
    %c0_i32_0 = arith.constant 0 : i32
    %c0_i32_1 = arith.constant 0 : i32
    return %c0_i32, %c0_i32_0 : i32, i32
  }
  func.func @transform_4(%arg0: i32) -> (i32, i32) {
    %c0_i32 = arith.constant 0 : i32
    %c0_i32_0 = arith.constant 0 : i32
    %c0_i32_1 = arith.constant 0 : i32
    return %c0_i32, %c0_i32_0 : i32, i32
  }
  func.func @transform_5(%arg0: i32) -> (i32, i32) {
    %c0_i32 = arith.constant 0 : i32
    %c0_i32_0 = arith.constant 0 : i32
    %c0_i32_1 = arith.constant 0 : i32
    return %c0_i32, %c0_i32_0 : i32, i32
  }
  func.func @transform_6(%arg0: i32) -> (i32, i32) {
    %c0_i32 = arith.constant 0 : i32
    %c0_i32_0 = arith.constant 0 : i32
    %c0_i32_1 = arith.constant 0 : i32
    return %c0_i32, %c0_i32_0 : i32, i32
  }
  func.func @transform_7(%arg0: i32) -> (i32, i32) {
    %c0_i32 = arith.constant 0 : i32
    %c0_i32_0 = arith.constant 0 : i32
    %c0_i32_1 = arith.constant 0 : i32
    return %c0_i32, %c0_i32_0 : i32, i32
  }
  func.func @transform_8(%arg0: i32) -> (i32, i32) {
    %c0_i32 = arith.constant 0 : i32
    %c0_i32_0 = arith.constant 0 : i32
    %c0_i32_1 = arith.constant 0 : i32
    return %c0_i32, %c0_i32_0 : i32, i32
  }
  func.func @transform_9(%arg0: i32) -> (i32, i32) {
    %c0_i32 = arith.constant 0 : i32
    %c0_i32_0 = arith.constant 0 : i32
    %c0_i32_1 = arith.constant 0 : i32
    return %c0_i32, %c0_i32_0 : i32, i32
  }
  func.func @transform_10(%arg0: i32) -> (i32, i32) {
    %c0_i32 = arith.constant 0 : i32
    %c0_i32_0 = arith.constant 0 : i32
    %c0_i32_1 = arith.constant 0 : i32
    return %c0_i32, %c0_i32_0 : i32, i32
  }
  func.func @transform_11(%arg0: i32) -> (i32, i32) {
    %c0_i32 = arith.constant 0 : i32
    %c0_i32_0 = arith.constant 0 : i32
    return %arg0, %c0_i32 : i32, i32
  }
}

module attributes {stable_mosaic.version = 11 : i64} {
  func.func @_gru_attn_fc_kernel(%arg0: i32, %arg1: memref<8x8x16xbf16, #tpu.memory_space<vmem>>, %arg2: memref<8x1xi32, #tpu.memory_space<vmem>>, %arg3: memref<16x384xbf16, #tpu.memory_space<vmem>>, %arg4: memref<128x384xbf16, #tpu.memory_space<vmem>>, %arg5: memref<1x384xf32, #tpu.memory_space<vmem>>, %arg6: memref<1x384xf32, #tpu.memory_space<vmem>>, %arg7: memref<128x128xbf16, #tpu.memory_space<vmem>>, %arg8: memref<1x128xf32, #tpu.memory_space<vmem>>, %arg9: memref<1x128xf32, #tpu.memory_space<vmem>>, %arg10: memref<128x128xbf16, #tpu.memory_space<vmem>>, %arg11: memref<1x128xf32, #tpu.memory_space<vmem>>, %arg12: memref<8x128xf32, #tpu.memory_space<vmem>>, %arg13: memref<8x8x384xbf16, #tpu.memory_space<vmem>>, %arg14: memref<8x8x128xbf16, #tpu.memory_space<vmem>>, %arg15: memref<8x8xf32, #tpu.memory_space<vmem>>) attributes {dimension_semantics = [#tpu.dimension_semantics<parallel>], iteration_bounds = array<i64: 1>, scalar_prefetch = 0 : i64, scratch_operands = 3 : i64, tpu.core_type = #tpu.core_type<tc>, window_params = [{transform_indices = @transform_0, window_bounds = array<i64: 8, 8, 16>}, {transform_indices = @transform_1, window_bounds = array<i64: 8, 1>}, {pipeline_mode = #tpu.pipeline_mode<synchronous>, transform_indices = @transform_2, window_bounds = array<i64: 16, 384>}, {pipeline_mode = #tpu.pipeline_mode<synchronous>, transform_indices = @transform_3, window_bounds = array<i64: 128, 384>}, {pipeline_mode = #tpu.pipeline_mode<synchronous>, transform_indices = @transform_4, window_bounds = array<i64: 1, 384>}, {pipeline_mode = #tpu.pipeline_mode<synchronous>, transform_indices = @transform_5, window_bounds = array<i64: 1, 384>}, {pipeline_mode = #tpu.pipeline_mode<synchronous>, transform_indices = @transform_6, window_bounds = array<i64: 128, 128>}, {pipeline_mode = #tpu.pipeline_mode<synchronous>, transform_indices = @transform_7, window_bounds = array<i64: 1, 128>}, {pipeline_mode = #tpu.pipeline_mode<synchronous>, transform_indices = @transform_8, window_bounds = array<i64: 1, 128>}, {pipeline_mode = #tpu.pipeline_mode<synchronous>, transform_indices = @transform_9, window_bounds = array<i64: 128, 128>}, {pipeline_mode = #tpu.pipeline_mode<synchronous>, transform_indices = @transform_10, window_bounds = array<i64: 1, 128>}, {transform_indices = @transform_11, window_bounds = array<i64: 8, 128>}]} {
    %c0 = arith.constant 0 : index
    %c0_0 = arith.constant 0 : index
    %0 = vector.load %arg3[%c0, %c0_0] : memref<16x384xbf16, #tpu.memory_space<vmem>>, vector<16x384xbf16>
    %c0_1 = arith.constant 0 : index
    %c0_2 = arith.constant 0 : index
    %1 = vector.load %arg5[%c0_1, %c0_2] : memref<1x384xf32, #tpu.memory_space<vmem>>, vector<1x384xf32>
    %c0_3 = arith.constant 0 : index
    %c0_4 = arith.constant 0 : index
    %2 = vector.load %arg4[%c0_3, %c0_4] : memref<128x384xbf16, #tpu.memory_space<vmem>>, vector<128x384xbf16>
    %c0_5 = arith.constant 0 : index
    %c0_6 = arith.constant 0 : index
    %3 = vector.load %arg6[%c0_5, %c0_6] : memref<1x384xf32, #tpu.memory_space<vmem>>, vector<1x384xf32>
    %c0_7 = arith.constant 0 : index
    %c0_8 = arith.constant 0 : index
    %4 = vector.load %arg7[%c0_7, %c0_8] : memref<128x128xbf16, #tpu.memory_space<vmem>>, vector<128x128xbf16>
    %c0_9 = arith.constant 0 : index
    %c0_10 = arith.constant 0 : index
    %5 = vector.load %arg8[%c0_9, %c0_10] : memref<1x128xf32, #tpu.memory_space<vmem>>, vector<1x128xf32>
    %c0_11 = arith.constant 0 : index
    %c0_12 = arith.constant 0 : index
    %6 = vector.load %arg9[%c0_11, %c0_12] : memref<1x128xf32, #tpu.memory_space<vmem>>, vector<1x128xf32>
    %c0_i32 = arith.constant 0 : i32
    %c8_i32 = arith.constant 8 : i32
    %7 = arith.muli %c0_i32, %c8_i32 : i32
    %8 = tpu.assume_multiple %7, 8 : i32
    %9 = arith.index_cast %8 : i32 to index
    %c0_13 = arith.constant 0 : index
    %c0_14 = arith.constant 0 : index
    %10 = vector.load %arg1[%9, %c0_13, %c0_14] : memref<8x8x16xbf16, #tpu.memory_space<vmem>>, vector<8x8x16xbf16>
    %11 = vector.shape_cast %10 : vector<8x8x16xbf16> to vector<64x16xbf16>
    %cst = arith.constant dense<0.000000e+00> : vector<64x384xf32>
    %12 = tpu.matmul %11, %0, %cst {dimension_numbers = #tpu.dot_dimension_numbers<[1], [0], [0], [1], [0, 0, 1, 1], [], []>} : vector<64x16xbf16>, vector<16x384xbf16>, vector<64x384xf32> -> vector<64x384xf32>
    %13 = vector.broadcast %1 : vector<1x384xf32> to vector<64x384xf32>
    %14 = arith.addf %12, %13 : vector<64x384xf32>
    %15 = vector.shape_cast %14 : vector<64x384xf32> to vector<8x8x384xf32>
    %16 = arith.truncf %15 : vector<8x8x384xf32> to vector<8x8x384xbf16>
    %17 = arith.index_cast %8 : i32 to index
    %c0_15 = arith.constant 0 : index
    %c0_16 = arith.constant 0 : index
    %18 = vector.load %arg13[%17, %c0_15, %c0_16] : memref<8x8x384xbf16, #tpu.memory_space<vmem>>, vector<8x8x384xbf16>
    tpu.vector_store %arg13[%17, %c0_15, %c0_16], %16 {strides = array<i32>} : memref<8x8x384xbf16, #tpu.memory_space<vmem>>, vector<8x8x384xbf16>,
    %c1_i32 = arith.constant 1 : i32
    %cst_17 = arith.constant 0.000000e+00 : f32
    %19 = vector.broadcast %cst_17 : f32 to vector<8x128xf32>
    %c0_i32_18 = arith.constant 0 : i32
    %20 = arith.index_cast %c0_i32_18 : i32 to index
    %c0_19 = arith.constant 0 : index
    %c0_20 = arith.constant 0 : index
    %21 = vector.load %arg13[%20, %c0_19, %c0_20] : memref<8x8x384xbf16, #tpu.memory_space<vmem>>, vector<1x8x384xbf16>
    %22 = vector.shape_cast %21 : vector<1x8x384xbf16> to vector<8x384xbf16>
    %23 = arith.extf %22 : vector<8x384xbf16> to vector<8x384xf32>
    %24 = arith.truncf %19 : vector<8x128xf32> to vector<8x128xbf16>
    %cst_21 = arith.constant dense<0.000000e+00> : vector<8x384xf32>
    %25 = tpu.matmul %24, %2, %cst_21 {dimension_numbers = #tpu.dot_dimension_numbers<[1], [0], [0], [1], [0, 0, 1, 1], [], []>} : vector<8x128xbf16>, vector<128x384xbf16>, vector<8x384xf32> -> vector<8x384xf32>
    %26 = vector.broadcast %3 : vector<1x384xf32> to vector<8x384xf32>
    %27 = arith.addf %25, %26 : vector<8x384xf32>
    %28 = vector.extract_strided_slice %23 {offsets = [0, 0], sizes = [8, 128], strides = [1, 1]} : vector<8x384xf32> to vector<8x128xf32>
    %29 = vector.extract_strided_slice %27 {offsets = [0, 0], sizes = [8, 128], strides = [1, 1]} : vector<8x384xf32> to vector<8x128xf32>
    %30 = arith.addf %28, %29 : vector<8x128xf32>
    %31 = arith.negf %30 : vector<8x128xf32>
    %32 = math.exp %31 : vector<8x128xf32>
    %cst_22 = arith.constant 1.000000e+00 : f32
    %33 = vector.broadcast %cst_22 : f32 to vector<8x128xf32>
    %34 = arith.addf %33, %32 : vector<8x128xf32>
    %35 = arith.divf %33, %34 : vector<8x128xf32>
    %36 = vector.extract_strided_slice %23 {offsets = [0, 128], sizes = [8, 128], strides = [1, 1]} : vector<8x384xf32> to vector<8x128xf32>
    %37 = vector.extract_strided_slice %27 {offsets = [0, 128], sizes = [8, 128], strides = [1, 1]} : vector<8x384xf32> to vector<8x128xf32>
    %38 = arith.addf %36, %37 : vector<8x128xf32>
    %39 = arith.negf %38 : vector<8x128xf32>
    %40 = math.exp %39 : vector<8x128xf32>
    %cst_23 = arith.constant 1.000000e+00 : f32
    %41 = vector.broadcast %cst_23 : f32 to vector<8x128xf32>
    %42 = arith.addf %41, %40 : vector<8x128xf32>
    %43 = arith.divf %41, %42 : vector<8x128xf32>
    %44 = vector.extract_strided_slice %23 {offsets = [0, 256], sizes = [8, 128], strides = [1, 1]} : vector<8x384xf32> to vector<8x128xf32>
    %45 = vector.extract_strided_slice %27 {offsets = [0, 256], sizes = [8, 128], strides = [1, 1]} : vector<8x384xf32> to vector<8x128xf32>
    %46 = arith.mulf %35, %45 : vector<8x128xf32>
    %47 = arith.addf %44, %46 : vector<8x128xf32>
    %48 = math.tanh %47 : vector<8x128xf32>
    %cst_24 = arith.constant 1.000000e+00 : f32
    %49 = vector.broadcast %cst_24 : f32 to vector<8x128xf32>
    %50 = arith.subf %49, %43 : vector<8x128xf32>
    %51 = arith.mulf %50, %48 : vector<8x128xf32>
    %52 = arith.mulf %43, %19 : vector<8x128xf32>
    %53 = arith.addf %51, %52 : vector<8x128xf32>
    %54 = arith.truncf %53 : vector<8x128xf32> to vector<8x128xbf16>
    %55 = arith.index_cast %c0_i32_18 : i32 to index
    %c0_25 = arith.constant 0 : index
    %c0_26 = arith.constant 0 : index
    %56 = vector.load %arg14[%55, %c0_25, %c0_26] : memref<8x8x128xbf16, #tpu.memory_space<vmem>>, vector<1x8x128xbf16>
    %57 = vector.shape_cast %56 : vector<1x8x128xbf16> to vector<8x128xbf16>
    %58 = vector.shape_cast %54 : vector<8x128xbf16> to vector<1x8x128xbf16>
    tpu.vector_store %arg14[%55, %c0_25, %c0_26], %58 {strides = array<i32>} : memref<8x8x128xbf16, #tpu.memory_space<vmem>>, vector<1x8x128xbf16>,
    %c1_i32_27 = arith.constant 1 : i32
    %59 = arith.index_cast %c1_i32_27 : i32 to index
    %c0_28 = arith.constant 0 : index
    %c0_29 = arith.constant 0 : index
    %60 = vector.load %arg13[%59, %c0_28, %c0_29] : memref<8x8x384xbf16, #tpu.memory_space<vmem>>, vector<1x8x384xbf16>
    %61 = vector.shape_cast %60 : vector<1x8x384xbf16> to vector<8x384xbf16>
    %62 = arith.extf %61 : vector<8x384xbf16> to vector<8x384xf32>
    %63 = arith.truncf %53 : vector<8x128xf32> to vector<8x128xbf16>
    %cst_30 = arith.constant dense<0.000000e+00> : vector<8x384xf32>
    %64 = tpu.matmul %63, %2, %cst_30 {dimension_numbers = #tpu.dot_dimension_numbers<[1], [0], [0], [1], [0, 0, 1, 1], [], []>} : vector<8x128xbf16>, vector<128x384xbf16>, vector<8x384xf32> -> vector<8x384xf32>
    %65 = vector.broadcast %3 : vector<1x384xf32> to vector<8x384xf32>
    %66 = arith.addf %64, %65 : vector<8x384xf32>
    %67 = vector.extract_strided_slice %62 {offsets = [0, 0], sizes = [8, 128], strides = [1, 1]} : vector<8x384xf32> to vector<8x128xf32>
    %68 = vector.extract_strided_slice %66 {offsets = [0, 0], sizes = [8, 128], strides = [1, 1]} : vector<8x384xf32> to vector<8x128xf32>
    %69 = arith.addf %67, %68 : vector<8x128xf32>
    %70 = arith.negf %69 : vector<8x128xf32>
    %71 = math.exp %70 : vector<8x128xf32>
    %cst_31 = arith.constant 1.000000e+00 : f32
    %72 = vector.broadcast %cst_31 : f32 to vector<8x128xf32>
    %73 = arith.addf %72, %71 : vector<8x128xf32>
    %74 = arith.divf %72, %73 : vector<8x128xf32>
    %75 = vector.extract_strided_slice %62 {offsets = [0, 128], sizes = [8, 128], strides = [1, 1]} : vector<8x384xf32> to vector<8x128xf32>
    %76 = vector.extract_strided_slice %66 {offsets = [0, 128], sizes = [8, 128], strides = [1, 1]} : vector<8x384xf32> to vector<8x128xf32>
    %77 = arith.addf %75, %76 : vector<8x128xf32>
    %78 = arith.negf %77 : vector<8x128xf32>
    %79 = math.exp %78 : vector<8x128xf32>
    %cst_32 = arith.constant 1.000000e+00 : f32
    %80 = vector.broadcast %cst_32 : f32 to vector<8x128xf32>
    %81 = arith.addf %80, %79 : vector<8x128xf32>
    %82 = arith.divf %80, %81 : vector<8x128xf32>
    %83 = vector.extract_strided_slice %62 {offsets = [0, 256], sizes = [8, 128], strides = [1, 1]} : vector<8x384xf32> to vector<8x128xf32>
    %84 = vector.extract_strided_slice %66 {offsets = [0, 256], sizes = [8, 128], strides = [1, 1]} : vector<8x384xf32> to vector<8x128xf32>
    %85 = arith.mulf %74, %84 : vector<8x128xf32>
    %86 = arith.addf %83, %85 : vector<8x128xf32>
    %87 = math.tanh %86 : vector<8x128xf32>
    %cst_33 = arith.constant 1.000000e+00 : f32
    %88 = vector.broadcast %cst_33 : f32 to vector<8x128xf32>
    %89 = arith.subf %88, %82 : vector<8x128xf32>
    %90 = arith.mulf %89, %87 : vector<8x128xf32>
    %91 = arith.mulf %82, %53 : vector<8x128xf32>
    %92 = arith.addf %90, %91 : vector<8x128xf32>
    %93 = arith.truncf %92 : vector<8x128xf32> to vector<8x128xbf16>
    %94 = arith.index_cast %c1_i32_27 : i32 to index
    %c0_34 = arith.constant 0 : index
    %c0_35 = arith.constant 0 : index
    %95 = vector.load %arg14[%94, %c0_34, %c0_35] : memref<8x8x128xbf16, #tpu.memory_space<vmem>>, vector<1x8x128xbf16>
    %96 = vector.shape_cast %95 : vector<1x8x128xbf16> to vector<8x128xbf16>
    %97 = vector.shape_cast %93 : vector<8x128xbf16> to vector<1x8x128xbf16>
    tpu.vector_store %arg14[%94, %c0_34, %c0_35], %97 {strides = array<i32>} : memref<8x8x128xbf16, #tpu.memory_space<vmem>>, vector<1x8x128xbf16>,
    %c2_i32 = arith.constant 2 : i32
    %98 = arith.index_cast %c2_i32 : i32 to index
    %c0_36 = arith.constant 0 : index
    %c0_37 = arith.constant 0 : index
    %99 = vector.load %arg13[%98, %c0_36, %c0_37] : memref<8x8x384xbf16, #tpu.memory_space<vmem>>, vector<1x8x384xbf16>
    %100 = vector.shape_cast %99 : vector<1x8x384xbf16> to vector<8x384xbf16>
    %101 = arith.extf %100 : vector<8x384xbf16> to vector<8x384xf32>
    %102 = arith.truncf %92 : vector<8x128xf32> to vector<8x128xbf16>
    %cst_38 = arith.constant dense<0.000000e+00> : vector<8x384xf32>
    %103 = tpu.matmul %102, %2, %cst_38 {dimension_numbers = #tpu.dot_dimension_numbers<[1], [0], [0], [1], [0, 0, 1, 1], [], []>} : vector<8x128xbf16>, vector<128x384xbf16>, vector<8x384xf32> -> vector<8x384xf32>
    %104 = vector.broadcast %3 : vector<1x384xf32> to vector<8x384xf32>
    %105 = arith.addf %103, %104 : vector<8x384xf32>
    %106 = vector.extract_strided_slice %101 {offsets = [0, 0], sizes = [8, 128], strides = [1, 1]} : vector<8x384xf32> to vector<8x128xf32>
    %107 = vector.extract_strided_slice %105 {offsets = [0, 0], sizes = [8, 128], strides = [1, 1]} : vector<8x384xf32> to vector<8x128xf32>
    %108 = arith.addf %106, %107 : vector<8x128xf32>
    %109 = arith.negf %108 : vector<8x128xf32>
    %110 = math.exp %109 : vector<8x128xf32>
    %cst_39 = arith.constant 1.000000e+00 : f32
    %111 = vector.broadcast %cst_39 : f32 to vector<8x128xf32>
    %112 = arith.addf %111, %110 : vector<8x128xf32>
    %113 = arith.divf %111, %112 : vector<8x128xf32>
    %114 = vector.extract_strided_slice %101 {offsets = [0, 128], sizes = [8, 128], strides = [1, 1]} : vector<8x384xf32> to vector<8x128xf32>
    %115 = vector.extract_strided_slice %105 {offsets = [0, 128], sizes = [8, 128], strides = [1, 1]} : vector<8x384xf32> to vector<8x128xf32>
    %116 = arith.addf %114, %115 : vector<8x128xf32>
    %117 = arith.negf %116 : vector<8x128xf32>
    %118 = math.exp %117 : vector<8x128xf32>
    %cst_40 = arith.constant 1.000000e+00 : f32
    %119 = vector.broadcast %cst_40 : f32 to vector<8x128xf32>
    %120 = arith.addf %119, %118 : vector<8x128xf32>
    %121 = arith.divf %119, %120 : vector<8x128xf32>
    %122 = vector.extract_strided_slice %101 {offsets = [0, 256], sizes = [8, 128], strides = [1, 1]} : vector<8x384xf32> to vector<8x128xf32>
    %123 = vector.extract_strided_slice %105 {offsets = [0, 256], sizes = [8, 128], strides = [1, 1]} : vector<8x384xf32> to vector<8x128xf32>
    %124 = arith.mulf %113, %123 : vector<8x128xf32>
    %125 = arith.addf %122, %124 : vector<8x128xf32>
    %126 = math.tanh %125 : vector<8x128xf32>
    %cst_41 = arith.constant 1.000000e+00 : f32
    %127 = vector.broadcast %cst_41 : f32 to vector<8x128xf32>
    %128 = arith.subf %127, %121 : vector<8x128xf32>
    %129 = arith.mulf %128, %126 : vector<8x128xf32>
    %130 = arith.mulf %121, %92 : vector<8x128xf32>
    %131 = arith.addf %129, %130 : vector<8x128xf32>
    %132 = arith.truncf %131 : vector<8x128xf32> to vector<8x128xbf16>
    %133 = arith.index_cast %c2_i32 : i32 to index
    %c0_42 = arith.constant 0 : index
    %c0_43 = arith.constant 0 : index
    %134 = vector.load %arg14[%133, %c0_42, %c0_43] : memref<8x8x128xbf16, #tpu.memory_space<vmem>>, vector<1x8x128xbf16>
    %135 = vector.shape_cast %134 : vector<1x8x128xbf16> to vector<8x128xbf16>
    %136 = vector.shape_cast %132 : vector<8x128xbf16> to vector<1x8x128xbf16>
    tpu.vector_store %arg14[%133, %c0_42, %c0_43], %136 {strides = array<i32>} : memref<8x8x128xbf16, #tpu.memory_space<vmem>>, vector<1x8x128xbf16>,
    %c3_i32 = arith.constant 3 : i32
    %137 = arith.index_cast %c3_i32 : i32 to index
    %c0_44 = arith.constant 0 : index
    %c0_45 = arith.constant 0 : index
    %138 = vector.load %arg13[%137, %c0_44, %c0_45] : memref<8x8x384xbf16, #tpu.memory_space<vmem>>, vector<1x8x384xbf16>
    %139 = vector.shape_cast %138 : vector<1x8x384xbf16> to vector<8x384xbf16>
    %140 = arith.extf %139 : vector<8x384xbf16> to vector<8x384xf32>
    %141 = arith.truncf %131 : vector<8x128xf32> to vector<8x128xbf16>
    %cst_46 = arith.constant dense<0.000000e+00> : vector<8x384xf32>
    %142 = tpu.matmul %141, %2, %cst_46 {dimension_numbers = #tpu.dot_dimension_numbers<[1], [0], [0], [1], [0, 0, 1, 1], [], []>} : vector<8x128xbf16>, vector<128x384xbf16>, vector<8x384xf32> -> vector<8x384xf32>
    %143 = vector.broadcast %3 : vector<1x384xf32> to vector<8x384xf32>
    %144 = arith.addf %142, %143 : vector<8x384xf32>
    %145 = vector.extract_strided_slice %140 {offsets = [0, 0], sizes = [8, 128], strides = [1, 1]} : vector<8x384xf32> to vector<8x128xf32>
    %146 = vector.extract_strided_slice %144 {offsets = [0, 0], sizes = [8, 128], strides = [1, 1]} : vector<8x384xf32> to vector<8x128xf32>
    %147 = arith.addf %145, %146 : vector<8x128xf32>
    %148 = arith.negf %147 : vector<8x128xf32>
    %149 = math.exp %148 : vector<8x128xf32>
    %cst_47 = arith.constant 1.000000e+00 : f32
    %150 = vector.broadcast %cst_47 : f32 to vector<8x128xf32>
    %151 = arith.addf %150, %149 : vector<8x128xf32>
    %152 = arith.divf %150, %151 : vector<8x128xf32>
    %153 = vector.extract_strided_slice %140 {offsets = [0, 128], sizes = [8, 128], strides = [1, 1]} : vector<8x384xf32> to vector<8x128xf32>
    %154 = vector.extract_strided_slice %144 {offsets = [0, 128], sizes = [8, 128], strides = [1, 1]} : vector<8x384xf32> to vector<8x128xf32>
    %155 = arith.addf %153, %154 : vector<8x128xf32>
    %156 = arith.negf %155 : vector<8x128xf32>
    %157 = math.exp %156 : vector<8x128xf32>
    %cst_48 = arith.constant 1.000000e+00 : f32
    %158 = vector.broadcast %cst_48 : f32 to vector<8x128xf32>
    %159 = arith.addf %158, %157 : vector<8x128xf32>
    %160 = arith.divf %158, %159 : vector<8x128xf32>
    %161 = vector.extract_strided_slice %140 {offsets = [0, 256], sizes = [8, 128], strides = [1, 1]} : vector<8x384xf32> to vector<8x128xf32>
    %162 = vector.extract_strided_slice %144 {offsets = [0, 256], sizes = [8, 128], strides = [1, 1]} : vector<8x384xf32> to vector<8x128xf32>
    %163 = arith.mulf %152, %162 : vector<8x128xf32>
    %164 = arith.addf %161, %163 : vector<8x128xf32>
    %165 = math.tanh %164 : vector<8x128xf32>
    %cst_49 = arith.constant 1.000000e+00 : f32
    %166 = vector.broadcast %cst_49 : f32 to vector<8x128xf32>
    %167 = arith.subf %166, %160 : vector<8x128xf32>
    %168 = arith.mulf %167, %165 : vector<8x128xf32>
    %169 = arith.mulf %160, %131 : vector<8x128xf32>
    %170 = arith.addf %168, %169 : vector<8x128xf32>
    %171 = arith.truncf %170 : vector<8x128xf32> to vector<8x128xbf16>
    %172 = arith.index_cast %c3_i32 : i32 to index
    %c0_50 = arith.constant 0 : index
    %c0_51 = arith.constant 0 : index
    %173 = vector.load %arg14[%172, %c0_50, %c0_51] : memref<8x8x128xbf16, #tpu.memory_space<vmem>>, vector<1x8x128xbf16>
    %174 = vector.shape_cast %173 : vector<1x8x128xbf16> to vector<8x128xbf16>
    %175 = vector.shape_cast %171 : vector<8x128xbf16> to vector<1x8x128xbf16>
    tpu.vector_store %arg14[%172, %c0_50, %c0_51], %175 {strides = array<i32>} : memref<8x8x128xbf16, #tpu.memory_space<vmem>>, vector<1x8x128xbf16>,
    %c4_i32 = arith.constant 4 : i32
    %176 = arith.index_cast %c4_i32 : i32 to index
    %c0_52 = arith.constant 0 : index
    %c0_53 = arith.constant 0 : index
    %177 = vector.load %arg13[%176, %c0_52, %c0_53] : memref<8x8x384xbf16, #tpu.memory_space<vmem>>, vector<1x8x384xbf16>
    %178 = vector.shape_cast %177 : vector<1x8x384xbf16> to vector<8x384xbf16>
    %179 = arith.extf %178 : vector<8x384xbf16> to vector<8x384xf32>
    %180 = arith.truncf %170 : vector<8x128xf32> to vector<8x128xbf16>
    %cst_54 = arith.constant dense<0.000000e+00> : vector<8x384xf32>
    %181 = tpu.matmul %180, %2, %cst_54 {dimension_numbers = #tpu.dot_dimension_numbers<[1], [0], [0], [1], [0, 0, 1, 1], [], []>} : vector<8x128xbf16>, vector<128x384xbf16>, vector<8x384xf32> -> vector<8x384xf32>
    %182 = vector.broadcast %3 : vector<1x384xf32> to vector<8x384xf32>
    %183 = arith.addf %181, %182 : vector<8x384xf32>
    %184 = vector.extract_strided_slice %179 {offsets = [0, 0], sizes = [8, 128], strides = [1, 1]} : vector<8x384xf32> to vector<8x128xf32>
    %185 = vector.extract_strided_slice %183 {offsets = [0, 0], sizes = [8, 128], strides = [1, 1]} : vector<8x384xf32> to vector<8x128xf32>
    %186 = arith.addf %184, %185 : vector<8x128xf32>
    %187 = arith.negf %186 : vector<8x128xf32>
    %188 = math.exp %187 : vector<8x128xf32>
    %cst_55 = arith.constant 1.000000e+00 : f32
    %189 = vector.broadcast %cst_55 : f32 to vector<8x128xf32>
    %190 = arith.addf %189, %188 : vector<8x128xf32>
    %191 = arith.divf %189, %190 : vector<8x128xf32>
    %192 = vector.extract_strided_slice %179 {offsets = [0, 128], sizes = [8, 128], strides = [1, 1]} : vector<8x384xf32> to vector<8x128xf32>
    %193 = vector.extract_strided_slice %183 {offsets = [0, 128], sizes = [8, 128], strides = [1, 1]} : vector<8x384xf32> to vector<8x128xf32>
    %194 = arith.addf %192, %193 : vector<8x128xf32>
    %195 = arith.negf %194 : vector<8x128xf32>
    %196 = math.exp %195 : vector<8x128xf32>
    %cst_56 = arith.constant 1.000000e+00 : f32
    %197 = vector.broadcast %cst_56 : f32 to vector<8x128xf32>
    %198 = arith.addf %197, %196 : vector<8x128xf32>
    %199 = arith.divf %197, %198 : vector<8x128xf32>
    %200 = vector.extract_strided_slice %179 {offsets = [0, 256], sizes = [8, 128], strides = [1, 1]} : vector<8x384xf32> to vector<8x128xf32>
    %201 = vector.extract_strided_slice %183 {offsets = [0, 256], sizes = [8, 128], strides = [1, 1]} : vector<8x384xf32> to vector<8x128xf32>
    %202 = arith.mulf %191, %201 : vector<8x128xf32>
    %203 = arith.addf %200, %202 : vector<8x128xf32>
    %204 = math.tanh %203 : vector<8x128xf32>
    %cst_57 = arith.constant 1.000000e+00 : f32
    %205 = vector.broadcast %cst_57 : f32 to vector<8x128xf32>
    %206 = arith.subf %205, %199 : vector<8x128xf32>
    %207 = arith.mulf %206, %204 : vector<8x128xf32>
    %208 = arith.mulf %199, %170 : vector<8x128xf32>
    %209 = arith.addf %207, %208 : vector<8x128xf32>
    %210 = arith.truncf %209 : vector<8x128xf32> to vector<8x128xbf16>
    %211 = arith.index_cast %c4_i32 : i32 to index
    %c0_58 = arith.constant 0 : index
    %c0_59 = arith.constant 0 : index
    %212 = vector.load %arg14[%211, %c0_58, %c0_59] : memref<8x8x128xbf16, #tpu.memory_space<vmem>>, vector<1x8x128xbf16>
    %213 = vector.shape_cast %212 : vector<1x8x128xbf16> to vector<8x128xbf16>
    %214 = vector.shape_cast %210 : vector<8x128xbf16> to vector<1x8x128xbf16>
    tpu.vector_store %arg14[%211, %c0_58, %c0_59], %214 {strides = array<i32>} : memref<8x8x128xbf16, #tpu.memory_space<vmem>>, vector<1x8x128xbf16>,
    %c5_i32 = arith.constant 5 : i32
    %215 = arith.index_cast %c5_i32 : i32 to index
    %c0_60 = arith.constant 0 : index
    %c0_61 = arith.constant 0 : index
    %216 = vector.load %arg13[%215, %c0_60, %c0_61] : memref<8x8x384xbf16, #tpu.memory_space<vmem>>, vector<1x8x384xbf16>
    %217 = vector.shape_cast %216 : vector<1x8x384xbf16> to vector<8x384xbf16>
    %218 = arith.extf %217 : vector<8x384xbf16> to vector<8x384xf32>
    %219 = arith.truncf %209 : vector<8x128xf32> to vector<8x128xbf16>
    %cst_62 = arith.constant dense<0.000000e+00> : vector<8x384xf32>
    %220 = tpu.matmul %219, %2, %cst_62 {dimension_numbers = #tpu.dot_dimension_numbers<[1], [0], [0], [1], [0, 0, 1, 1], [], []>} : vector<8x128xbf16>, vector<128x384xbf16>, vector<8x384xf32> -> vector<8x384xf32>
    %221 = vector.broadcast %3 : vector<1x384xf32> to vector<8x384xf32>
    %222 = arith.addf %220, %221 : vector<8x384xf32>
    %223 = vector.extract_strided_slice %218 {offsets = [0, 0], sizes = [8, 128], strides = [1, 1]} : vector<8x384xf32> to vector<8x128xf32>
    %224 = vector.extract_strided_slice %222 {offsets = [0, 0], sizes = [8, 128], strides = [1, 1]} : vector<8x384xf32> to vector<8x128xf32>
    %225 = arith.addf %223, %224 : vector<8x128xf32>
    %226 = arith.negf %225 : vector<8x128xf32>
    %227 = math.exp %226 : vector<8x128xf32>
    %cst_63 = arith.constant 1.000000e+00 : f32
    %228 = vector.broadcast %cst_63 : f32 to vector<8x128xf32>
    %229 = arith.addf %228, %227 : vector<8x128xf32>
    %230 = arith.divf %228, %229 : vector<8x128xf32>
    %231 = vector.extract_strided_slice %218 {offsets = [0, 128], sizes = [8, 128], strides = [1, 1]} : vector<8x384xf32> to vector<8x128xf32>
    %232 = vector.extract_strided_slice %222 {offsets = [0, 128], sizes = [8, 128], strides = [1, 1]} : vector<8x384xf32> to vector<8x128xf32>
    %233 = arith.addf %231, %232 : vector<8x128xf32>
    %234 = arith.negf %233 : vector<8x128xf32>
    %235 = math.exp %234 : vector<8x128xf32>
    %cst_64 = arith.constant 1.000000e+00 : f32
    %236 = vector.broadcast %cst_64 : f32 to vector<8x128xf32>
    %237 = arith.addf %236, %235 : vector<8x128xf32>
    %238 = arith.divf %236, %237 : vector<8x128xf32>
    %239 = vector.extract_strided_slice %218 {offsets = [0, 256], sizes = [8, 128], strides = [1, 1]} : vector<8x384xf32> to vector<8x128xf32>
    %240 = vector.extract_strided_slice %222 {offsets = [0, 256], sizes = [8, 128], strides = [1, 1]} : vector<8x384xf32> to vector<8x128xf32>
    %241 = arith.mulf %230, %240 : vector<8x128xf32>
    %242 = arith.addf %239, %241 : vector<8x128xf32>
    %243 = math.tanh %242 : vector<8x128xf32>
    %cst_65 = arith.constant 1.000000e+00 : f32
    %244 = vector.broadcast %cst_65 : f32 to vector<8x128xf32>
    %245 = arith.subf %244, %238 : vector<8x128xf32>
    %246 = arith.mulf %245, %243 : vector<8x128xf32>
    %247 = arith.mulf %238, %209 : vector<8x128xf32>
    %248 = arith.addf %246, %247 : vector<8x128xf32>
    %249 = arith.truncf %248 : vector<8x128xf32> to vector<8x128xbf16>
    %250 = arith.index_cast %c5_i32 : i32 to index
    %c0_66 = arith.constant 0 : index
    %c0_67 = arith.constant 0 : index
    %251 = vector.load %arg14[%250, %c0_66, %c0_67] : memref<8x8x128xbf16, #tpu.memory_space<vmem>>, vector<1x8x128xbf16>
    %252 = vector.shape_cast %251 : vector<1x8x128xbf16> to vector<8x128xbf16>
    %253 = vector.shape_cast %249 : vector<8x128xbf16> to vector<1x8x128xbf16>
    tpu.vector_store %arg14[%250, %c0_66, %c0_67], %253 {strides = array<i32>} : memref<8x8x128xbf16, #tpu.memory_space<vmem>>, vector<1x8x128xbf16>,
    %c6_i32 = arith.constant 6 : i32
    %254 = arith.index_cast %c6_i32 : i32 to index
    %c0_68 = arith.constant 0 : index
    %c0_69 = arith.constant 0 : index
    %255 = vector.load %arg13[%254, %c0_68, %c0_69] : memref<8x8x384xbf16, #tpu.memory_space<vmem>>, vector<1x8x384xbf16>
    %256 = vector.shape_cast %255 : vector<1x8x384xbf16> to vector<8x384xbf16>
    %257 = arith.extf %256 : vector<8x384xbf16> to vector<8x384xf32>
    %258 = arith.truncf %248 : vector<8x128xf32> to vector<8x128xbf16>
    %cst_70 = arith.constant dense<0.000000e+00> : vector<8x384xf32>
    %259 = tpu.matmul %258, %2, %cst_70 {dimension_numbers = #tpu.dot_dimension_numbers<[1], [0], [0], [1], [0, 0, 1, 1], [], []>} : vector<8x128xbf16>, vector<128x384xbf16>, vector<8x384xf32> -> vector<8x384xf32>
    %260 = vector.broadcast %3 : vector<1x384xf32> to vector<8x384xf32>
    %261 = arith.addf %259, %260 : vector<8x384xf32>
    %262 = vector.extract_strided_slice %257 {offsets = [0, 0], sizes = [8, 128], strides = [1, 1]} : vector<8x384xf32> to vector<8x128xf32>
    %263 = vector.extract_strided_slice %261 {offsets = [0, 0], sizes = [8, 128], strides = [1, 1]} : vector<8x384xf32> to vector<8x128xf32>
    %264 = arith.addf %262, %263 : vector<8x128xf32>
    %265 = arith.negf %264 : vector<8x128xf32>
    %266 = math.exp %265 : vector<8x128xf32>
    %cst_71 = arith.constant 1.000000e+00 : f32
    %267 = vector.broadcast %cst_71 : f32 to vector<8x128xf32>
    %268 = arith.addf %267, %266 : vector<8x128xf32>
    %269 = arith.divf %267, %268 : vector<8x128xf32>
    %270 = vector.extract_strided_slice %257 {offsets = [0, 128], sizes = [8, 128], strides = [1, 1]} : vector<8x384xf32> to vector<8x128xf32>
    %271 = vector.extract_strided_slice %261 {offsets = [0, 128], sizes = [8, 128], strides = [1, 1]} : vector<8x384xf32> to vector<8x128xf32>
    %272 = arith.addf %270, %271 : vector<8x128xf32>
    %273 = arith.negf %272 : vector<8x128xf32>
    %274 = math.exp %273 : vector<8x128xf32>
    %cst_72 = arith.constant 1.000000e+00 : f32
    %275 = vector.broadcast %cst_72 : f32 to vector<8x128xf32>
    %276 = arith.addf %275, %274 : vector<8x128xf32>
    %277 = arith.divf %275, %276 : vector<8x128xf32>
    %278 = vector.extract_strided_slice %257 {offsets = [0, 256], sizes = [8, 128], strides = [1, 1]} : vector<8x384xf32> to vector<8x128xf32>
    %279 = vector.extract_strided_slice %261 {offsets = [0, 256], sizes = [8, 128], strides = [1, 1]} : vector<8x384xf32> to vector<8x128xf32>
    %280 = arith.mulf %269, %279 : vector<8x128xf32>
    %281 = arith.addf %278, %280 : vector<8x128xf32>
    %282 = math.tanh %281 : vector<8x128xf32>
    %cst_73 = arith.constant 1.000000e+00 : f32
    %283 = vector.broadcast %cst_73 : f32 to vector<8x128xf32>
    %284 = arith.subf %283, %277 : vector<8x128xf32>
    %285 = arith.mulf %284, %282 : vector<8x128xf32>
    %286 = arith.mulf %277, %248 : vector<8x128xf32>
    %287 = arith.addf %285, %286 : vector<8x128xf32>
    %288 = arith.truncf %287 : vector<8x128xf32> to vector<8x128xbf16>
    %289 = arith.index_cast %c6_i32 : i32 to index
    %c0_74 = arith.constant 0 : index
    %c0_75 = arith.constant 0 : index
    %290 = vector.load %arg14[%289, %c0_74, %c0_75] : memref<8x8x128xbf16, #tpu.memory_space<vmem>>, vector<1x8x128xbf16>
    %291 = vector.shape_cast %290 : vector<1x8x128xbf16> to vector<8x128xbf16>
    %292 = vector.shape_cast %288 : vector<8x128xbf16> to vector<1x8x128xbf16>
    tpu.vector_store %arg14[%289, %c0_74, %c0_75], %292 {strides = array<i32>} : memref<8x8x128xbf16, #tpu.memory_space<vmem>>, vector<1x8x128xbf16>,
    %c7_i32 = arith.constant 7 : i32
    %293 = arith.index_cast %c7_i32 : i32 to index
    %c0_76 = arith.constant 0 : index
    %c0_77 = arith.constant 0 : index
    %294 = vector.load %arg13[%293, %c0_76, %c0_77] : memref<8x8x384xbf16, #tpu.memory_space<vmem>>, vector<1x8x384xbf16>
    %295 = vector.shape_cast %294 : vector<1x8x384xbf16> to vector<8x384xbf16>
    %296 = arith.extf %295 : vector<8x384xbf16> to vector<8x384xf32>
    %297 = arith.truncf %287 : vector<8x128xf32> to vector<8x128xbf16>
    %cst_78 = arith.constant dense<0.000000e+00> : vector<8x384xf32>
    %298 = tpu.matmul %297, %2, %cst_78 {dimension_numbers = #tpu.dot_dimension_numbers<[1], [0], [0], [1], [0, 0, 1, 1], [], []>} : vector<8x128xbf16>, vector<128x384xbf16>, vector<8x384xf32> -> vector<8x384xf32>
    %299 = vector.broadcast %3 : vector<1x384xf32> to vector<8x384xf32>
    %300 = arith.addf %298, %299 : vector<8x384xf32>
    %301 = vector.extract_strided_slice %296 {offsets = [0, 0], sizes = [8, 128], strides = [1, 1]} : vector<8x384xf32> to vector<8x128xf32>
    %302 = vector.extract_strided_slice %300 {offsets = [0, 0], sizes = [8, 128], strides = [1, 1]} : vector<8x384xf32> to vector<8x128xf32>
    %303 = arith.addf %301, %302 : vector<8x128xf32>
    %304 = arith.negf %303 : vector<8x128xf32>
    %305 = math.exp %304 : vector<8x128xf32>
    %cst_79 = arith.constant 1.000000e+00 : f32
    %306 = vector.broadcast %cst_79 : f32 to vector<8x128xf32>
    %307 = arith.addf %306, %305 : vector<8x128xf32>
    %308 = arith.divf %306, %307 : vector<8x128xf32>
    %309 = vector.extract_strided_slice %296 {offsets = [0, 128], sizes = [8, 128], strides = [1, 1]} : vector<8x384xf32> to vector<8x128xf32>
    %310 = vector.extract_strided_slice %300 {offsets = [0, 128], sizes = [8, 128], strides = [1, 1]} : vector<8x384xf32> to vector<8x128xf32>
    %311 = arith.addf %309, %310 : vector<8x128xf32>
    %312 = arith.negf %311 : vector<8x128xf32>
    %313 = math.exp %312 : vector<8x128xf32>
    %cst_80 = arith.constant 1.000000e+00 : f32
    %314 = vector.broadcast %cst_80 : f32 to vector<8x128xf32>
    %315 = arith.addf %314, %313 : vector<8x128xf32>
    %316 = arith.divf %314, %315 : vector<8x128xf32>
    %317 = vector.extract_strided_slice %296 {offsets = [0, 256], sizes = [8, 128], strides = [1, 1]} : vector<8x384xf32> to vector<8x128xf32>
    %318 = vector.extract_strided_slice %300 {offsets = [0, 256], sizes = [8, 128], strides = [1, 1]} : vector<8x384xf32> to vector<8x128xf32>
    %319 = arith.mulf %308, %318 : vector<8x128xf32>
    %320 = arith.addf %317, %319 : vector<8x128xf32>
    %321 = math.tanh %320 : vector<8x128xf32>
    %cst_81 = arith.constant 1.000000e+00 : f32
    %322 = vector.broadcast %cst_81 : f32 to vector<8x128xf32>
    %323 = arith.subf %322, %316 : vector<8x128xf32>
    %324 = arith.mulf %323, %321 : vector<8x128xf32>
    %325 = arith.mulf %316, %287 : vector<8x128xf32>
    %326 = arith.addf %324, %325 : vector<8x128xf32>
    %327 = arith.truncf %326 : vector<8x128xf32> to vector<8x128xbf16>
    %328 = arith.index_cast %c7_i32 : i32 to index
    %c0_82 = arith.constant 0 : index
    %c0_83 = arith.constant 0 : index
    %329 = vector.load %arg14[%328, %c0_82, %c0_83] : memref<8x8x128xbf16, #tpu.memory_space<vmem>>, vector<1x8x128xbf16>
    %330 = vector.shape_cast %329 : vector<1x8x128xbf16> to vector<8x128xbf16>
    %331 = vector.shape_cast %327 : vector<8x128xbf16> to vector<1x8x128xbf16>
    tpu.vector_store %arg14[%328, %c0_82, %c0_83], %331 {strides = array<i32>} : memref<8x8x128xbf16, #tpu.memory_space<vmem>>, vector<1x8x128xbf16>,
    %c8_i32_84 = arith.constant 8 : i32
    %c0_i32_85 = arith.constant 0 : i32
    %c8_i32_86 = arith.constant 8 : i32
    %332 = arith.muli %c0_i32_85, %c8_i32_86 : i32
    %333 = tpu.assume_multiple %332, 8 : i32
    %334 = arith.index_cast %333 : i32 to index
    %c0_87 = arith.constant 0 : index
    %c0_88 = arith.constant 0 : index
    %335 = vector.load %arg14[%334, %c0_87, %c0_88] : memref<8x8x128xbf16, #tpu.memory_space<vmem>>, vector<8x8x128xbf16>
    %336 = vector.shape_cast %335 : vector<8x8x128xbf16> to vector<64x128xbf16>
    %cst_89 = arith.constant dense<0.000000e+00> : vector<64x128xf32>
    %337 = tpu.matmul %336, %4, %cst_89 {dimension_numbers = #tpu.dot_dimension_numbers<[1], [0], [0], [1], [0, 0, 1, 1], [], []>} : vector<64x128xbf16>, vector<128x128xbf16>, vector<64x128xf32> -> vector<64x128xf32>
    %338 = vector.broadcast %5 : vector<1x128xf32> to vector<64x128xf32>
    %339 = arith.addf %337, %338 : vector<64x128xf32>
    %340 = math.tanh %339 : vector<64x128xf32>
    %341 = vector.shape_cast %340 : vector<64x128xf32> to vector<8x8x128xf32>
    %342 = vector.shape_cast %6 : vector<1x128xf32> to vector<1x1x128xf32>
    %343 = vector.broadcast %342 : vector<1x1x128xf32> to vector<8x8x128xf32>
    %344 = arith.mulf %341, %343 : vector<8x8x128xf32>
    %cst_90 = arith.constant dense<0.000000e+00> : vector<8x8xf32>
    %345 = vector.multi_reduction <add>, %344, %cst_90 [2] : vector<8x8x128xf32> to vector<8x8xf32>
    %346 = arith.index_cast %333 : i32 to index
    %c0_91 = arith.constant 0 : index
    %347 = vector.load %arg15[%346, %c0_91] : memref<8x8xf32, #tpu.memory_space<vmem>>, vector<8x8xf32>
    tpu.vector_store %arg15[%346, %c0_91], %345 {strides = array<i32>} : memref<8x8xf32, #tpu.memory_space<vmem>>, vector<8x8xf32>,
    %c1_i32_92 = arith.constant 1 : i32
    %348 = tpu.iota {dimensions = array<i32: 1>} : vector<8x8xi32>
    %c0_93 = arith.constant 0 : index
    %c0_94 = arith.constant 0 : index
    %349 = vector.load %arg2[%c0_93, %c0_94] : memref<8x1xi32, #tpu.memory_space<vmem>>, vector<8x1xi32>
    %350 = vector.broadcast %349 : vector<8x1xi32> to vector<8x8xi32>
    %351 = arith.cmpi sge, %348, %350 : vector<8x8xi32>
    %cst_95 = arith.constant -1.000000e+30 : f32
    %cst_96 = arith.constant 0.000000e+00 : f32
    %352 = vector.broadcast %cst_95 : f32 to vector<8x8xf32>
    %353 = vector.broadcast %cst_96 : f32 to vector<8x8xf32>
    %354 = arith.select %351, %352, %353 : vector<8x8xi1>, vector<8x8xf32>
    %355 = tpu.transpose %354, [1, 0] : vector<8x8xf32> -> vector<8x8xf32>
    %c0_97 = arith.constant 0 : index
    %c0_98 = arith.constant 0 : index
    %356 = vector.load %arg15[%c0_97, %c0_98] : memref<8x8xf32, #tpu.memory_space<vmem>>, vector<8x8xf32>
    %357 = arith.addf %356, %355 : vector<8x8xf32>
    %cst_99 = arith.constant dense<0xFF800000> : vector<8xf32>
    %358 = vector.multi_reduction <maximumf>, %357, %cst_99 [0] : vector<8x8xf32> to vector<8xf32>
    %359 = vector.shape_cast %358 : vector<8xf32> to vector<1x8xf32>
    %360 = vector.broadcast %359 : vector<1x8xf32> to vector<8x8xf32>
    %361 = arith.subf %357, %360 : vector<8x8xf32>
    %362 = math.exp %361 : vector<8x8xf32>
    %cst_100 = arith.constant dense<0.000000e+00> : vector<8xf32>
    %363 = vector.multi_reduction <add>, %362, %cst_100 [0] : vector<8x8xf32> to vector<8xf32>
    %364 = vector.shape_cast %363 : vector<8xf32> to vector<1x8xf32>
    %365 = tpu.reciprocal %364 {approx = true} : vector<1x8xf32> -> vector<1x8xf32>
    %366 = vector.broadcast %365 : vector<1x8xf32> to vector<8x8xf32>
    %367 = arith.mulf %362, %366 : vector<8x8xf32>
    %c0_101 = arith.constant 0 : index
    %c0_102 = arith.constant 0 : index
    %368 = vector.load %arg15[%c0_101, %c0_102] : memref<8x8xf32, #tpu.memory_space<vmem>>, vector<8x8xf32>
    tpu.vector_store %arg15[%c0_101, %c0_102], %367 {strides = array<i32>} : memref<8x8xf32, #tpu.memory_space<vmem>>, vector<8x8xf32>,
    %cst_103 = arith.constant 0.000000e+00 : f32
    %369 = vector.broadcast %cst_103 : f32 to vector<8x128xf32>
    %c0_i32_104 = arith.constant 0 : i32
    %c8_i32_105 = arith.constant 8 : i32
    %370 = arith.muli %c0_i32_104, %c8_i32_105 : i32
    %371 = tpu.assume_multiple %370, 8 : i32
    %372 = arith.index_cast %371 : i32 to index
    %c0_106 = arith.constant 0 : index
    %373 = vector.load %arg15[%372, %c0_106] : memref<8x8xf32, #tpu.memory_space<vmem>>, vector<8x8xf32>
    %374 = arith.index_cast %371 : i32 to index
    %c0_107 = arith.constant 0 : index
    %c0_108 = arith.constant 0 : index
    %375 = vector.load %arg14[%374, %c0_107, %c0_108] : memref<8x8x128xbf16, #tpu.memory_space<vmem>>, vector<8x8x128xbf16>
    %376 = arith.extf %375 : vector<8x8x128xbf16> to vector<8x8x128xf32>
    %377 = vector.shape_cast %373 : vector<8x8xf32> to vector<8x8x1xf32>
    %378 = vector.broadcast %377 : vector<8x8x1xf32> to vector<8x8x128xf32>
    %379 = arith.mulf %378, %376 : vector<8x8x128xf32>
    %cst_109 = arith.constant dense<0.000000e+00> : vector<8x128xf32>
    %380 = vector.multi_reduction <add>, %379, %cst_109 [0] : vector<8x8x128xf32> to vector<8x128xf32>
    %381 = arith.addf %369, %380 : vector<8x128xf32>
    %c1_i32_110 = arith.constant 1 : i32
    %382 = arith.truncf %381 : vector<8x128xf32> to vector<8x128xbf16>
    %c0_111 = arith.constant 0 : index
    %c0_112 = arith.constant 0 : index
    %383 = vector.load %arg10[%c0_111, %c0_112] : memref<128x128xbf16, #tpu.memory_space<vmem>>, vector<128x128xbf16>
    %cst_113 = arith.constant dense<0.000000e+00> : vector<8x128xf32>
    %384 = tpu.matmul %382, %383, %cst_113 {dimension_numbers = #tpu.dot_dimension_numbers<[1], [0], [0], [1], [0, 0, 1, 1], [], []>} : vector<8x128xbf16>, vector<128x128xbf16>, vector<8x128xf32> -> vector<8x128xf32>
    %c0_114 = arith.constant 0 : index
    %c0_115 = arith.constant 0 : index
    %385 = vector.load %arg11[%c0_114, %c0_115] : memref<1x128xf32, #tpu.memory_space<vmem>>, vector<1x128xf32>
    %386 = vector.broadcast %385 : vector<1x128xf32> to vector<8x128xf32>
    %387 = arith.addf %384, %386 : vector<8x128xf32>
    %c0_116 = arith.constant 0 : index
    %c0_117 = arith.constant 0 : index
    %388 = vector.load %arg12[%c0_116, %c0_117] : memref<8x128xf32, #tpu.memory_space<vmem>>, vector<8x128xf32>
    tpu.vector_store %arg12[%c0_116, %c0_117], %387 {strides = array<i32>} : memref<8x128xf32, #tpu.memory_space<vmem>>, vector<8x128xf32>,
    return
  }
  func.func @transform_0(%arg0: i32) -> (i32, i32, i32) {
    %c0_i32 = arith.constant 0 : i32
    %c0_i32_0 = arith.constant 0 : i32
    %c0_i32_1 = arith.constant 0 : i32
    return %c0_i32, %arg0, %c0_i32_0 : i32, i32, i32
  }
  func.func @transform_1(%arg0: i32) -> (i32, i32) {
    %c0_i32 = arith.constant 0 : i32
    %c0_i32_0 = arith.constant 0 : i32
    return %arg0, %c0_i32 : i32, i32
  }
  func.func @transform_2(%arg0: i32) -> (i32, i32) {
    %c0_i32 = arith.constant 0 : i32
    %c0_i32_0 = arith.constant 0 : i32
    %c0_i32_1 = arith.constant 0 : i32
    return %c0_i32, %c0_i32_0 : i32, i32
  }
  func.func @transform_3(%arg0: i32) -> (i32, i32) {
    %c0_i32 = arith.constant 0 : i32
    %c0_i32_0 = arith.constant 0 : i32
    %c0_i32_1 = arith.constant 0 : i32
    return %c0_i32, %c0_i32_0 : i32, i32
  }
  func.func @transform_4(%arg0: i32) -> (i32, i32) {
    %c0_i32 = arith.constant 0 : i32
    %c0_i32_0 = arith.constant 0 : i32
    %c0_i32_1 = arith.constant 0 : i32
    return %c0_i32, %c0_i32_0 : i32, i32
  }
  func.func @transform_5(%arg0: i32) -> (i32, i32) {
    %c0_i32 = arith.constant 0 : i32
    %c0_i32_0 = arith.constant 0 : i32
    %c0_i32_1 = arith.constant 0 : i32
    return %c0_i32, %c0_i32_0 : i32, i32
  }
  func.func @transform_6(%arg0: i32) -> (i32, i32) {
    %c0_i32 = arith.constant 0 : i32
    %c0_i32_0 = arith.constant 0 : i32
    %c0_i32_1 = arith.constant 0 : i32
    return %c0_i32, %c0_i32_0 : i32, i32
  }
  func.func @transform_7(%arg0: i32) -> (i32, i32) {
    %c0_i32 = arith.constant 0 : i32
    %c0_i32_0 = arith.constant 0 : i32
    %c0_i32_1 = arith.constant 0 : i32
    return %c0_i32, %c0_i32_0 : i32, i32
  }
  func.func @transform_8(%arg0: i32) -> (i32, i32) {
    %c0_i32 = arith.constant 0 : i32
    %c0_i32_0 = arith.constant 0 : i32
    %c0_i32_1 = arith.constant 0 : i32
    return %c0_i32, %c0_i32_0 : i32, i32
  }
  func.func @transform_9(%arg0: i32) -> (i32, i32) {
    %c0_i32 = arith.constant 0 : i32
    %c0_i32_0 = arith.constant 0 : i32
    %c0_i32_1 = arith.constant 0 : i32
    return %c0_i32, %c0_i32_0 : i32, i32
  }
  func.func @transform_10(%arg0: i32) -> (i32, i32) {
    %c0_i32 = arith.constant 0 : i32
    %c0_i32_0 = arith.constant 0 : i32
    %c0_i32_1 = arith.constant 0 : i32
    return %c0_i32, %c0_i32_0 : i32, i32
  }
  func.func @transform_11(%arg0: i32) -> (i32, i32) {
    %c0_i32 = arith.constant 0 : i32
    %c0_i32_0 = arith.constant 0 : i32
    return %arg0, %c0_i32 : i32, i32
  }
}

</mosaic_0001>

<llo_original>
// kernel: tpu_custom_call.1
$region0: #{tpu_custom_call.1}
  #allocation0 [shape = 'u32[]', space=smem, size = 0x4, offset = 0x4, fixed_abs, tag = 'smem constant byte address 0x4 - core index']
  #allocation1 [shape = 'u32[144,128]{1,0:T(1,128)}', space=vmem, size = 0x12000, scoped, tag = 'internal scratch']
  #allocation2 [shape = 'bf16[8,8,384]{2,1,0:T(8,128)(2,1)}', space=vmem, size = 0xc000, scoped, tag = 'scratch operand']
  #allocation3 [shape = 'bf16[8,8,128]{2,1,0:T(8,128)(2,1)}', space=vmem, size = 0x4000, scoped, tag = 'scratch operand']
  #allocation4 [shape = 'f32[8,8]{1,0:T(8,128)}', space=vmem, size = 0x1000, scoped, tag = 'scratch operand']
  %s0 = inlined_call_operand.hbm [shape: bf16[8,8,16], index: 0, kind: input, shape index: {}]
  %s1 = inlined_call_operand.vmem [shape: s32[8,1], index: 1, kind: input, shape index: {}]
  %s2 = inlined_call_operand.hbm [shape: bf16[16,384], index: 2, kind: input, shape index: {}]
  %s3 = inlined_call_operand.hbm [shape: bf16[128,384], index: 3, kind: input, shape index: {}]
  %s4 = inlined_call_operand.vmem [shape: f32[1,384], index: 4, kind: input, shape index: {}]
  %s5 = inlined_call_operand.vmem [shape: f32[1,384], index: 5, kind: input, shape index: {}]
  %s6 = inlined_call_operand.hbm [shape: bf16[128,128], index: 6, kind: input, shape index: {}]
  %s7 = inlined_call_operand.vmem [shape: f32[1,128], index: 7, kind: input, shape index: {}]
  %s8 = inlined_call_operand.vmem [shape: f32[1,128], index: 8, kind: input, shape index: {}]
  %s9 = inlined_call_operand.hbm [shape: bf16[128,128], index: 9, kind: input, shape index: {}]
  %s10 = inlined_call_operand.vmem [shape: f32[1,128], index: 10, kind: input, shape index: {}]
  %s11 = inlined_call_operand.hbm [shape: f32[8,128], index: 11, kind: output, shape index: {}]
  %s12 = sld [smem:[#allocation0]]
  $region74: #{tpu_custom_call.1} parent=0
    _
  %s14 = ssub.s32 1, %s12
  %s15 = scalar_select 0, %s14, %s12
  $region1: #{tpu_custom_call.1} parent=0
    #allocation5 [shape = 'u8[16384]{0}', space=vmem, size = 0x4000, scoped, tag = 'input window, operand 0, single buffered']
    #allocation6 [shape = 's32[1]{0}', space=sflag, size = 0x4, scoped, tag = 'scoped memory for tpu_custom_call.1']
    #allocation7 [shape = 's32[1]{0}', space=sflag, size = 0x4, scoped, tag = 'scoped memory for tpu_custom_call.1']
    #allocation8 [shape = 'u8[12288]{0}', space=vmem, size = 0x3000, scoped, tag = 'input window, operand 2, single buffered']
    #allocation9 [shape = 's32[1]{0}', space=sflag, size = 0x4, scoped, tag = 'scoped memory for tpu_custom_call.1']
    #allocation10 [shape = 'u8[98304]{0}', space=vmem, size = 0x18000, scoped, tag = 'input window, operand 3, single buffered']
    #allocation11 [shape = 'u8[32768]{0}', space=vmem, size = 0x8000, scoped, tag = 'input window, operand 6, single buffered']
    #allocation12 [shape = 's32[1]{0}', space=sflag, size = 0x4, scoped, tag = 'scoped memory for tpu_custom_call.1']
    #allocation13 [shape = 'u8[32768]{0}', space=vmem, size = 0x8000, scoped, tag = 'input window, operand 9, single buffered']
    #allocation14 [shape = 'u8[4096]{0}', space=vmem, size = 0x1000, scoped, tag = 'output window, operand 0, single buffered']
    %16 = vsyncpa [#allocation6], 0
    %17 = vsyncpa [#allocation9], 0
    %18 = vsyncpa [#allocation12], 0
    %19 = vsyncpa [#allocation7], 0
    // Predicated region
    $region2: #{tpu_custom_call.1} parent=1 // pred_check
      _
    $region3: #{tpu_custom_call.1} parent=1 // pred_check_branch
      %21 = sbr.rel (0) target = $region5
    $region4: #{tpu_custom_call.1} parent=1 // pred_region
      %s23 = ssub.s32 512, 512
      %24 = vsyncadd [#allocation6], %s23
      %s25 = sshll.u32 [#allocation5], 4
      %s26 = int_to_ptr.vmem [resolvable:$true] %s25
      %31 = dma.hbm_to_vmem [thread:$0]  %s0, 512, %s26, [#allocation6], 64, 64, 4
    $region5: #{tpu_custom_call.1} parent=1 // pred_fallthru
      _
    // Predicated region
    $region6: #{tpu_custom_call.1} parent=1 // pred_check
      _
    $region7: #{tpu_custom_call.1} parent=1 // pred_check_branch
      %33 = sbr.rel (0) target = $region9
    $region8: #{tpu_custom_call.1} parent=1 // pred_region
      _
    $region9: #{tpu_custom_call.1} parent=1 // pred_fallthru
      _
    // Predicated region
    $region10: #{tpu_custom_call.1} parent=1 // pred_check
      _
    $region11: #{tpu_custom_call.1} parent=1 // pred_check_branch
      %35 = sbr.rel (0) target = $region13
    $region12: #{tpu_custom_call.1} parent=1 // pred_region
      %s37 = ssub.s32 384, 384
      %38 = vsyncadd [#allocation9], %s37
      %s39 = sshll.u32 [#allocation8], 4
      %s40 = int_to_ptr.vmem [resolvable:$true] %s39
      %45 = dma.hbm_to_vmem [thread:$0]  %s2, 384, %s40, [#allocation9], 192, 192, 12
    $region13: #{tpu_custom_call.1} parent=1 // pred_fallthru
      _
    // Predicated region
    $region14: #{tpu_custom_call.1} parent=1 // pred_check
      _
    $region15: #{tpu_custom_call.1} parent=1 // pred_check_branch
      %47 = sbr.rel (0) target = $region17
    $region16: #{tpu_custom_call.1} parent=1 // pred_region
      %s49 = ssub.s32 3072, 3072
      %50 = vsyncadd [#allocation9], %s49
      %s51 = sshll.u32 [#allocation10], 4
      %s52 = int_to_ptr.vmem [resolvable:$true] %s51
      %57 = dma.hbm_to_vmem [thread:$0]  %s3, 3072, %s52, [#allocation9], 192, 192, 12
    $region17: #{tpu_custom_call.1} parent=1 // pred_fallthru
      _
    // Predicated region
    $region18: #{tpu_custom_call.1} parent=1 // pred_check
      _
    $region19: #{tpu_custom_call.1} parent=1 // pred_check_branch
      %59 = sbr.rel (0) target = $region21
    $region20: #{tpu_custom_call.1} parent=1 // pred_region
      _
    $region21: #{tpu_custom_call.1} parent=1 // pred_fallthru
      _
    // Predicated region
    $region22: #{tpu_custom_call.1} parent=1 // pred_check
      _
    $region23: #{tpu_custom_call.1} parent=1 // pred_check_branch
      %61 = sbr.rel (0) target = $region25
    $region24: #{tpu_custom_call.1} parent=1 // pred_region
      _
    $region25: #{tpu_custom_call.1} parent=1 // pred_fallthru
      _
    // Predicated region
    $region26: #{tpu_custom_call.1} parent=1 // pred_check
      _
    $region27: #{tpu_custom_call.1} parent=1 // pred_check_branch
      %63 = sbr.rel (0) target = $region29
    $region28: #{tpu_custom_call.1} parent=1 // pred_region
      %s65 = ssub.s32 1024, 1024
      %66 = vsyncadd [#allocation12], %s65
      %s67 = sshll.u32 [#allocation11], 4
      %s68 = int_to_ptr.vmem [resolvable:$true] %s67
      %73 = dma.hbm_to_vmem [thread:$0]  %s6, 1024, %s68, [#allocation12], 64, 64, 4
    $region29: #{tpu_custom_call.1} parent=1 // pred_fallthru
      _
    // Predicated region
    $region30: #{tpu_custom_call.1} parent=1 // pred_check
      _
    $region31: #{tpu_custom_call.1} parent=1 // pred_check_branch
      %75 = sbr.rel (0) target = $region33
    $region32: #{tpu_custom_call.1} parent=1 // pred_region
      _
    $region33: #{tpu_custom_call.1} parent=1 // pred_fallthru
      _
    // Predicated region
    $region34: #{tpu_custom_call.1} parent=1 // pred_check
      _
    $region35: #{tpu_custom_call.1} parent=1 // pred_check_branch
      %77 = sbr.rel (0) target = $region37
    $region36: #{tpu_custom_call.1} parent=1 // pred_region
      _
    $region37: #{tpu_custom_call.1} parent=1 // pred_fallthru
      _
    // Predicated region
    $region38: #{tpu_custom_call.1} parent=1 // pred_check
      _
    $region39: #{tpu_custom_call.1} parent=1 // pred_check_branch
      %79 = sbr.rel (0) target = $region41
    $region40: #{tpu_custom_call.1} parent=1 // pred_region
      %s81 = ssub.s32 1024, 1024
      %82 = vsyncadd [#allocation12], %s81
      %s83 = sshll.u32 [#allocation13], 4
      %s84 = int_to_ptr.vmem [resolvable:$true] %s83
      %89 = dma.hbm_to_vmem [thread:$0]  %s9, 1024, %s84, [#allocation12], 64, 64, 4
    $region41: #{tpu_custom_call.1} parent=1 // pred_fallthru
      _
    // Predicated region
    $region42: #{tpu_custom_call.1} parent=1 // pred_check
      _
    $region43: #{tpu_custom_call.1} parent=1 // pred_check_branch
      %91 = sbr.rel (0) target = $region45
    $region44: #{tpu_custom_call.1} parent=1 // pred_region
      _
    $region45: #{tpu_custom_call.1} parent=1 // pred_fallthru
      _
    // Predicated region
    $region46: #{tpu_custom_call.1} parent=1 // pred_check
      _
    $region47: #{tpu_custom_call.1} parent=1 // pred_check_branch
      %93 = sbr.rel (0) target = $region49
    $region48: #{tpu_custom_call.1} parent=1 // pred_region
      %94 = dma.done [#allocation6], 512
    $region49: #{tpu_custom_call.1} parent=1 // pred_fallthru
      _
    // Predicated region
    $region50: #{tpu_custom_call.1} parent=1 // pred_check
      _
    $region51: #{tpu_custom_call.1} parent=1 // pred_check_branch
      %96 = sbr.rel (0) target = $region53
    $region52: #{tpu_custom_call.1} parent=1 // pred_region
      %97 = dma.done [#allocation9], 384
    $region53: #{tpu_custom_call.1} parent=1 // pred_fallthru
      _
    // Predicated region
    $region54: #{tpu_custom_call.1} parent=1 // pred_check
      _
    $region55: #{tpu_custom_call.1} parent=1 // pred_check_branch
      %99 = sbr.rel (0) target = $region57
    $region56: #{tpu_custom_call.1} parent=1 // pred_region
      %100 = dma.done [#allocation9], 3072
    $region57: #{tpu_custom_call.1} parent=1 // pred_fallthru
      _
    // Predicated region
    $region58: #{tpu_custom_call.1} parent=1 // pred_check
      _
    $region59: #{tpu_custom_call.1} parent=1 // pred_check_branch
      %102 = sbr.rel (0) target = $region61
    $region60: #{tpu_custom_call.1} parent=1 // pred_region
      %103 = dma.done [#allocation12], 1024
    $region61: #{tpu_custom_call.1} parent=1 // pred_fallthru
      _
    // Predicated region
    $region62: #{tpu_custom_call.1} parent=1 // pred_check
      _
    $region63: #{tpu_custom_call.1} parent=1 // pred_check_branch
      %105 = sbr.rel (0) target = $region65
    $region64: #{tpu_custom_call.1} parent=1 // pred_region
      %106 = dma.done [#allocation12], 1024
    $region65: #{tpu_custom_call.1} parent=1 // pred_fallthru
      _
    %v108 = vld [vmem:[#allocation8] sm:$0xff]
    %v109 = vld [vmem:[#allocation8 + $0x8] sm:$0xf]
    %v110 = vld [vmem:[#allocation8 + $0xc] sm:$0xff]
    %v111 = vld [vmem:[#allocation8 + $0x14] sm:$0xf]
    %v112 = vld [vmem:[%s4] sm:$0x7]
    %v113 = vld [vmem:[#allocation10] sm:$0xff]
    %v114 = vld [vmem:[#allocation10 + $0x8] sm:$0xf]
    %v115 = vld [vmem:[#allocation10 + $0xc] sm:$0xff]
    %v116 = vld [vmem:[#allocation10 + $0x14] sm:$0xf]
    %v117 = vld [vmem:[#allocation10 + $0x18] sm:$0xff]
    %v118 = vld [vmem:[#allocation10 + $0x20] sm:$0xf]
    %v119 = vld [vmem:[#allocation10 + $0x24] sm:$0xff]
    %v120 = vld [vmem:[#allocation10 + $0x2c] sm:$0xf]
    %v121 = vld [vmem:[#allocation10 + $0x30] sm:$0xff]
    %v122 = vld [vmem:[#allocation10 + $0x38] sm:$0xf]
    %v123 = vld [vmem:[#allocation10 + $0x3c] sm:$0xff]
    %v124 = vld [vmem:[#allocation10 + $0x44] sm:$0xf]
    %v125 = vld [vmem:[#allocation10 + $0x48] sm:$0xff]
    %v126 = vld [vmem:[#allocation10 + $0x50] sm:$0xf]
    %v127 = vld [vmem:[#allocation10 + $0x54] sm:$0xff]
    %v128 = vld [vmem:[#allocation10 + $0x5c] sm:$0xf]
    %v129 = vld [vmem:[#allocation10 + $0x60] sm:$0xff]
    %v130 = vld [vmem:[#allocation10 + $0x68] sm:$0xf]
    %v131 = vld [vmem:[#allocation10 + $0x6c] sm:$0xff]
    %v132 = vld [vmem:[#allocation10 + $0x74] sm:$0xf]
    %v133 = vld [vmem:[#allocation10 + $0x78] sm:$0xff]
    %v134 = vld [vmem:[#allocation10 + $0x80] sm:$0xf]
    %v135 = vld [vmem:[#allocation10 + $0x84] sm:$0xff]
    %v136 = vld [vmem:[#allocation10 + $0x8c] sm:$0xf]
    %v137 = vld [vmem:[#allocation10 + $0x90] sm:$0xff]
    %v138 = vld [vmem:[#allocation10 + $0x98] sm:$0xf]
    %v139 = vld [vmem:[#allocation10 + $0x9c] sm:$0xff]
    %v140 = vld [vmem:[#allocation10 + $0xa4] sm:$0xf]
    %v141 = vld [vmem:[#allocation10 + $0xa8] sm:$0xff]
    %v142 = vld [vmem:[#allocation10 + $0xb0] sm:$0xf]
    %v143 = vld [vmem:[#allocation10 + $0xb4] sm:$0xff]
    %v144 = vld [vmem:[#allocation10 + $0xbc] sm:$0xf]
    %v145 = vld [vmem:[%s5] sm:$0x7]
    %v146 = vld [vmem:[#allocation11] sm:$0xf]
    %v147 = vld [vmem:[#allocation11 + $0x4] sm:$0xf]
    %v148 = vld [vmem:[#allocation11 + $0x8] sm:$0xf]
    %v149 = vld [vmem:[#allocation11 + $0xc] sm:$0xf]
    %v150 = vld [vmem:[#allocation11 + $0x10] sm:$0xf]
    %v151 = vld [vmem:[#allocation11 + $0x14] sm:$0xf]
    %v152 = vld [vmem:[#allocation11 + $0x18] sm:$0xf]
    %v153 = vld [vmem:[#allocation11 + $0x1c] sm:$0xf]
    %v154 = vld [vmem:[#allocation11 + $0x20] sm:$0xf]
    %v155 = vld [vmem:[#allocation11 + $0x24] sm:$0xf]
    %v156 = vld [vmem:[#allocation11 + $0x28] sm:$0xf]
    %v157 = vld [vmem:[#allocation11 + $0x2c] sm:$0xf]
    %v158 = vld [vmem:[#allocation11 + $0x30] sm:$0xf]
    %v159 = vld [vmem:[#allocation11 + $0x34] sm:$0xf]
    %v160 = vld [vmem:[#allocation11 + $0x38] sm:$0xf]
    %v161 = vld [vmem:[#allocation11 + $0x3c] sm:$0xf]
    %v162 = vld [vmem:[%s7] sm:$0x1]
    %v163 = vld [vmem:[%s8] sm:$0x1]
    %v164 = vld [vmem:[#allocation5] sm:$0xf]
    %v165 = vld [vmem:[#allocation5 + $0x4] sm:$0xf]
    %v166 = vld [vmem:[#allocation5 + $0x8] sm:$0xf]
    %v167 = vld [vmem:[#allocation5 + $0xc] sm:$0xf]
    %v168 = vld [vmem:[#allocation5 + $0x10] sm:$0xf]
    %v169 = vld [vmem:[#allocation5 + $0x14] sm:$0xf]
    %v170 = vld [vmem:[#allocation5 + $0x18] sm:$0xf]
    %v171 = vld [vmem:[#allocation5 + $0x1c] sm:$0xf]
    %v173 = vlaneseq
    %v174 = vshrl.u32 %v173, 7
    %v175 = vsub.s32 0, %v174
    %v176 = vrot.slane %v112, %v175
    %v177 = vlaneseq
    %v178 = vshrl.u32 %v177, 7
    %v179 = vsub.s32 1, %v178
    %v180 = vrot.slane %v112, %v179
    %v181 = vlaneseq
    %v182 = vshrl.u32 %v181, 7
    %v183 = vsub.s32 2, %v182
    %v184 = vrot.slane %v112, %v183
    %v196 = vunpack.c.l.b16 %v164
    %v197 = vunpack.c.l.b16 %v165
    %v198 = vunpack.c.l.b16 %v166
    %v199 = vunpack.c.l.b16 %v167
    %v200 = vunpack.c.l.b16 %v168
    %v201 = vunpack.c.l.b16 %v169
    %v202 = vunpack.c.l.b16 %v170
    %v203 = vunpack.c.l.b16 %v171
    %v204 = vpack.c.b16 %v197, %v196
    %v205 = vpack.c.b16 %v199, %v198
    %v206 = vpack.c.b16 %v201, %v200
    %v207 = vpack.c.b16 %v203, %v202
    %v212 = vunpack.c.l.b16 %v108
    %v213 = vunpack.c.h.b16 %v108
    %v214 = vunpack.c.l.b16 %v109
    %v215 = vunpack.c.l.b16 %v110
    %v216 = vunpack.c.h.b16 %v110
    %v217 = vunpack.c.l.b16 %v111
    %v218 = vpack.c.b16 %v215, %v212
    %v219 = vpack.c.b16 %v216, %v213
    %v220 = vpack.c.b16 %v217, %v214
    %vm224 = vcmask 130048
    %v226 = vsel %vm224, %v204, 0
    %v229 = vsel %vm224, %v205, 0
    %v232 = vsel %vm224, %v206, 0
    %v235 = vsel %vm224, %v207, 0
    %237 = vmatprep.subr.bf16.mxu0 0
    %238 = vmatpush1.bf16.msra.mxu0 0
    %239 = vmatprep.subr.bf16.mxu0 0
    %240 = vmatpush1.bf16.msra.mxu0 0
    %241 = vmatprep.subr.bf16.mxu0 0
    %242 = vmatpush1.bf16.msra.mxu0 0
    %243 = vmatprep.subr.bf16.mxu0 0
    %244 = vmatpush1.bf16.msra.mxu0 0
    %245 = vmatprep.subr.bf16.mxu0 0
    %246 = vmatpush1.bf16.msra.mxu0 0
    %247 = vmatprep.subr.bf16.mxu0 0
    %248 = vmatpush1.bf16.msra.mxu0 0
    %249 = vmatprep.subr.bf16.mxu0 0
    %250 = vmatpush1.bf16.msra.mxu0 0
    %251 = vmatprep.subr.bf16.mxu0 %v219
    %252 = vmatpush1.bf16.msra.mxu0 %v218
    %253 = vmatprep.subr.bf16.mxu0 0
    %254 = vmatpush2.bf16.msra.mxu0 0
    %255 = vmatprep.subr.bf16.mxu0 0
    %256 = vmatpush2.bf16.msra.mxu0 0
    %257 = vmatprep.subr.bf16.mxu0 0
    %258 = vmatpush2.bf16.msra.mxu0 0
    %259 = vmatprep.subr.bf16.mxu0 0
    %260 = vmatpush2.bf16.msra.mxu0 0
    %261 = vmatprep.subr.bf16.mxu0 0
    %262 = vmatpush2.bf16.msra.mxu0 0
    %263 = vmatprep.subr.bf16.mxu0 0
    %264 = vmatpush2.bf16.msra.mxu0 0
    %265 = vmatprep.subr.bf16.mxu0 0
    %266 = vmatpush2.bf16.msra.mxu0 0
    %267 = vmatprep.subr.bf16.mxu0 0
    %268 = vmatpush2.bf16.msra.mxu0 0
    %269 = vmatprep.mubr.bf16.mxu0 0
    %270 = vmatmul.mubr.bf16.gmra.mxu0 %v226
    %v271 = vpop.f32.mrf.mxu0
    %v272 = vadd.f32 %v176, %v271
    %v273 = vpop.f32.mrf.mxu0
    %v274 = vadd.f32 %v180, %v273
    %v275 = vpop.f32.mrf.mxu0
    %v276 = vadd.f32 %v176, %v275
    %v277 = vpop.f32.mrf.mxu0
    %v278 = vadd.f32 %v180, %v277
    %279 = vmatprep.mubr.bf16.mxu0 0
    %280 = vmatmul.mubr.bf16.gmra.mxu0 %v229
    %v281 = vpop.f32.mrf.mxu0
    %v282 = vadd.f32 %v176, %v281
    %v283 = vpop.f32.mrf.mxu0
    %v284 = vadd.f32 %v180, %v283
    %v285 = vpop.f32.mrf.mxu0
    %v286 = vadd.f32 %v176, %v285
    %v287 = vpop.f32.mrf.mxu0
    %v288 = vadd.f32 %v180, %v287
    %289 = vmatprep.mubr.bf16.mxu0 0
    %290 = vmatmul.mubr.bf16.gmra.mxu0 %v232
    %v291 = vpop.f32.mrf.mxu0
    %v292 = vadd.f32 %v176, %v291
    %v293 = vpop.f32.mrf.mxu0
    %v294 = vadd.f32 %v180, %v293
    %v295 = vpop.f32.mrf.mxu0
    %v296 = vadd.f32 %v176, %v295
    %v297 = vpop.f32.mrf.mxu0
    %v298 = vadd.f32 %v180, %v297
    %299 = vmatprep.mubr.bf16.mxu0 0
    %300 = vmatmul.mubr.bf16.gmra.mxu0 %v235
    %v301 = vpop.f32.mrf.mxu0
    %v302 = vadd.f32 %v176, %v301
    %v303 = vpop.f32.mrf.mxu0
    %v304 = vadd.f32 %v180, %v303
    %v305 = vpop.f32.mrf.mxu0
    %v306 = vadd.f32 %v176, %v305
    %v307 = vpop.f32.mrf.mxu0
    %v308 = vadd.f32 %v180, %v307
    %309 = vdwg.mxu0
    %310 = vmatprep.subr.bf16.mxu0 0
    %311 = vmatpush1.bf16.msra.mxu0 0
    %312 = vmatprep.subr.bf16.mxu0 0
    %313 = vmatpush1.bf16.msra.mxu0 0
    %314 = vmatprep.subr.bf16.mxu0 0
    %315 = vmatpush1.bf16.msra.mxu0 0
    %316 = vmatprep.subr.bf16.mxu0 0
    %317 = vmatpush1.bf16.msra.mxu0 0
    %318 = vmatprep.subr.bf16.mxu0 0
    %319 = vmatpush1.bf16.msra.mxu0 0
    %320 = vmatprep.subr.bf16.mxu0 0
    %321 = vmatpush1.bf16.msra.mxu0 0
    %322 = vmatprep.subr.bf16.mxu0 0
    %323 = vmatpush1.bf16.msra.mxu0 0
    %324 = vmatprep.subr.bf16.mxu0 0
    %325 = vmatpush1.bf16.msra.mxu0 %v220
    %326 = vmatprep.subr.bf16.mxu0 0
    %327 = vmatpush2.bf16.msra.mxu0 0
    %328 = vmatprep.subr.bf16.mxu0 0
    %329 = vmatpush2.bf16.msra.mxu0 0
    %330 = vmatprep.subr.bf16.mxu0 0
    %331 = vmatpush2.bf16.msra.mxu0 0
    %332 = vmatprep.subr.bf16.mxu0 0
    %333 = vmatpush2.bf16.msra.mxu0 0
    %334 = vmatprep.subr.bf16.mxu0 0
    %335 = vmatpush2.bf16.msra.mxu0 0
    %336 = vmatprep.subr.bf16.mxu0 0
    %337 = vmatpush2.bf16.msra.mxu0 0
    %338 = vmatprep.subr.bf16.mxu0 0
    %339 = vmatpush2.bf16.msra.mxu0 0
    %340 = vmatprep.subr.bf16.mxu0 0
    %341 = vmatpush2.bf16.msra.mxu0 0
    %342 = vmatprep.mubr.bf16.mxu0 0
    %343 = vmatmul.mubr.bf16.gmra.mxu0 %v226
    %v344 = vpop.f32.mrf.mxu0
    %v345 = vadd.f32 %v184, %v344
    %v346 = vpop.f32.mrf.mxu0
    %v347 = vpop.f32.mrf.mxu0
    %v348 = vadd.f32 %v184, %v347
    %v349 = vpop.f32.mrf.mxu0
    %350 = vmatprep.mubr.bf16.mxu0 0
    %351 = vmatmul.mubr.bf16.gmra.mxu0 %v229
    %v352 = vpop.f32.mrf.mxu0
    %v353 = vadd.f32 %v184, %v352
    %v354 = vpop.f32.mrf.mxu0
    %v355 = vpop.f32.mrf.mxu0
    %v356 = vadd.f32 %v184, %v355
    %v357 = vpop.f32.mrf.mxu0
    %358 = vmatprep.mubr.bf16.mxu0 0
    %359 = vmatmul.mubr.bf16.gmra.mxu0 %v232
    %v360 = vpop.f32.mrf.mxu0
    %v361 = vadd.f32 %v184, %v360
    %v362 = vpop.f32.mrf.mxu0
    %v363 = vpop.f32.mrf.mxu0
    %v364 = vadd.f32 %v184, %v363
    %v365 = vpop.f32.mrf.mxu0
    %366 = vmatprep.mubr.bf16.mxu0 0
    %367 = vmatmul.mubr.bf16.gmra.mxu0 %v235
    %v368 = vpop.f32.mrf.mxu0
    %v369 = vadd.f32 %v184, %v368
    %v370 = vpop.f32.mrf.mxu0
    %v371 = vpop.f32.mrf.mxu0
    %v372 = vadd.f32 %v184, %v371
    %v373 = vpop.f32.mrf.mxu0
    %374 = vdwg.mxu0
    %v375 = vpack.c.bf16 %v272, %v272
    %v376 = vpack.c.bf16 %v274, %v274
    %v377 = vpack.c.bf16 %v345, %v345
    %v378 = vpack.c.bf16 %v276, %v276
    %v379 = vpack.c.bf16 %v278, %v278
    %v380 = vpack.c.bf16 %v348, %v348
    %v381 = vpack.c.bf16 %v282, %v282
    %v382 = vpack.c.bf16 %v284, %v284
    %v383 = vpack.c.bf16 %v353, %v353
    %v384 = vpack.c.bf16 %v286, %v286
    %v385 = vpack.c.bf16 %v288, %v288
    %v386 = vpack.c.bf16 %v356, %v356
    %v387 = vpack.c.bf16 %v292, %v292
    %v388 = vpack.c.bf16 %v294, %v294
    %v389 = vpack.c.bf16 %v361, %v361
    %v390 = vpack.c.bf16 %v296, %v296
    %v391 = vpack.c.bf16 %v298, %v298
    %v392 = vpack.c.bf16 %v364, %v364
    %v393 = vpack.c.bf16 %v302, %v302
    %v394 = vpack.c.bf16 %v304, %v304
    %v395 = vpack.c.bf16 %v369, %v369
    %v396 = vpack.c.bf16 %v306, %v306
    %v397 = vpack.c.bf16 %v308, %v308
    %v398 = vpack.c.bf16 %v372, %v372
    %v423 = vunpack.c.l.b16 %v375
    %v424 = vunpack.c.l.b16 %v376
    %v425 = vunpack.c.l.b16 %v377
    %v426 = vunpack.c.l.b16 %v378
    %v427 = vunpack.c.l.b16 %v379
    %v428 = vunpack.c.l.b16 %v380
    %v429 = vunpack.c.l.b16 %v381
    %v430 = vunpack.c.l.b16 %v382
    %v431 = vunpack.c.l.b16 %v383
    %v432 = vunpack.c.l.b16 %v384
    %v433 = vunpack.c.l.b16 %v385
    %v434 = vunpack.c.l.b16 %v386
    %v435 = vunpack.c.l.b16 %v387
    %v436 = vunpack.c.l.b16 %v388
    %v437 = vunpack.c.l.b16 %v389
    %v438 = vunpack.c.l.b16 %v390
    %v439 = vunpack.c.l.b16 %v391
    %v440 = vunpack.c.l.b16 %v392
    %v441 = vunpack.c.l.b16 %v393
    %v442 = vunpack.c.l.b16 %v394
    %v443 = vunpack.c.l.b16 %v395
    %v444 = vunpack.c.l.b16 %v396
    %v445 = vunpack.c.l.b16 %v397
    %v446 = vunpack.c.l.b16 %v398
    %v447 = vpack.c.b16 %v424, %v423
    %v448 = vpack.c.b16 %v425, %v425
    %v449 = vpack.c.b16 %v427, %v426
    %v450 = vpack.c.b16 %v428, %v428
    %v451 = vpack.c.b16 %v430, %v429
    %v452 = vpack.c.b16 %v431, %v431
    %v453 = vpack.c.b16 %v433, %v432
    %v454 = vpack.c.b16 %v434, %v434
    %v455 = vpack.c.b16 %v436, %v435
    %v456 = vpack.c.b16 %v437, %v437
    %v457 = vpack.c.b16 %v439, %v438
    %v458 = vpack.c.b16 %v440, %v440
    %v459 = vpack.c.b16 %v442, %v441
    %v460 = vpack.c.b16 %v443, %v443
    %v461 = vpack.c.b16 %v445, %v444
    %v462 = vpack.c.b16 %v446, %v446
    %s479 = smul.u32 0, 3
    %s480 = smul.addr %s479, 4
    %s481 = scalar_lea.vmem [#allocation2], %s480
    %482 = vst [vmem:[%s481] sm:$0xff] %v447
    %483 = vst [vmem:[%s481 + $0x8] sm:$0xf] %v448
    %484 = vst [vmem:[%s481 + $0xc] sm:$0xff] %v449
    %485 = vst [vmem:[%s481 + $0x14] sm:$0xf] %v450
    %486 = vst [vmem:[%s481 + $0x18] sm:$0xff] %v451
    %487 = vst [vmem:[%s481 + $0x20] sm:$0xf] %v452
    %488 = vst [vmem:[%s481 + $0x24] sm:$0xff] %v453
    %489 = vst [vmem:[%s481 + $0x2c] sm:$0xf] %v454
    %490 = vst [vmem:[%s481 + $0x30] sm:$0xff] %v455
    %491 = vst [vmem:[%s481 + $0x38] sm:$0xf] %v456
    %492 = vst [vmem:[%s481 + $0x3c] sm:$0xff] %v457
    %493 = vst [vmem:[%s481 + $0x44] sm:$0xf] %v458
    %494 = vst [vmem:[%s481 + $0x48] sm:$0xff] %v459
    %495 = vst [vmem:[%s481 + $0x50] sm:$0xf] %v460
    %496 = vst [vmem:[%s481 + $0x54] sm:$0xff] %v461
    %497 = vst [vmem:[%s481 + $0x5c] sm:$0xf] %v462
    %v498 = vld [vmem:[#allocation2] sm:$0xff]
    %v499 = vld [vmem:[#allocation2 + $0x8] sm:$0xf]
    %v500 = vunpack.c.l.bf16 %v498
    %v501 = vunpack.c.h.bf16 %v498
    %v502 = vunpack.c.l.bf16 %v499
    %v504 = vlaneseq
    %v505 = vshrl.u32 %v504, 7
    %v506 = vsub.s32 0, %v505
    %v507 = vrot.slane %v145, %v506
    %v508 = vlaneseq
    %v509 = vshrl.u32 %v508, 7
    %v510 = vsub.s32 1, %v509
    %v511 = vrot.slane %v145, %v510
    %v512 = vlaneseq
    %v513 = vshrl.u32 %v512, 7
    %v514 = vsub.s32 2, %v513
    %v515 = vrot.slane %v145, %v514
    %v551 = vunpack.c.l.b16 %v113
    %v552 = vunpack.c.h.b16 %v113
    %v553 = vunpack.c.l.b16 %v114
    %v554 = vunpack.c.l.b16 %v115
    %v555 = vunpack.c.h.b16 %v115
    %v556 = vunpack.c.l.b16 %v116
    %v557 = vunpack.c.l.b16 %v117
    %v558 = vunpack.c.h.b16 %v117
    %v559 = vunpack.c.l.b16 %v118
    %v560 = vunpack.c.l.b16 %v119
    %v561 = vunpack.c.h.b16 %v119
    %v562 = vunpack.c.l.b16 %v120
    %v563 = vunpack.c.l.b16 %v121
    %v564 = vunpack.c.h.b16 %v121
    %v565 = vunpack.c.l.b16 %v122
    %v566 = vunpack.c.l.b16 %v123
    %v567 = vunpack.c.h.b16 %v123
    %v568 = vunpack.c.l.b16 %v124
    %v569 = vunpack.c.l.b16 %v125
    %v570 = vunpack.c.h.b16 %v125
    %v571 = vunpack.c.l.b16 %v126
    %v572 = vunpack.c.l.b16 %v127
    %v573 = vunpack.c.h.b16 %v127
    %v574 = vunpack.c.l.b16 %v128
    %v575 = vunpack.c.l.b16 %v129
    %v576 = vunpack.c.h.b16 %v129
    %v577 = vunpack.c.l.b16 %v130
    %v578 = vunpack.c.l.b16 %v131
    %v579 = vunpack.c.h.b16 %v131
    %v580 = vunpack.c.l.b16 %v132
    %v581 = vunpack.c.l.b16 %v133
    %v582 = vunpack.c.h.b16 %v133
    %v583 = vunpack.c.l.b16 %v134
    %v584 = vunpack.c.l.b16 %v135
    %v585 = vunpack.c.h.b16 %v135
    %v586 = vunpack.c.l.b16 %v136
    %v587 = vunpack.c.l.b16 %v137
    %v588 = vunpack.c.h.b16 %v137
    %v589 = vunpack.c.l.b16 %v138
    %v590 = vunpack.c.l.b16 %v139
    %v591 = vunpack.c.h.b16 %v139
    %v592 = vunpack.c.l.b16 %v140
    %v593 = vunpack.c.l.b16 %v141
    %v594 = vunpack.c.h.b16 %v141
    %v595 = vunpack.c.l.b16 %v142
    %v596 = vunpack.c.l.b16 %v143
    %v597 = vunpack.c.h.b16 %v143
    %v598 = vunpack.c.l.b16 %v144
    %v599 = vpack.c.b16 %v554, %v551
    %v600 = vpack.c.b16 %v555, %v552
    %v601 = vpack.c.b16 %v556, %v553
    %v602 = vpack.c.b16 %v560, %v557
    %v603 = vpack.c.b16 %v561, %v558
    %v604 = vpack.c.b16 %v562, %v559
    %v605 = vpack.c.b16 %v566, %v563
    %v606 = vpack.c.b16 %v567, %v564
    %v607 = vpack.c.b16 %v568, %v565
    %v608 = vpack.c.b16 %v572, %v569
    %v609 = vpack.c.b16 %v573, %v570
    %v610 = vpack.c.b16 %v574, %v571
    %v611 = vpack.c.b16 %v578, %v575
    %v612 = vpack.c.b16 %v579, %v576
    %v613 = vpack.c.b16 %v580, %v577
    %v614 = vpack.c.b16 %v584, %v581
    %v615 = vpack.c.b16 %v585, %v582
    %v616 = vpack.c.b16 %v586, %v583
    %v617 = vpack.c.b16 %v590, %v587
    %v618 = vpack.c.b16 %v591, %v588
    %v619 = vpack.c.b16 %v592, %v589
    %v620 = vpack.c.b16 %v596, %v593
    %v621 = vpack.c.b16 %v597, %v594
    %v622 = vpack.c.b16 %v598, %v595
    %647 = vmatprep.subr.bf16.mxu0 %v621
    %648 = vmatpush1.bf16.msra.mxu0 %v620
    %649 = vmatprep.subr.bf16.mxu0 %v618
    %650 = vmatpush1.bf16.msra.mxu0 %v617
    %651 = vmatprep.subr.bf16.mxu0 %v615
    %652 = vmatpush1.bf16.msra.mxu0 %v614
    %653 = vmatprep.subr.bf16.mxu0 %v612
    %654 = vmatpush1.bf16.msra.mxu0 %v611
    %655 = vmatprep.subr.bf16.mxu0 %v609
    %656 = vmatpush1.bf16.msra.mxu0 %v608
    %657 = vmatprep.subr.bf16.mxu0 %v606
    %658 = vmatpush1.bf16.msra.mxu0 %v605
    %659 = vmatprep.subr.bf16.mxu0 %v603
    %660 = vmatpush1.bf16.msra.mxu0 %v602
    %661 = vmatprep.subr.bf16.mxu0 %v600
    %662 = vmatpush1.bf16.msra.mxu0 %v599
    %663 = vmatprep.subr.bf16.mxu0 0
    %664 = vmatpush2.bf16.msra.mxu0 0
    %665 = vmatprep.subr.bf16.mxu0 0
    %666 = vmatpush2.bf16.msra.mxu0 0
    %667 = vmatprep.subr.bf16.mxu0 0
    %668 = vmatpush2.bf16.msra.mxu0 0
    %669 = vmatprep.subr.bf16.mxu0 0
    %670 = vmatpush2.bf16.msra.mxu0 0
    %671 = vmatprep.subr.bf16.mxu0 0
    %672 = vmatpush2.bf16.msra.mxu0 0
    %673 = vmatprep.subr.bf16.mxu0 0
    %674 = vmatpush2.bf16.msra.mxu0 0
    %675 = vmatprep.subr.bf16.mxu0 0
    %676 = vmatpush2.bf16.msra.mxu0 0
    %677 = vmatprep.subr.bf16.mxu0 0
    %678 = vmatpush2.bf16.msra.mxu0 0
    %679 = vmatprep.mubr.bf16.mxu0 0
    %680 = vmatmul.mubr.bf16.gmra.mxu0 0
    %v681 = vpop.f32.mrf.mxu0
    %v682 = vadd.f32 %v507, %v681
    %v683 = vpop.f32.mrf.mxu0
    %v684 = vadd.f32 %v511, %v683
    %v685 = vpop.f32.mrf.mxu0
    %v686 = vpop.f32.mrf.mxu0
    %687 = vdwg.mxu0
    %688 = vmatprep.subr.bf16.mxu0 0
    %689 = vmatpush1.bf16.msra.mxu0 %v622
    %690 = vmatprep.subr.bf16.mxu0 0
    %691 = vmatpush1.bf16.msra.mxu0 %v619
    %692 = vmatprep.subr.bf16.mxu0 0
    %693 = vmatpush1.bf16.msra.mxu0 %v616
    %694 = vmatprep.subr.bf16.mxu0 0
    %695 = vmatpush1.bf16.msra.mxu0 %v613
    %696 = vmatprep.subr.bf16.mxu0 0
    %697 = vmatpush1.bf16.msra.mxu0 %v610
    %698 = vmatprep.subr.bf16.mxu0 0
    %699 = vmatpush1.bf16.msra.mxu0 %v607
    %700 = vmatprep.subr.bf16.mxu0 0
    %701 = vmatpush1.bf16.msra.mxu0 %v604
    %702 = vmatprep.subr.bf16.mxu0 0
    %703 = vmatpush1.bf16.msra.mxu0 %v601
    %704 = vmatprep.subr.bf16.mxu0 0
    %705 = vmatpush2.bf16.msra.mxu0 0
    %706 = vmatprep.subr.bf16.mxu0 0
    %707 = vmatpush2.bf16.msra.mxu0 0
    %708 = vmatprep.subr.bf16.mxu0 0
    %709 = vmatpush2.bf16.msra.mxu0 0
    %710 = vmatprep.subr.bf16.mxu0 0
    %711 = vmatpush2.bf16.msra.mxu0 0
    %712 = vmatprep.subr.bf16.mxu0 0
    %713 = vmatpush2.bf16.msra.mxu0 0
    %714 = vmatprep.subr.bf16.mxu0 0
    %715 = vmatpush2.bf16.msra.mxu0 0
    %716 = vmatprep.subr.bf16.mxu0 0
    %717 = vmatpush2.bf16.msra.mxu0 0
    %718 = vmatprep.subr.bf16.mxu0 0
    %719 = vmatpush2.bf16.msra.mxu0 0
    %720 = vmatprep.mubr.bf16.mxu0 0
    %721 = vmatmul.mubr.bf16.gmra.mxu0 0
    %v722 = vpop.f32.mrf.mxu0
    %v723 = vadd.f32 %v515, %v722
    %v724 = vpop.f32.mrf.mxu0
    %v725 = vpop.f32.mrf.mxu0
    %v726 = vpop.f32.mrf.mxu0
    %727 = vdwg.mxu0
    %v728 = vadd.f32 %v500, %v682
    %v729 = vxor.u32 %v728, 2147483648
    %v730 = vmul.f32 %v729, 1.442695
    %v731 = vpow.pop %v730
    %v732 = vadd.f32 %v731, 1.0
    %v733 = vrcp.pop %v732
    %v734 = vmul.f32 1.0, %v733
    %v735 = vadd.f32 %v501, %v684
    %v736 = vxor.u32 %v735, 2147483648
    %v737 = vmul.f32 %v736, 1.442695
    %v738 = vpow.pop %v737
    %v739 = vadd.f32 %v738, 1.0
    %v740 = vrcp.pop %v739
    %v741 = vmul.f32 1.0, %v740
    %v742 = vmul.f32 %v734, %v723
    %v743 = vadd.f32 %v502, %v742
    %v744 = vtanh.pop %v743
    %v745 = vsub.f32 1.0, %v741
    %v746 = vmul.f32 %v745, %v744
    %v747 = vmul.f32 %v741, 0.0
    %v748 = vadd.f32 %v746, %v747
    %v749 = vpack.c.bf16 %v748, %v748
    %750 = vst [vmem:[#allocation3] sm:$0xf] %v749
    %s751 = scalar_lea.vmem [#allocation2], 12
    %v752 = vld [vmem:[%s751] sm:$0xff]
    %v753 = vld [vmem:[%s751 + $0x8] sm:$0xf]
    %v754 = vunpack.c.l.bf16 %v752
    %v755 = vunpack.c.h.bf16 %v752
    %v756 = vunpack.c.l.bf16 %v753
    %757 = vmatprep.subr.bf16.mxu0 %v621
    %758 = vmatpush1.bf16.msra.mxu0 %v620
    %759 = vmatprep.subr.bf16.mxu0 %v618
    %760 = vmatpush1.bf16.msra.mxu0 %v617
    %761 = vmatprep.subr.bf16.mxu0 %v615
    %762 = vmatpush1.bf16.msra.mxu0 %v614
    %763 = vmatprep.subr.bf16.mxu0 %v612
    %764 = vmatpush1.bf16.msra.mxu0 %v611
    %765 = vmatprep.subr.bf16.mxu0 %v609
    %766 = vmatpush1.bf16.msra.mxu0 %v608
    %767 = vmatprep.subr.bf16.mxu0 %v606
    %768 = vmatpush1.bf16.msra.mxu0 %v605
    %769 = vmatprep.subr.bf16.mxu0 %v603
    %770 = vmatpush1.bf16.msra.mxu0 %v602
    %771 = vmatprep.subr.bf16.mxu0 %v600
    %772 = vmatpush1.bf16.msra.mxu0 %v599
    %773 = vmatprep.subr.bf16.mxu0 0
    %774 = vmatpush2.bf16.msra.mxu0 0
    %775 = vmatprep.subr.bf16.mxu0 0
    %776 = vmatpush2.bf16.msra.mxu0 0
    %777 = vmatprep.subr.bf16.mxu0 0
    %778 = vmatpush2.bf16.msra.mxu0 0
    %779 = vmatprep.subr.bf16.mxu0 0
    %780 = vmatpush2.bf16.msra.mxu0 0
    %781 = vmatprep.subr.bf16.mxu0 0
    %782 = vmatpush2.bf16.msra.mxu0 0
    %783 = vmatprep.subr.bf16.mxu0 0
    %784 = vmatpush2.bf16.msra.mxu0 0
    %785 = vmatprep.subr.bf16.mxu0 0
    %786 = vmatpush2.bf16.msra.mxu0 0
    %787 = vmatprep.subr.bf16.mxu0 0
    %788 = vmatpush2.bf16.msra.mxu0 0
    %789 = vmatprep.mubr.bf16.mxu0 0
    %790 = vmatmul.mubr.bf16.gmra.mxu0 %v749
    %v791 = vpop.f32.mrf.mxu0
    %v792 = vadd.f32 %v507, %v791
    %v793 = vpop.f32.mrf.mxu0
    %v794 = vadd.f32 %v511, %v793
    %v795 = vpop.f32.mrf.mxu0
    %v796 = vpop.f32.mrf.mxu0
    %797 = vdwg.mxu0
    %798 = vmatprep.subr.bf16.mxu0 0
    %799 = vmatpush1.bf16.msra.mxu0 %v622
    %800 = vmatprep.subr.bf16.mxu0 0
    %801 = vmatpush1.bf16.msra.mxu0 %v619
    %802 = vmatprep.subr.bf16.mxu0 0
    %803 = vmatpush1.bf16.msra.mxu0 %v616
    %804 = vmatprep.subr.bf16.mxu0 0
    %805 = vmatpush1.bf16.msra.mxu0 %v613
    %806 = vmatprep.subr.bf16.mxu0 0
    %807 = vmatpush1.bf16.msra.mxu0 %v610
    %808 = vmatprep.subr.bf16.mxu0 0
    %809 = vmatpush1.bf16.msra.mxu0 %v607
    %810 = vmatprep.subr.bf16.mxu0 0
    %811 = vmatpush1.bf16.msra.mxu0 %v604
    %812 = vmatprep.subr.bf16.mxu0 0
    %813 = vmatpush1.bf16.msra.mxu0 %v601
    %814 = vmatprep.subr.bf16.mxu0 0
    %815 = vmatpush2.bf16.msra.mxu0 0
    %816 = vmatprep.subr.bf16.mxu0 0
    %817 = vmatpush2.bf16.msra.mxu0 0
    %818 = vmatprep.subr.bf16.mxu0 0
    %819 = vmatpush2.bf16.msra.mxu0 0
    %820 = vmatprep.subr.bf16.mxu0 0
    %821 = vmatpush2.bf16.msra.mxu0 0
    %822 = vmatprep.subr.bf16.mxu0 0
    %823 = vmatpush2.bf16.msra.mxu0 0
    %824 = vmatprep.subr.bf16.mxu0 0
    %825 = vmatpush2.bf16.msra.mxu0 0
    %826 = vmatprep.subr.bf16.mxu0 0
    %827 = vmatpush2.bf16.msra.mxu0 0
    %828 = vmatprep.subr.bf16.mxu0 0
    %829 = vmatpush2.bf16.msra.mxu0 0
    %830 = vmatprep.mubr.bf16.mxu0 0
    %831 = vmatmul.mubr.bf16.gmra.mxu0 %v749
    %v832 = vpop.f32.mrf.mxu0
    %v833 = vadd.f32 %v515, %v832
    %v834 = vpop.f32.mrf.mxu0
    %v835 = vpop.f32.mrf.mxu0
    %v836 = vpop.f32.mrf.mxu0
    %837 = vdwg.mxu0
    %v838 = vadd.f32 %v754, %v792
    %v839 = vxor.u32 %v838, 2147483648
    %v840 = vmul.f32 %v839, 1.442695
    %v841 = vpow.pop %v840
    %v842 = vadd.f32 %v841, 1.0
    %v843 = vrcp.pop %v842
    %v844 = vmul.f32 1.0, %v843
    %v845 = vadd.f32 %v755, %v794
    %v846 = vxor.u32 %v845, 2147483648
    %v847 = vmul.f32 %v846, 1.442695
    %v848 = vpow.pop %v847
    %v849 = vadd.f32 %v848, 1.0
    %v850 = vrcp.pop %v849
    %v851 = vmul.f32 1.0, %v850
    %v852 = vmul.f32 %v844, %v833
    %v853 = vadd.f32 %v756, %v852
    %v854 = vtanh.pop %v853
    %v855 = vsub.f32 1.0, %v851
    %v856 = vmul.f32 %v855, %v854
    %v857 = vmul.f32 %v851, %v748
    %v858 = vadd.f32 %v856, %v857
    %v859 = vpack.c.bf16 %v858, %v858
    %s860 = scalar_lea.vmem [#allocation3], 4
    %861 = vst [vmem:[%s860] sm:$0xf] %v859
    %s862 = scalar_lea.vmem [#allocation2], 24
    %v863 = vld [vmem:[%s862] sm:$0xff]
    %v864 = vld [vmem:[%s862 + $0x8] sm:$0xf]
    %v865 = vunpack.c.l.bf16 %v863
    %v866 = vunpack.c.h.bf16 %v863
    %v867 = vunpack.c.l.bf16 %v864
    %868 = vmatprep.subr.bf16.mxu0 %v621
    %869 = vmatpush1.bf16.msra.mxu0 %v620
    %870 = vmatprep.subr.bf16.mxu0 %v618
    %871 = vmatpush1.bf16.msra.mxu0 %v617
    %872 = vmatprep.subr.bf16.mxu0 %v615
    %873 = vmatpush1.bf16.msra.mxu0 %v614
    %874 = vmatprep.subr.bf16.mxu0 %v612
    %875 = vmatpush1.bf16.msra.mxu0 %v611
    %876 = vmatprep.subr.bf16.mxu0 %v609
    %877 = vmatpush1.bf16.msra.mxu0 %v608
    %878 = vmatprep.subr.bf16.mxu0 %v606
    %879 = vmatpush1.bf16.msra.mxu0 %v605
    %880 = vmatprep.subr.bf16.mxu0 %v603
    %881 = vmatpush1.bf16.msra.mxu0 %v602
    %882 = vmatprep.subr.bf16.mxu0 %v600
    %883 = vmatpush1.bf16.msra.mxu0 %v599
    %884 = vmatprep.subr.bf16.mxu0 0
    %885 = vmatpush2.bf16.msra.mxu0 0
    %886 = vmatprep.subr.bf16.mxu0 0
    %887 = vmatpush2.bf16.msra.mxu0 0
    %888 = vmatprep.subr.bf16.mxu0 0
    %889 = vmatpush2.bf16.msra.mxu0 0
    %890 = vmatprep.subr.bf16.mxu0 0
    %891 = vmatpush2.bf16.msra.mxu0 0
    %892 = vmatprep.subr.bf16.mxu0 0
    %893 = vmatpush2.bf16.msra.mxu0 0
    %894 = vmatprep.subr.bf16.mxu0 0
    %895 = vmatpush2.bf16.msra.mxu0 0
    %896 = vmatprep.subr.bf16.mxu0 0
    %897 = vmatpush2.bf16.msra.mxu0 0
    %898 = vmatprep.subr.bf16.mxu0 0
    %899 = vmatpush2.bf16.msra.mxu0 0
    %900 = vmatprep.mubr.bf16.mxu0 0
    %901 = vmatmul.mubr.bf16.gmra.mxu0 %v859
    %v902 = vpop.f32.mrf.mxu0
    %v903 = vadd.f32 %v507, %v902
    %v904 = vpop.f32.mrf.mxu0
    %v905 = vadd.f32 %v511, %v904
    %v906 = vpop.f32.mrf.mxu0
    %v907 = vpop.f32.mrf.mxu0
    %908 = vdwg.mxu0
    %909 = vmatprep.subr.bf16.mxu0 0
    %910 = vmatpush1.bf16.msra.mxu0 %v622
    %911 = vmatprep.subr.bf16.mxu0 0
    %912 = vmatpush1.bf16.msra.mxu0 %v619
    %913 = vmatprep.subr.bf16.mxu0 0
    %914 = vmatpush1.bf16.msra.mxu0 %v616
    %915 = vmatprep.subr.bf16.mxu0 0
    %916 = vmatpush1.bf16.msra.mxu0 %v613
    %917 = vmatprep.subr.bf16.mxu0 0
    %918 = vmatpush1.bf16.msra.mxu0 %v610
    %919 = vmatprep.subr.bf16.mxu0 0
    %920 = vmatpush1.bf16.msra.mxu0 %v607
    %921 = vmatprep.subr.bf16.mxu0 0
    %922 = vmatpush1.bf16.msra.mxu0 %v604
    %923 = vmatprep.subr.bf16.mxu0 0
    %924 = vmatpush1.bf16.msra.mxu0 %v601
    %925 = vmatprep.subr.bf16.mxu0 0
    %926 = vmatpush2.bf16.msra.mxu0 0
    %927 = vmatprep.subr.bf16.mxu0 0
    %928 = vmatpush2.bf16.msra.mxu0 0
    %929 = vmatprep.subr.bf16.mxu0 0
    %930 = vmatpush2.bf16.msra.mxu0 0
    %931 = vmatprep.subr.bf16.mxu0 0
    %932 = vmatpush2.bf16.msra.mxu0 0
    %933 = vmatprep.subr.bf16.mxu0 0
    %934 = vmatpush2.bf16.msra.mxu0 0
    %935 = vmatprep.subr.bf16.mxu0 0
    %936 = vmatpush2.bf16.msra.mxu0 0
    %937 = vmatprep.subr.bf16.mxu0 0
    %938 = vmatpush2.bf16.msra.mxu0 0
    %939 = vmatprep.subr.bf16.mxu0 0
    %940 = vmatpush2.bf16.msra.mxu0 0
    %941 = vmatprep.mubr.bf16.mxu0 0
    %942 = vmatmul.mubr.bf16.gmra.mxu0 %v859
    %v943 = vpop.f32.mrf.mxu0
    %v944 = vadd.f32 %v515, %v943
    %v945 = vpop.f32.mrf.mxu0
    %v946 = vpop.f32.mrf.mxu0
    %v947 = vpop.f32.mrf.mxu0
    %948 = vdwg.mxu0
    %v949 = vadd.f32 %v865, %v903
    %v950 = vxor.u32 %v949, 2147483648
    %v951 = vmul.f32 %v950, 1.442695
    %v952 = vpow.pop %v951
    %v953 = vadd.f32 %v952, 1.0
    %v954 = vrcp.pop %v953
    %v955 = vmul.f32 1.0, %v954
    %v956 = vadd.f32 %v866, %v905
    %v957 = vxor.u32 %v956, 2147483648
    %v958 = vmul.f32 %v957, 1.442695
    %v959 = vpow.pop %v958
    %v960 = vadd.f32 %v959, 1.0
    %v961 = vrcp.pop %v960
    %v962 = vmul.f32 1.0, %v961
    %v963 = vmul.f32 %v955, %v944
    %v964 = vadd.f32 %v867, %v963
    %v965 = vtanh.pop %v964
    %v966 = vsub.f32 1.0, %v962
    %v967 = vmul.f32 %v966, %v965
    %v968 = vmul.f32 %v962, %v858
    %v969 = vadd.f32 %v967, %v968
    %v970 = vpack.c.bf16 %v969, %v969
    %s971 = scalar_lea.vmem [#allocation3], 8
    %972 = vst [vmem:[%s971] sm:$0xf] %v970
    %s973 = scalar_lea.vmem [#allocation2], 36
    %v974 = vld [vmem:[%s973] sm:$0xff]
    %v975 = vld [vmem:[%s973 + $0x8] sm:$0xf]
    %v976 = vunpack.c.l.bf16 %v974
    %v977 = vunpack.c.h.bf16 %v974
    %v978 = vunpack.c.l.bf16 %v975
    %979 = vmatprep.subr.bf16.mxu0 %v621
    %980 = vmatpush1.bf16.msra.mxu0 %v620
    %981 = vmatprep.subr.bf16.mxu0 %v618
    %982 = vmatpush1.bf16.msra.mxu0 %v617
    %983 = vmatprep.subr.bf16.mxu0 %v615
    %984 = vmatpush1.bf16.msra.mxu0 %v614
    %985 = vmatprep.subr.bf16.mxu0 %v612
    %986 = vmatpush1.bf16.msra.mxu0 %v611
    %987 = vmatprep.subr.bf16.mxu0 %v609
    %988 = vmatpush1.bf16.msra.mxu0 %v608
    %989 = vmatprep.subr.bf16.mxu0 %v606
    %990 = vmatpush1.bf16.msra.mxu0 %v605
    %991 = vmatprep.subr.bf16.mxu0 %v603
    %992 = vmatpush1.bf16.msra.mxu0 %v602
    %993 = vmatprep.subr.bf16.mxu0 %v600
    %994 = vmatpush1.bf16.msra.mxu0 %v599
    %995 = vmatprep.subr.bf16.mxu0 0
    %996 = vmatpush2.bf16.msra.mxu0 0
    %997 = vmatprep.subr.bf16.mxu0 0
    %998 = vmatpush2.bf16.msra.mxu0 0
    %999 = vmatprep.subr.bf16.mxu0 0
    %1000 = vmatpush2.bf16.msra.mxu0 0
    %1001 = vmatprep.subr.bf16.mxu0 0
    %1002 = vmatpush2.bf16.msra.mxu0 0
    %1003 = vmatprep.subr.bf16.mxu0 0
    %1004 = vmatpush2.bf16.msra.mxu0 0
    %1005 = vmatprep.subr.bf16.mxu0 0
    %1006 = vmatpush2.bf16.msra.mxu0 0
    %1007 = vmatprep.subr.bf16.mxu0 0
    %1008 = vmatpush2.bf16.msra.mxu0 0
    %1009 = vmatprep.subr.bf16.mxu0 0
    %1010 = vmatpush2.bf16.msra.mxu0 0
    %1011 = vmatprep.mubr.bf16.mxu0 0
    %1012 = vmatmul.mubr.bf16.gmra.mxu0 %v970
    %v1013 = vpop.f32.mrf.mxu0
    %v1014 = vadd.f32 %v507, %v1013
    %v1015 = vpop.f32.mrf.mxu0
    %v1016 = vadd.f32 %v511, %v1015
    %v1017 = vpop.f32.mrf.mxu0
    %v1018 = vpop.f32.mrf.mxu0
    %1019 = vdwg.mxu0
    %1020 = vmatprep.subr.bf16.mxu0 0
    %1021 = vmatpush1.bf16.msra.mxu0 %v622
    %1022 = vmatprep.subr.bf16.mxu0 0
    %1023 = vmatpush1.bf16.msra.mxu0 %v619
    %1024 = vmatprep.subr.bf16.mxu0 0
    %1025 = vmatpush1.bf16.msra.mxu0 %v616
    %1026 = vmatprep.subr.bf16.mxu0 0
    %1027 = vmatpush1.bf16.msra.mxu0 %v613
    %1028 = vmatprep.subr.bf16.mxu0 0
    %1029 = vmatpush1.bf16.msra.mxu0 %v610
    %1030 = vmatprep.subr.bf16.mxu0 0
    %1031 = vmatpush1.bf16.msra.mxu0 %v607
    %1032 = vmatprep.subr.bf16.mxu0 0
    %1033 = vmatpush1.bf16.msra.mxu0 %v604
    %1034 = vmatprep.subr.bf16.mxu0 0
    %1035 = vmatpush1.bf16.msra.mxu0 %v601
    %1036 = vmatprep.subr.bf16.mxu0 0
    %1037 = vmatpush2.bf16.msra.mxu0 0
    %1038 = vmatprep.subr.bf16.mxu0 0
    %1039 = vmatpush2.bf16.msra.mxu0 0
    %1040 = vmatprep.subr.bf16.mxu0 0
    %1041 = vmatpush2.bf16.msra.mxu0 0
    %1042 = vmatprep.subr.bf16.mxu0 0
    %1043 = vmatpush2.bf16.msra.mxu0 0
    %1044 = vmatprep.subr.bf16.mxu0 0
    %1045 = vmatpush2.bf16.msra.mxu0 0
    %1046 = vmatprep.subr.bf16.mxu0 0
    %1047 = vmatpush2.bf16.msra.mxu0 0
    %1048 = vmatprep.subr.bf16.mxu0 0
    %1049 = vmatpush2.bf16.msra.mxu0 0
    %1050 = vmatprep.subr.bf16.mxu0 0
    %1051 = vmatpush2.bf16.msra.mxu0 0
    %1052 = vmatprep.mubr.bf16.mxu0 0
    %1053 = vmatmul.mubr.bf16.gmra.mxu0 %v970
    %v1054 = vpop.f32.mrf.mxu0
    %v1055 = vadd.f32 %v515, %v1054
    %v1056 = vpop.f32.mrf.mxu0
    %v1057 = vpop.f32.mrf.mxu0
    %v1058 = vpop.f32.mrf.mxu0
    %1059 = vdwg.mxu0
    %v1060 = vadd.f32 %v976, %v1014
    %v1061 = vxor.u32 %v1060, 2147483648
    %v1062 = vmul.f32 %v1061, 1.442695
    %v1063 = vpow.pop %v1062
    %v1064 = vadd.f32 %v1063, 1.0
    %v1065 = vrcp.pop %v1064
    %v1066 = vmul.f32 1.0, %v1065
    %v1067 = vadd.f32 %v977, %v1016
    %v1068 = vxor.u32 %v1067, 2147483648
    %v1069 = vmul.f32 %v1068, 1.442695
    %v1070 = vpow.pop %v1069
    %v1071 = vadd.f32 %v1070, 1.0
    %v1072 = vrcp.pop %v1071
    %v1073 = vmul.f32 1.0, %v1072
    %v1074 = vmul.f32 %v1066, %v1055
    %v1075 = vadd.f32 %v978, %v1074
    %v1076 = vtanh.pop %v1075
    %v1077 = vsub.f32 1.0, %v1073
    %v1078 = vmul.f32 %v1077, %v1076
    %v1079 = vmul.f32 %v1073, %v969
    %v1080 = vadd.f32 %v1078, %v1079
    %v1081 = vpack.c.bf16 %v1080, %v1080
    %s1082 = scalar_lea.vmem [#allocation3], 12
    %1083 = vst [vmem:[%s1082] sm:$0xf] %v1081
    %s1084 = scalar_lea.vmem [#allocation2], 48
    %v1085 = vld [vmem:[%s1084] sm:$0xff]
    %v1086 = vld [vmem:[%s1084 + $0x8] sm:$0xf]
    %v1087 = vunpack.c.l.bf16 %v1085
    %v1088 = vunpack.c.h.bf16 %v1085
    %v1089 = vunpack.c.l.bf16 %v1086
    %1090 = vmatprep.subr.bf16.mxu0 %v621
    %1091 = vmatpush1.bf16.msra.mxu0 %v620
    %1092 = vmatprep.subr.bf16.mxu0 %v618
    %1093 = vmatpush1.bf16.msra.mxu0 %v617
    %1094 = vmatprep.subr.bf16.mxu0 %v615
    %1095 = vmatpush1.bf16.msra.mxu0 %v614
    %1096 = vmatprep.subr.bf16.mxu0 %v612
    %1097 = vmatpush1.bf16.msra.mxu0 %v611
    %1098 = vmatprep.subr.bf16.mxu0 %v609
    %1099 = vmatpush1.bf16.msra.mxu0 %v608
    %1100 = vmatprep.subr.bf16.mxu0 %v606
    %1101 = vmatpush1.bf16.msra.mxu0 %v605
    %1102 = vmatprep.subr.bf16.mxu0 %v603
    %1103 = vmatpush1.bf16.msra.mxu0 %v602
    %1104 = vmatprep.subr.bf16.mxu0 %v600
    %1105 = vmatpush1.bf16.msra.mxu0 %v599
    %1106 = vmatprep.subr.bf16.mxu0 0
    %1107 = vmatpush2.bf16.msra.mxu0 0
    %1108 = vmatprep.subr.bf16.mxu0 0
    %1109 = vmatpush2.bf16.msra.mxu0 0
    %1110 = vmatprep.subr.bf16.mxu0 0
    %1111 = vmatpush2.bf16.msra.mxu0 0
    %1112 = vmatprep.subr.bf16.mxu0 0
    %1113 = vmatpush2.bf16.msra.mxu0 0
    %1114 = vmatprep.subr.bf16.mxu0 0
    %1115 = vmatpush2.bf16.msra.mxu0 0
    %1116 = vmatprep.subr.bf16.mxu0 0
    %1117 = vmatpush2.bf16.msra.mxu0 0
    %1118 = vmatprep.subr.bf16.mxu0 0
    %1119 = vmatpush2.bf16.msra.mxu0 0
    %1120 = vmatprep.subr.bf16.mxu0 0
    %1121 = vmatpush2.bf16.msra.mxu0 0
    %1122 = vmatprep.mubr.bf16.mxu0 0
    %1123 = vmatmul.mubr.bf16.gmra.mxu0 %v1081
    %v1124 = vpop.f32.mrf.mxu0
    %v1125 = vadd.f32 %v507, %v1124
    %v1126 = vpop.f32.mrf.mxu0
    %v1127 = vadd.f32 %v511, %v1126
    %v1128 = vpop.f32.mrf.mxu0
    %v1129 = vpop.f32.mrf.mxu0
    %1130 = vdwg.mxu0
    %1131 = vmatprep.subr.bf16.mxu0 0
    %1132 = vmatpush1.bf16.msra.mxu0 %v622
    %1133 = vmatprep.subr.bf16.mxu0 0
    %1134 = vmatpush1.bf16.msra.mxu0 %v619
    %1135 = vmatprep.subr.bf16.mxu0 0
    %1136 = vmatpush1.bf16.msra.mxu0 %v616
    %1137 = vmatprep.subr.bf16.mxu0 0
    %1138 = vmatpush1.bf16.msra.mxu0 %v613
    %1139 = vmatprep.subr.bf16.mxu0 0
    %1140 = vmatpush1.bf16.msra.mxu0 %v610
    %1141 = vmatprep.subr.bf16.mxu0 0
    %1142 = vmatpush1.bf16.msra.mxu0 %v607
    %1143 = vmatprep.subr.bf16.mxu0 0
    %1144 = vmatpush1.bf16.msra.mxu0 %v604
    %1145 = vmatprep.subr.bf16.mxu0 0
    %1146 = vmatpush1.bf16.msra.mxu0 %v601
    %1147 = vmatprep.subr.bf16.mxu0 0
    %1148 = vmatpush2.bf16.msra.mxu0 0
    %1149 = vmatprep.subr.bf16.mxu0 0
    %1150 = vmatpush2.bf16.msra.mxu0 0
    %1151 = vmatprep.subr.bf16.mxu0 0
    %1152 = vmatpush2.bf16.msra.mxu0 0
    %1153 = vmatprep.subr.bf16.mxu0 0
    %1154 = vmatpush2.bf16.msra.mxu0 0
    %1155 = vmatprep.subr.bf16.mxu0 0
    %1156 = vmatpush2.bf16.msra.mxu0 0
    %1157 = vmatprep.subr.bf16.mxu0 0
    %1158 = vmatpush2.bf16.msra.mxu0 0
    %1159 = vmatprep.subr.bf16.mxu0 0
    %1160 = vmatpush2.bf16.msra.mxu0 0
    %1161 = vmatprep.subr.bf16.mxu0 0
    %1162 = vmatpush2.bf16.msra.mxu0 0
    %1163 = vmatprep.mubr.bf16.mxu0 0
    %1164 = vmatmul.mubr.bf16.gmra.mxu0 %v1081
    %v1165 = vpop.f32.mrf.mxu0
    %v1166 = vadd.f32 %v515, %v1165
    %v1167 = vpop.f32.mrf.mxu0
    %v1168 = vpop.f32.mrf.mxu0
    %v1169 = vpop.f32.mrf.mxu0
    %1170 = vdwg.mxu0
    %v1171 = vadd.f32 %v1087, %v1125
    %v1172 = vxor.u32 %v1171, 2147483648
    %v1173 = vmul.f32 %v1172, 1.442695
    %v1174 = vpow.pop %v1173
    %v1175 = vadd.f32 %v1174, 1.0
    %v1176 = vrcp.pop %v1175
    %v1177 = vmul.f32 1.0, %v1176
    %v1178 = vadd.f32 %v1088, %v1127
    %v1179 = vxor.u32 %v1178, 2147483648
    %v1180 = vmul.f32 %v1179, 1.442695
    %v1181 = vpow.pop %v1180
    %v1182 = vadd.f32 %v1181, 1.0
    %v1183 = vrcp.pop %v1182
    %v1184 = vmul.f32 1.0, %v1183
    %v1185 = vmul.f32 %v1177, %v1166
    %v1186 = vadd.f32 %v1089, %v1185
    %v1187 = vtanh.pop %v1186
    %v1188 = vsub.f32 1.0, %v1184
    %v1189 = vmul.f32 %v1188, %v1187
    %v1190 = vmul.f32 %v1184, %v1080
    %v1191 = vadd.f32 %v1189, %v1190
    %v1192 = vpack.c.bf16 %v1191, %v1191
    %s1193 = scalar_lea.vmem [#allocation3], 16
    %1194 = vst [vmem:[%s1193] sm:$0xf] %v1192
    %s1195 = scalar_lea.vmem [#allocation2], 60
    %v1196 = vld [vmem:[%s1195] sm:$0xff]
    %v1197 = vld [vmem:[%s1195 + $0x8] sm:$0xf]
    %v1198 = vunpack.c.l.bf16 %v1196
    %v1199 = vunpack.c.h.bf16 %v1196
    %v1200 = vunpack.c.l.bf16 %v1197
    %1201 = vmatprep.subr.bf16.mxu0 %v621
    %1202 = vmatpush1.bf16.msra.mxu0 %v620
    %1203 = vmatprep.subr.bf16.mxu0 %v618
    %1204 = vmatpush1.bf16.msra.mxu0 %v617
    %1205 = vmatprep.subr.bf16.mxu0 %v615
    %1206 = vmatpush1.bf16.msra.mxu0 %v614
    %1207 = vmatprep.subr.bf16.mxu0 %v612
    %1208 = vmatpush1.bf16.msra.mxu0 %v611
    %1209 = vmatprep.subr.bf16.mxu0 %v609
    %1210 = vmatpush1.bf16.msra.mxu0 %v608
    %1211 = vmatprep.subr.bf16.mxu0 %v606
    %1212 = vmatpush1.bf16.msra.mxu0 %v605
    %1213 = vmatprep.subr.bf16.mxu0 %v603
    %1214 = vmatpush1.bf16.msra.mxu0 %v602
    %1215 = vmatprep.subr.bf16.mxu0 %v600
    %1216 = vmatpush1.bf16.msra.mxu0 %v599
    %1217 = vmatprep.subr.bf16.mxu0 0
    %1218 = vmatpush2.bf16.msra.mxu0 0
    %1219 = vmatprep.subr.bf16.mxu0 0
    %1220 = vmatpush2.bf16.msra.mxu0 0
    %1221 = vmatprep.subr.bf16.mxu0 0
    %1222 = vmatpush2.bf16.msra.mxu0 0
    %1223 = vmatprep.subr.bf16.mxu0 0
    %1224 = vmatpush2.bf16.msra.mxu0 0
    %1225 = vmatprep.subr.bf16.mxu0 0
    %1226 = vmatpush2.bf16.msra.mxu0 0
    %1227 = vmatprep.subr.bf16.mxu0 0
    %1228 = vmatpush2.bf16.msra.mxu0 0
    %1229 = vmatprep.subr.bf16.mxu0 0
    %1230 = vmatpush2.bf16.msra.mxu0 0
    %1231 = vmatprep.subr.bf16.mxu0 0
    %1232 = vmatpush2.bf16.msra.mxu0 0
    %1233 = vmatprep.mubr.bf16.mxu0 0
    %1234 = vmatmul.mubr.bf16.gmra.mxu0 %v1192
    %v1235 = vpop.f32.mrf.mxu0
    %v1236 = vadd.f32 %v507, %v1235
    %v1237 = vpop.f32.mrf.mxu0
    %v1238 = vadd.f32 %v511, %v1237
    %v1239 = vpop.f32.mrf.mxu0
    %v1240 = vpop.f32.mrf.mxu0
    %1241 = vdwg.mxu0
    %1242 = vmatprep.subr.bf16.mxu0 0
    %1243 = vmatpush1.bf16.msra.mxu0 %v622
    %1244 = vmatprep.subr.bf16.mxu0 0
    %1245 = vmatpush1.bf16.msra.mxu0 %v619
    %1246 = vmatprep.subr.bf16.mxu0 0
    %1247 = vmatpush1.bf16.msra.mxu0 %v616
    %1248 = vmatprep.subr.bf16.mxu0 0
    %1249 = vmatpush1.bf16.msra.mxu0 %v613
    %1250 = vmatprep.subr.bf16.mxu0 0
    %1251 = vmatpush1.bf16.msra.mxu0 %v610
    %1252 = vmatprep.subr.bf16.mxu0 0
    %1253 = vmatpush1.bf16.msra.mxu0 %v607
    %1254 = vmatprep.subr.bf16.mxu0 0
    %1255 = vmatpush1.bf16.msra.mxu0 %v604
    %1256 = vmatprep.subr.bf16.mxu0 0
    %1257 = vmatpush1.bf16.msra.mxu0 %v601
    %1258 = vmatprep.subr.bf16.mxu0 0
    %1259 = vmatpush2.bf16.msra.mxu0 0
    %1260 = vmatprep.subr.bf16.mxu0 0
    %1261 = vmatpush2.bf16.msra.mxu0 0
    %1262 = vmatprep.subr.bf16.mxu0 0
    %1263 = vmatpush2.bf16.msra.mxu0 0
    %1264 = vmatprep.subr.bf16.mxu0 0
    %1265 = vmatpush2.bf16.msra.mxu0 0
    %1266 = vmatprep.subr.bf16.mxu0 0
    %1267 = vmatpush2.bf16.msra.mxu0 0
    %1268 = vmatprep.subr.bf16.mxu0 0
    %1269 = vmatpush2.bf16.msra.mxu0 0
    %1270 = vmatprep.subr.bf16.mxu0 0
    %1271 = vmatpush2.bf16.msra.mxu0 0
    %1272 = vmatprep.subr.bf16.mxu0 0
    %1273 = vmatpush2.bf16.msra.mxu0 0
    %1274 = vmatprep.mubr.bf16.mxu0 0
    %1275 = vmatmul.mubr.bf16.gmra.mxu0 %v1192
    %v1276 = vpop.f32.mrf.mxu0
    %v1277 = vadd.f32 %v515, %v1276
    %v1278 = vpop.f32.mrf.mxu0
    %v1279 = vpop.f32.mrf.mxu0
    %v1280 = vpop.f32.mrf.mxu0
    %1281 = vdwg.mxu0
    %v1282 = vadd.f32 %v1198, %v1236
    %v1283 = vxor.u32 %v1282, 2147483648
    %v1284 = vmul.f32 %v1283, 1.442695
    %v1285 = vpow.pop %v1284
    %v1286 = vadd.f32 %v1285, 1.0
    %v1287 = vrcp.pop %v1286
    %v1288 = vmul.f32 1.0, %v1287
    %v1289 = vadd.f32 %v1199, %v1238
    %v1290 = vxor.u32 %v1289, 2147483648
    %v1291 = vmul.f32 %v1290, 1.442695
    %v1292 = vpow.pop %v1291
    %v1293 = vadd.f32 %v1292, 1.0
    %v1294 = vrcp.pop %v1293
    %v1295 = vmul.f32 1.0, %v1294
    %v1296 = vmul.f32 %v1288, %v1277
    %v1297 = vadd.f32 %v1200, %v1296
    %v1298 = vtanh.pop %v1297
    %v1299 = vsub.f32 1.0, %v1295
    %v1300 = vmul.f32 %v1299, %v1298
    %v1301 = vmul.f32 %v1295, %v1191
    %v1302 = vadd.f32 %v1300, %v1301
    %v1303 = vpack.c.bf16 %v1302, %v1302
    %s1304 = scalar_lea.vmem [#allocation3], 20
    %1305 = vst [vmem:[%s1304] sm:$0xf] %v1303
    %s1306 = scalar_lea.vmem [#allocation2], 72
    %v1307 = vld [vmem:[%s1306] sm:$0xff]
    %v1308 = vld [vmem:[%s1306 + $0x8] sm:$0xf]
    %v1309 = vunpack.c.l.bf16 %v1307
    %v1310 = vunpack.c.h.bf16 %v1307
    %v1311 = vunpack.c.l.bf16 %v1308
    %1312 = vmatprep.subr.bf16.mxu0 %v621
    %1313 = vmatpush1.bf16.msra.mxu0 %v620
    %1314 = vmatprep.subr.bf16.mxu0 %v618
    %1315 = vmatpush1.bf16.msra.mxu0 %v617
    %1316 = vmatprep.subr.bf16.mxu0 %v615
    %1317 = vmatpush1.bf16.msra.mxu0 %v614
    %1318 = vmatprep.subr.bf16.mxu0 %v612
    %1319 = vmatpush1.bf16.msra.mxu0 %v611
    %1320 = vmatprep.subr.bf16.mxu0 %v609
    %1321 = vmatpush1.bf16.msra.mxu0 %v608
    %1322 = vmatprep.subr.bf16.mxu0 %v606
    %1323 = vmatpush1.bf16.msra.mxu0 %v605
    %1324 = vmatprep.subr.bf16.mxu0 %v603
    %1325 = vmatpush1.bf16.msra.mxu0 %v602
    %1326 = vmatprep.subr.bf16.mxu0 %v600
    %1327 = vmatpush1.bf16.msra.mxu0 %v599
    %1328 = vmatprep.subr.bf16.mxu0 0
    %1329 = vmatpush2.bf16.msra.mxu0 0
    %1330 = vmatprep.subr.bf16.mxu0 0
    %1331 = vmatpush2.bf16.msra.mxu0 0
    %1332 = vmatprep.subr.bf16.mxu0 0
    %1333 = vmatpush2.bf16.msra.mxu0 0
    %1334 = vmatprep.subr.bf16.mxu0 0
    %1335 = vmatpush2.bf16.msra.mxu0 0
    %1336 = vmatprep.subr.bf16.mxu0 0
    %1337 = vmatpush2.bf16.msra.mxu0 0
    %1338 = vmatprep.subr.bf16.mxu0 0
    %1339 = vmatpush2.bf16.msra.mxu0 0
    %1340 = vmatprep.subr.bf16.mxu0 0
    %1341 = vmatpush2.bf16.msra.mxu0 0
    %1342 = vmatprep.subr.bf16.mxu0 0
    %1343 = vmatpush2.bf16.msra.mxu0 0
    %1344 = vmatprep.mubr.bf16.mxu0 0
    %1345 = vmatmul.mubr.bf16.gmra.mxu0 %v1303
    %v1346 = vpop.f32.mrf.mxu0
    %v1347 = vadd.f32 %v507, %v1346
    %v1348 = vpop.f32.mrf.mxu0
    %v1349 = vadd.f32 %v511, %v1348
    %v1350 = vpop.f32.mrf.mxu0
    %v1351 = vpop.f32.mrf.mxu0
    %1352 = vdwg.mxu0
    %1353 = vmatprep.subr.bf16.mxu0 0
    %1354 = vmatpush1.bf16.msra.mxu0 %v622
    %1355 = vmatprep.subr.bf16.mxu0 0
    %1356 = vmatpush1.bf16.msra.mxu0 %v619
    %1357 = vmatprep.subr.bf16.mxu0 0
    %1358 = vmatpush1.bf16.msra.mxu0 %v616
    %1359 = vmatprep.subr.bf16.mxu0 0
    %1360 = vmatpush1.bf16.msra.mxu0 %v613
    %1361 = vmatprep.subr.bf16.mxu0 0
    %1362 = vmatpush1.bf16.msra.mxu0 %v610
    %1363 = vmatprep.subr.bf16.mxu0 0
    %1364 = vmatpush1.bf16.msra.mxu0 %v607
    %1365 = vmatprep.subr.bf16.mxu0 0
    %1366 = vmatpush1.bf16.msra.mxu0 %v604
    %1367 = vmatprep.subr.bf16.mxu0 0
    %1368 = vmatpush1.bf16.msra.mxu0 %v601
    %1369 = vmatprep.subr.bf16.mxu0 0
    %1370 = vmatpush2.bf16.msra.mxu0 0
    %1371 = vmatprep.subr.bf16.mxu0 0
    %1372 = vmatpush2.bf16.msra.mxu0 0
    %1373 = vmatprep.subr.bf16.mxu0 0
    %1374 = vmatpush2.bf16.msra.mxu0 0
    %1375 = vmatprep.subr.bf16.mxu0 0
    %1376 = vmatpush2.bf16.msra.mxu0 0
    %1377 = vmatprep.subr.bf16.mxu0 0
    %1378 = vmatpush2.bf16.msra.mxu0 0
    %1379 = vmatprep.subr.bf16.mxu0 0
    %1380 = vmatpush2.bf16.msra.mxu0 0
    %1381 = vmatprep.subr.bf16.mxu0 0
    %1382 = vmatpush2.bf16.msra.mxu0 0
    %1383 = vmatprep.subr.bf16.mxu0 0
    %1384 = vmatpush2.bf16.msra.mxu0 0
    %1385 = vmatprep.mubr.bf16.mxu0 0
    %1386 = vmatmul.mubr.bf16.gmra.mxu0 %v1303
    %v1387 = vpop.f32.mrf.mxu0
    %v1388 = vadd.f32 %v515, %v1387
    %v1389 = vpop.f32.mrf.mxu0
    %v1390 = vpop.f32.mrf.mxu0
    %v1391 = vpop.f32.mrf.mxu0
    %1392 = vdwg.mxu0
    %v1393 = vadd.f32 %v1309, %v1347
    %v1394 = vxor.u32 %v1393, 2147483648
    %v1395 = vmul.f32 %v1394, 1.442695
    %v1396 = vpow.pop %v1395
    %v1397 = vadd.f32 %v1396, 1.0
    %v1398 = vrcp.pop %v1397
    %v1399 = vmul.f32 1.0, %v1398
    %v1400 = vadd.f32 %v1310, %v1349
    %v1401 = vxor.u32 %v1400, 2147483648
    %v1402 = vmul.f32 %v1401, 1.442695
    %v1403 = vpow.pop %v1402
    %v1404 = vadd.f32 %v1403, 1.0
    %v1405 = vrcp.pop %v1404
    %v1406 = vmul.f32 1.0, %v1405
    %v1407 = vmul.f32 %v1399, %v1388
    %v1408 = vadd.f32 %v1311, %v1407
    %v1409 = vtanh.pop %v1408
    %v1410 = vsub.f32 1.0, %v1406
    %v1411 = vmul.f32 %v1410, %v1409
    %v1412 = vmul.f32 %v1406, %v1302
    %v1413 = vadd.f32 %v1411, %v1412
    %v1414 = vpack.c.bf16 %v1413, %v1413
    %s1415 = scalar_lea.vmem [#allocation3], 24
    %1416 = vst [vmem:[%s1415] sm:$0xf] %v1414
    %s1417 = scalar_lea.vmem [#allocation2], 84
    %v1418 = vld [vmem:[%s1417] sm:$0xff]
    %v1419 = vld [vmem:[%s1417 + $0x8] sm:$0xf]
    %v1420 = vunpack.c.l.bf16 %v1418
    %v1421 = vunpack.c.h.bf16 %v1418
    %v1422 = vunpack.c.l.bf16 %v1419
    %1423 = vmatprep.subr.bf16.mxu0 %v621
    %1424 = vmatpush1.bf16.msra.mxu0 %v620
    %1425 = vmatprep.subr.bf16.mxu0 %v618
    %1426 = vmatpush1.bf16.msra.mxu0 %v617
    %1427 = vmatprep.subr.bf16.mxu0 %v615
    %1428 = vmatpush1.bf16.msra.mxu0 %v614
    %1429 = vmatprep.subr.bf16.mxu0 %v612
    %1430 = vmatpush1.bf16.msra.mxu0 %v611
    %1431 = vmatprep.subr.bf16.mxu0 %v609
    %1432 = vmatpush1.bf16.msra.mxu0 %v608
    %1433 = vmatprep.subr.bf16.mxu0 %v606
    %1434 = vmatpush1.bf16.msra.mxu0 %v605
    %1435 = vmatprep.subr.bf16.mxu0 %v603
    %1436 = vmatpush1.bf16.msra.mxu0 %v602
    %1437 = vmatprep.subr.bf16.mxu0 %v600
    %1438 = vmatpush1.bf16.msra.mxu0 %v599
    %1439 = vmatprep.subr.bf16.mxu0 0
    %1440 = vmatpush2.bf16.msra.mxu0 0
    %1441 = vmatprep.subr.bf16.mxu0 0
    %1442 = vmatpush2.bf16.msra.mxu0 0
    %1443 = vmatprep.subr.bf16.mxu0 0
    %1444 = vmatpush2.bf16.msra.mxu0 0
    %1445 = vmatprep.subr.bf16.mxu0 0
    %1446 = vmatpush2.bf16.msra.mxu0 0
    %1447 = vmatprep.subr.bf16.mxu0 0
    %1448 = vmatpush2.bf16.msra.mxu0 0
    %1449 = vmatprep.subr.bf16.mxu0 0
    %1450 = vmatpush2.bf16.msra.mxu0 0
    %1451 = vmatprep.subr.bf16.mxu0 0
    %1452 = vmatpush2.bf16.msra.mxu0 0
    %1453 = vmatprep.subr.bf16.mxu0 0
    %1454 = vmatpush2.bf16.msra.mxu0 0
    %1455 = vmatprep.mubr.bf16.mxu0 0
    %1456 = vmatmul.mubr.bf16.gmra.mxu0 %v1414
    %v1457 = vpop.f32.mrf.mxu0
    %v1458 = vadd.f32 %v507, %v1457
    %v1459 = vpop.f32.mrf.mxu0
    %v1460 = vadd.f32 %v511, %v1459
    %v1461 = vpop.f32.mrf.mxu0
    %v1462 = vpop.f32.mrf.mxu0
    %1463 = vdwg.mxu0
    %1464 = vmatprep.subr.bf16.mxu0 0
    %1465 = vmatpush1.bf16.msra.mxu0 %v622
    %1466 = vmatprep.subr.bf16.mxu0 0
    %1467 = vmatpush1.bf16.msra.mxu0 %v619
    %1468 = vmatprep.subr.bf16.mxu0 0
    %1469 = vmatpush1.bf16.msra.mxu0 %v616
    %1470 = vmatprep.subr.bf16.mxu0 0
    %1471 = vmatpush1.bf16.msra.mxu0 %v613
    %1472 = vmatprep.subr.bf16.mxu0 0
    %1473 = vmatpush1.bf16.msra.mxu0 %v610
    %1474 = vmatprep.subr.bf16.mxu0 0
    %1475 = vmatpush1.bf16.msra.mxu0 %v607
    %1476 = vmatprep.subr.bf16.mxu0 0
    %1477 = vmatpush1.bf16.msra.mxu0 %v604
    %1478 = vmatprep.subr.bf16.mxu0 0
    %1479 = vmatpush1.bf16.msra.mxu0 %v601
    %1480 = vmatprep.subr.bf16.mxu0 0
    %1481 = vmatpush2.bf16.msra.mxu0 0
    %1482 = vmatprep.subr.bf16.mxu0 0
    %1483 = vmatpush2.bf16.msra.mxu0 0
    %1484 = vmatprep.subr.bf16.mxu0 0
    %1485 = vmatpush2.bf16.msra.mxu0 0
    %1486 = vmatprep.subr.bf16.mxu0 0
    %1487 = vmatpush2.bf16.msra.mxu0 0
    %1488 = vmatprep.subr.bf16.mxu0 0
    %1489 = vmatpush2.bf16.msra.mxu0 0
    %1490 = vmatprep.subr.bf16.mxu0 0
    %1491 = vmatpush2.bf16.msra.mxu0 0
    %1492 = vmatprep.subr.bf16.mxu0 0
    %1493 = vmatpush2.bf16.msra.mxu0 0
    %1494 = vmatprep.subr.bf16.mxu0 0
    %1495 = vmatpush2.bf16.msra.mxu0 0
    %1496 = vmatprep.mubr.bf16.mxu0 0
    %1497 = vmatmul.mubr.bf16.gmra.mxu0 %v1414
    %v1498 = vpop.f32.mrf.mxu0
    %v1499 = vadd.f32 %v515, %v1498
    %v1500 = vpop.f32.mrf.mxu0
    %v1501 = vpop.f32.mrf.mxu0
    %v1502 = vpop.f32.mrf.mxu0
    %1503 = vdwg.mxu0
    %v1504 = vadd.f32 %v1420, %v1458
    %v1505 = vxor.u32 %v1504, 2147483648
    %v1506 = vmul.f32 %v1505, 1.442695
    %v1507 = vpow.pop %v1506
    %v1508 = vadd.f32 %v1507, 1.0
    %v1509 = vrcp.pop %v1508
    %v1510 = vmul.f32 1.0, %v1509
    %v1511 = vadd.f32 %v1421, %v1460
    %v1512 = vxor.u32 %v1511, 2147483648
    %v1513 = vmul.f32 %v1512, 1.442695
    %v1514 = vpow.pop %v1513
    %v1515 = vadd.f32 %v1514, 1.0
    %v1516 = vrcp.pop %v1515
    %v1517 = vmul.f32 1.0, %v1516
    %v1518 = vmul.f32 %v1510, %v1499
    %v1519 = vadd.f32 %v1422, %v1518
    %v1520 = vtanh.pop %v1519
    %v1521 = vsub.f32 1.0, %v1517
    %v1522 = vmul.f32 %v1521, %v1520
    %v1523 = vmul.f32 %v1517, %v1413
    %v1524 = vadd.f32 %v1522, %v1523
    %v1525 = vpack.c.bf16 %v1524, %v1524
    %s1526 = scalar_lea.vmem [#allocation3], 28
    %1527 = vst [vmem:[%s1526] sm:$0xf] %v1525
    %v1528 = vld [vmem:[#allocation3] sm:$0xf]
    %v1529 = vld [vmem:[#allocation3 + $0x4] sm:$0xf]
    %v1530 = vld [vmem:[#allocation3 + $0x8] sm:$0xf]
    %v1531 = vld [vmem:[#allocation3 + $0xc] sm:$0xf]
    %v1532 = vld [vmem:[#allocation3 + $0x10] sm:$0xf]
    %v1533 = vld [vmem:[#allocation3 + $0x14] sm:$0xf]
    %v1534 = vld [vmem:[#allocation3 + $0x18] sm:$0xf]
    %v1535 = vld [vmem:[#allocation3 + $0x1c] sm:$0xf]
    %v1537 = vlaneseq
    %v1538 = vshrl.u32 %v1537, 7
    %v1539 = vsub.s32 0, %v1538
    %v1540 = vrot.slane %v162, %v1539
    %v1550 = vunpack.c.l.b16 %v1528
    %v1551 = vunpack.c.l.b16 %v1529
    %v1552 = vunpack.c.l.b16 %v1530
    %v1553 = vunpack.c.l.b16 %v1531
    %v1554 = vunpack.c.l.b16 %v1532
    %v1555 = vunpack.c.l.b16 %v1533
    %v1556 = vunpack.c.l.b16 %v1534
    %v1557 = vunpack.c.l.b16 %v1535
    %v1558 = vpack.c.b16 %v1551, %v1550
    %v1559 = vpack.c.b16 %v1553, %v1552
    %v1560 = vpack.c.b16 %v1555, %v1554
    %v1561 = vpack.c.b16 %v1557, %v1556
    %v1582 = vunpack.c.l.b16 %v146
    %v1583 = vunpack.c.l.b16 %v147
    %v1584 = vunpack.c.l.b16 %v148
    %v1585 = vunpack.c.l.b16 %v149
    %v1586 = vunpack.c.l.b16 %v150
    %v1587 = vunpack.c.l.b16 %v151
    %v1588 = vunpack.c.l.b16 %v152
    %v1589 = vunpack.c.l.b16 %v153
    %v1590 = vunpack.c.l.b16 %v154
    %v1591 = vunpack.c.l.b16 %v155
    %v1592 = vunpack.c.l.b16 %v156
    %v1593 = vunpack.c.l.b16 %v157
    %v1594 = vunpack.c.l.b16 %v158
    %v1595 = vunpack.c.l.b16 %v159
    %v1596 = vunpack.c.l.b16 %v160
    %v1597 = vunpack.c.l.b16 %v161
    %v1598 = vpack.c.b16 %v1583, %v1582
    %v1599 = vpack.c.b16 %v1585, %v1584
    %v1600 = vpack.c.b16 %v1587, %v1586
    %v1601 = vpack.c.b16 %v1589, %v1588
    %v1602 = vpack.c.b16 %v1591, %v1590
    %v1603 = vpack.c.b16 %v1593, %v1592
    %v1604 = vpack.c.b16 %v1595, %v1594
    %v1605 = vpack.c.b16 %v1597, %v1596
    %1614 = vmatprep.subr.bf16.mxu0 0
    %1615 = vmatpush1.bf16.msra.mxu0 %v1605
    %1616 = vmatprep.subr.bf16.mxu0 0
    %1617 = vmatpush1.bf16.msra.mxu0 %v1604
    %1618 = vmatprep.subr.bf16.mxu0 0
    %1619 = vmatpush1.bf16.msra.mxu0 %v1603
    %1620 = vmatprep.subr.bf16.mxu0 0
    %1621 = vmatpush1.bf16.msra.mxu0 %v1602
    %1622 = vmatprep.subr.bf16.mxu0 0
    %1623 = vmatpush1.bf16.msra.mxu0 %v1601
    %1624 = vmatprep.subr.bf16.mxu0 0
    %1625 = vmatpush1.bf16.msra.mxu0 %v1600
    %1626 = vmatprep.subr.bf16.mxu0 0
    %1627 = vmatpush1.bf16.msra.mxu0 %v1599
    %1628 = vmatprep.subr.bf16.mxu0 0
    %1629 = vmatpush1.bf16.msra.mxu0 %v1598
    %1630 = vmatprep.subr.bf16.mxu0 0
    %1631 = vmatpush2.bf16.msra.mxu0 0
    %1632 = vmatprep.subr.bf16.mxu0 0
    %1633 = vmatpush2.bf16.msra.mxu0 0
    %1634 = vmatprep.subr.bf16.mxu0 0
    %1635 = vmatpush2.bf16.msra.mxu0 0
    %1636 = vmatprep.subr.bf16.mxu0 0
    %1637 = vmatpush2.bf16.msra.mxu0 0
    %1638 = vmatprep.subr.bf16.mxu0 0
    %1639 = vmatpush2.bf16.msra.mxu0 0
    %1640 = vmatprep.subr.bf16.mxu0 0
    %1641 = vmatpush2.bf16.msra.mxu0 0
    %1642 = vmatprep.subr.bf16.mxu0 0
    %1643 = vmatpush2.bf16.msra.mxu0 0
    %1644 = vmatprep.subr.bf16.mxu0 0
    %1645 = vmatpush2.bf16.msra.mxu0 0
    %1646 = vmatprep.mubr.bf16.mxu0 0
    %1647 = vmatmul.mubr.bf16.gmra.mxu0 %v1558
    %v1648 = vpop.f32.mrf.mxu0
    %v1649 = vadd.f32 %v1540, %v1648
    %v1650 = vpop.f32.mrf.mxu0
    %v1651 = vpop.f32.mrf.mxu0
    %v1652 = vadd.f32 %v1540, %v1651
    %v1653 = vpop.f32.mrf.mxu0
    %1654 = vmatprep.mubr.bf16.mxu0 0
    %1655 = vmatmul.mubr.bf16.gmra.mxu0 %v1559
    %v1656 = vpop.f32.mrf.mxu0
    %v1657 = vadd.f32 %v1540, %v1656
    %v1658 = vpop.f32.mrf.mxu0
    %v1659 = vpop.f32.mrf.mxu0
    %v1660 = vadd.f32 %v1540, %v1659
    %v1661 = vpop.f32.mrf.mxu0
    %1662 = vmatprep.mubr.bf16.mxu0 0
    %1663 = vmatmul.mubr.bf16.gmra.mxu0 %v1560
    %v1664 = vpop.f32.mrf.mxu0
    %v1665 = vadd.f32 %v1540, %v1664
    %v1666 = vpop.f32.mrf.mxu0
    %v1667 = vpop.f32.mrf.mxu0
    %v1668 = vadd.f32 %v1540, %v1667
    %v1669 = vpop.f32.mrf.mxu0
    %1670 = vmatprep.mubr.bf16.mxu0 0
    %1671 = vmatmul.mubr.bf16.gmra.mxu0 %v1561
    %v1672 = vpop.f32.mrf.mxu0
    %v1673 = vadd.f32 %v1540, %v1672
    %v1674 = vpop.f32.mrf.mxu0
    %v1675 = vpop.f32.mrf.mxu0
    %v1676 = vadd.f32 %v1540, %v1675
    %v1677 = vpop.f32.mrf.mxu0
    %1678 = vdwg.mxu0
    %v1679 = vtanh.pop %v1649
    %v1680 = vtanh.pop %v1652
    %v1681 = vtanh.pop %v1657
    %v1682 = vtanh.pop %v1660
    %v1683 = vtanh.pop %v1665
    %v1684 = vtanh.pop %v1668
    %v1685 = vtanh.pop %v1673
    %v1686 = vtanh.pop %v1676
    %v1688 = vlaneseq
    %v1689 = vshrl.u32 %v1688, 7
    %v1690 = vsub.s32 0, %v1689
    %v1691 = vrot.slane %v163, %v1690
    %v1693 = vmul.f32 %v1679, %v1691
    %v1694 = vmul.f32 %v1680, %v1691
    %v1695 = vmul.f32 %v1681, %v1691
    %v1696 = vmul.f32 %v1682, %v1691
    %v1697 = vmul.f32 %v1683, %v1691
    %v1698 = vmul.f32 %v1684, %v1691
    %v1699 = vmul.f32 %v1685, %v1691
    %v1700 = vmul.f32 %v1686, %v1691
    %1701 = vadd.xlane.f32.xlu0 %v1693
    %v1702 = vpop.xlane.xlu0 %1701
    %1703 = vadd.xlane.f32.xlu0 %v1694
    %v1704 = vpop.xlane.xlu0 %1703
    %1705 = vadd.xlane.f32.xlu0 %v1695
    %v1706 = vpop.xlane.xlu0 %1705
    %1707 = vadd.xlane.f32.xlu0 %v1696
    %v1708 = vpop.xlane.xlu0 %1707
    %1709 = vadd.xlane.f32.xlu0 %v1697
    %v1710 = vpop.xlane.xlu0 %1709
    %1711 = vadd.xlane.f32.xlu0 %v1698
    %v1712 = vpop.xlane.xlu0 %1711
    %1713 = vadd.xlane.f32.xlu0 %v1699
    %v1714 = vpop.xlane.xlu0 %1713
    %1715 = vadd.xlane.f32.xlu0 %v1700
    %v1716 = vpop.xlane.xlu0 %1715
    %v1725 = vlaneseq
    %v1726 = vand.u32 %v1725, 127
    %v1727 = vlaneseq
    %v1728 = vshrl.u32 %v1727, 7
    %v1729 = vsub.s32 %v1726, %v1728
    %v1730 = vrot.slane %v1702, %v1729
    %v1731 = vlaneseq
    %v1732 = vshrl.u32 %v1731, 7
    %v1733 = vsub.s32 %v1726, %v1732
    %v1734 = vrot.slane %v1704, %v1733
    %v1735 = vlaneseq
    %v1736 = vshrl.u32 %v1735, 7
    %v1737 = vsub.s32 %v1726, %v1736
    %v1738 = vrot.slane %v1706, %v1737
    %v1739 = vlaneseq
    %v1740 = vshrl.u32 %v1739, 7
    %v1741 = vsub.s32 %v1726, %v1740
    %v1742 = vrot.slane %v1708, %v1741
    %v1743 = vlaneseq
    %v1744 = vshrl.u32 %v1743, 7
    %v1745 = vsub.s32 %v1726, %v1744
    %v1746 = vrot.slane %v1710, %v1745
    %v1747 = vlaneseq
    %v1748 = vshrl.u32 %v1747, 7
    %v1749 = vsub.s32 %v1726, %v1748
    %v1750 = vrot.slane %v1712, %v1749
    %v1751 = vlaneseq
    %v1752 = vshrl.u32 %v1751, 7
    %v1753 = vsub.s32 %v1726, %v1752
    %v1754 = vrot.slane %v1714, %v1753
    %v1755 = vlaneseq
    %v1756 = vshrl.u32 %v1755, 7
    %v1757 = vsub.s32 %v1726, %v1756
    %v1758 = vrot.slane %v1716, %v1757
    %vm1759 = vcmask 1041409
    %v1760 = vsel %vm1759, %v1734, %v1730
    %vm1761 = vcmask 1042434
    %v1762 = vsel %vm1761, %v1738, %v1760
    %vm1763 = vcmask 1043459
    %v1764 = vsel %vm1763, %v1742, %v1762
    %vm1765 = vcmask 1044484
    %v1766 = vsel %vm1765, %v1746, %v1764
    %vm1767 = vcmask 1045509
    %v1768 = vsel %vm1767, %v1750, %v1766
    %vm1769 = vcmask 1046534
    %v1770 = vsel %vm1769, %v1754, %v1768
    %vm1771 = vcmask 1047559
    %v1772 = vsel %vm1771, %v1758, %v1770
    %vm1774 = vcmask 64512
    %1775 = vst.msk [vmem:[#allocation4] sm:$0xff] %vm1774, %v1772
    %v1776 = vld [vmem:[%s1] sm:$0xff]
    %1777 = vset.pattern.permute.xlu0 0
    %1778 = vperm.xlu0 %1777, %v1776
    %v1779 = vpop.permute.xlu0 %1778
    %vm1780 = vcmp.ge.s32.totalorder %v1726, %v1779
    %v1781 = vsel %vm1780, -1e+30, 0.0
    %1782 = vxpose.xlu0.b32.start [1/16] %v1781, 128
    %1783 = vxpose.xlu0.b32.cont [2/16] 0.0, 128
    %1784 = vxpose.xlu0.b32.cont [3/16] 0.0, 128
    %1785 = vxpose.xlu0.b32.cont [4/16] 0.0, 128
    %1786 = vxpose.xlu0.b32.cont [5/16] 0.0, 128
    %1787 = vxpose.xlu0.b32.cont [6/16] 0.0, 128
    %1788 = vxpose.xlu0.b32.cont [7/16] 0.0, 128
    %1789 = vxpose.xlu0.b32.cont [8/16] 0.0, 128
    %1790 = vxpose.xlu0.b32.cont [9/16] 0.0, 128
    %1791 = vxpose.xlu0.b32.cont [10/16] 0.0, 128
    %1792 = vxpose.xlu0.b32.cont [11/16] 0.0, 128
    %1793 = vxpose.xlu0.b32.cont [12/16] 0.0, 128
    %1794 = vxpose.xlu0.b32.cont [13/16] 0.0, 128
    %1795 = vxpose.xlu0.b32.cont [14/16] 0.0, 128
    %1796 = vxpose.xlu0.b32.cont [15/16] 0.0, 128
    %1797 = vxpose.xlu0.b32.end [16/16] 0.0, 128
    %v1798 = vpop.trf.xlu0
    %v1799 = vpop.trf.xlu0
    %v1800 = vpop.trf.xlu0
    %v1801 = vpop.trf.xlu0
    %v1802 = vpop.trf.xlu0
    %v1803 = vpop.trf.xlu0
    %v1804 = vpop.trf.xlu0
    %v1805 = vpop.trf.xlu0
    %v1806 = vpop.trf.xlu0
    %v1807 = vpop.trf.xlu0
    %v1808 = vpop.trf.xlu0
    %v1809 = vpop.trf.xlu0
    %v1810 = vpop.trf.xlu0
    %v1811 = vpop.trf.xlu0
    %v1812 = vpop.trf.xlu0
    %v1813 = vpop.trf.xlu0
    %v1814 = vld [vmem:[#allocation4] sm:$0xff]
    %v1815 = vadd.f32 %v1814, %v1798
    %v1816 = vsel %vm1774, %v1815, -inf
    %v1817 = vrot.slane %v1816, 4
    %v1818 = vmax.f32 %v1816, %v1817
    %v1819 = vrot.slane %v1818, 2
    %v1820 = vmax.f32 %v1818, %v1819
    %v1821 = vrot.slane %v1820, 1
    %v1822 = vmax.f32 %v1820, %v1821
    %v1823 = vsub.f32 %v1815, %v1822
    %v1824 = vmul.f32 %v1823, 1.442695
    %v1825 = vpow.pop %v1824
    %v1826 = vsel %vm1774, %v1825, 0.0
    %v1827 = vrot.slane %v1826, 4
    %v1828 = vadd.f32 %v1826, %v1827
    %v1829 = vrot.slane %v1828, 2
    %v1830 = vadd.f32 %v1828, %v1829
    %v1831 = vrot.slane %v1830, 1
    %v1832 = vadd.f32 %v1830, %v1831
    %v1833 = vrcp.pop %v1832
    %v1834 = vmul.f32 %v1825, %v1833
    %1835 = vst.msk [vmem:[#allocation4] sm:$0xff] %vm1774, %v1834
    %v1836 = vld [vmem:[#allocation4] sm:$0xff]
    %v1837 = vld [vmem:[#allocation3] sm:$0xf]
    %v1838 = vld [vmem:[#allocation3 + $0x4] sm:$0xf]
    %v1839 = vld [vmem:[#allocation3 + $0x8] sm:$0xf]
    %v1840 = vld [vmem:[#allocation3 + $0xc] sm:$0xf]
    %v1841 = vld [vmem:[#allocation3 + $0x10] sm:$0xf]
    %v1842 = vld [vmem:[#allocation3 + $0x14] sm:$0xf]
    %v1843 = vld [vmem:[#allocation3 + $0x18] sm:$0xf]
    %v1844 = vld [vmem:[#allocation3 + $0x1c] sm:$0xf]
    %v1845 = vunpack.c.l.bf16 %v1837
    %v1846 = vunpack.c.l.bf16 %v1838
    %v1847 = vunpack.c.l.bf16 %v1839
    %v1848 = vunpack.c.l.bf16 %v1840
    %v1849 = vunpack.c.l.bf16 %v1841
    %v1850 = vunpack.c.l.bf16 %v1842
    %v1851 = vunpack.c.l.bf16 %v1843
    %v1852 = vunpack.c.l.bf16 %v1844
    %v1853 = vlaneseq
    %v1854 = vshrl.u32 %v1853, 7
    %v1855 = vsub.s32 0, %v1854
    %v1856 = vrot.slane %v1836, %v1855
    %1858 = vbcast.lane.b32.xlu0 %v1856, 256
    %v1859 = vpop.permute.xlu0 %1858
    %v1860 = vlaneseq
    %v1861 = vshrl.u32 %v1860, 7
    %v1862 = vsub.s32 1, %v1861
    %v1863 = vrot.slane %v1836, %v1862
    %1865 = vbcast.lane.b32.xlu0 %v1863, 256
    %v1866 = vpop.permute.xlu0 %1865
    %v1867 = vlaneseq
    %v1868 = vshrl.u32 %v1867, 7
    %v1869 = vsub.s32 2, %v1868
    %v1870 = vrot.slane %v1836, %v1869
    %1872 = vbcast.lane.b32.xlu0 %v1870, 256
    %v1873 = vpop.permute.xlu0 %1872
    %v1874 = vlaneseq
    %v1875 = vshrl.u32 %v1874, 7
    %v1876 = vsub.s32 3, %v1875
    %v1877 = vrot.slane %v1836, %v1876
    %1879 = vbcast.lane.b32.xlu0 %v1877, 256
    %v1880 = vpop.permute.xlu0 %1879
    %v1881 = vlaneseq
    %v1882 = vshrl.u32 %v1881, 7
    %v1883 = vsub.s32 4, %v1882
    %v1884 = vrot.slane %v1836, %v1883
    %1886 = vbcast.lane.b32.xlu0 %v1884, 256
    %v1887 = vpop.permute.xlu0 %1886
    %v1888 = vlaneseq
    %v1889 = vshrl.u32 %v1888, 7
    %v1890 = vsub.s32 5, %v1889
    %v1891 = vrot.slane %v1836, %v1890
    %1893 = vbcast.lane.b32.xlu0 %v1891, 256
    %v1894 = vpop.permute.xlu0 %1893
    %v1895 = vlaneseq
    %v1896 = vshrl.u32 %v1895, 7
    %v1897 = vsub.s32 6, %v1896
    %v1898 = vrot.slane %v1836, %v1897
    %1900 = vbcast.lane.b32.xlu0 %v1898, 256
    %v1901 = vpop.permute.xlu0 %1900
    %v1902 = vlaneseq
    %v1903 = vshrl.u32 %v1902, 7
    %v1904 = vsub.s32 7, %v1903
    %v1905 = vrot.slane %v1836, %v1904
    %1907 = vbcast.lane.b32.xlu0 %v1905, 256
    %v1908 = vpop.permute.xlu0 %1907
    %v1909 = vmul.f32 %v1859, %v1845
    %v1910 = vmul.f32 %v1866, %v1846
    %v1911 = vmul.f32 %v1873, %v1847
    %v1912 = vmul.f32 %v1880, %v1848
    %v1913 = vmul.f32 %v1887, %v1849
    %v1914 = vmul.f32 %v1894, %v1850
    %v1915 = vmul.f32 %v1901, %v1851
    %v1916 = vmul.f32 %v1908, %v1852
    %v1917 = vadd.f32 %v1909, %v1910
    %v1918 = vadd.f32 %v1917, %v1911
    %v1919 = vadd.f32 %v1918, %v1912
    %v1920 = vadd.f32 %v1919, %v1913
    %v1921 = vadd.f32 %v1920, %v1914
    %v1922 = vadd.f32 %v1921, %v1915
    %v1923 = vadd.f32 %v1922, %v1916
    %v1924 = vadd.f32 %v1923, 0.0
    %v1925 = vpack.c.bf16 %v1924, %v1924
    %v1926 = vld [vmem:[#allocation13] sm:$0xf]
    %v1927 = vld [vmem:[#allocation13 + $0x4] sm:$0xf]
    %v1928 = vld [vmem:[#allocation13 + $0x8] sm:$0xf]
    %v1929 = vld [vmem:[#allocation13 + $0xc] sm:$0xf]
    %v1930 = vld [vmem:[#allocation13 + $0x10] sm:$0xf]
    %v1931 = vld [vmem:[#allocation13 + $0x14] sm:$0xf]
    %v1932 = vld [vmem:[#allocation13 + $0x18] sm:$0xf]
    %v1933 = vld [vmem:[#allocation13 + $0x1c] sm:$0xf]
    %v1934 = vld [vmem:[#allocation13 + $0x20] sm:$0xf]
    %v1935 = vld [vmem:[#allocation13 + $0x24] sm:$0xf]
    %v1936 = vld [vmem:[#allocation13 + $0x28] sm:$0xf]
    %v1937 = vld [vmem:[#allocation13 + $0x2c] sm:$0xf]
    %v1938 = vld [vmem:[#allocation13 + $0x30] sm:$0xf]
    %v1939 = vld [vmem:[#allocation13 + $0x34] sm:$0xf]
    %v1940 = vld [vmem:[#allocation13 + $0x38] sm:$0xf]
    %v1941 = vld [vmem:[#allocation13 + $0x3c] sm:$0xf]
    %v1942 = vld [vmem:[%s10] sm:$0x1]
    %v1944 = vlaneseq
    %v1945 = vshrl.u32 %v1944, 7
    %v1946 = vsub.s32 0, %v1945
    %v1947 = vrot.slane %v1942, %v1946
    %v1965 = vunpack.c.l.b16 %v1926
    %v1966 = vunpack.c.l.b16 %v1927
    %v1967 = vunpack.c.l.b16 %v1928
    %v1968 = vunpack.c.l.b16 %v1929
    %v1969 = vunpack.c.l.b16 %v1930
    %v1970 = vunpack.c.l.b16 %v1931
    %v1971 = vunpack.c.l.b16 %v1932
    %v1972 = vunpack.c.l.b16 %v1933
    %v1973 = vunpack.c.l.b16 %v1934
    %v1974 = vunpack.c.l.b16 %v1935
    %v1975 = vunpack.c.l.b16 %v1936
    %v1976 = vunpack.c.l.b16 %v1937
    %v1977 = vunpack.c.l.b16 %v1938
    %v1978 = vunpack.c.l.b16 %v1939
    %v1979 = vunpack.c.l.b16 %v1940
    %v1980 = vunpack.c.l.b16 %v1941
    %v1981 = vpack.c.b16 %v1966, %v1965
    %v1982 = vpack.c.b16 %v1968, %v1967
    %v1983 = vpack.c.b16 %v1970, %v1969
    %v1984 = vpack.c.b16 %v1972, %v1971
    %v1985 = vpack.c.b16 %v1974, %v1973
    %v1986 = vpack.c.b16 %v1976, %v1975
    %v1987 = vpack.c.b16 %v1978, %v1977
    %v1988 = vpack.c.b16 %v1980, %v1979
    %1997 = vmatprep.subr.bf16.mxu0 0
    %1998 = vmatpush1.bf16.msra.mxu0 %v1988
    %1999 = vmatprep.subr.bf16.mxu0 0
    %2000 = vmatpush1.bf16.msra.mxu0 %v1987
    %2001 = vmatprep.subr.bf16.mxu0 0
    %2002 = vmatpush1.bf16.msra.mxu0 %v1986
    %2003 = vmatprep.subr.bf16.mxu0 0
    %2004 = vmatpush1.bf16.msra.mxu0 %v1985
    %2005 = vmatprep.subr.bf16.mxu0 0
    %2006 = vmatpush1.bf16.msra.mxu0 %v1984
    %2007 = vmatprep.subr.bf16.mxu0 0
    %2008 = vmatpush1.bf16.msra.mxu0 %v1983
    %2009 = vmatprep.subr.bf16.mxu0 0
    %2010 = vmatpush1.bf16.msra.mxu0 %v1982
    %2011 = vmatprep.subr.bf16.mxu0 0
    %2012 = vmatpush1.bf16.msra.mxu0 %v1981
    %2013 = vmatprep.subr.bf16.mxu0 0
    %2014 = vmatpush2.bf16.msra.mxu0 0
    %2015 = vmatprep.subr.bf16.mxu0 0
    %2016 = vmatpush2.bf16.msra.mxu0 0
    %2017 = vmatprep.subr.bf16.mxu0 0
    %2018 = vmatpush2.bf16.msra.mxu0 0
    %2019 = vmatprep.subr.bf16.mxu0 0
    %2020 = vmatpush2.bf16.msra.mxu0 0
    %2021 = vmatprep.subr.bf16.mxu0 0
    %2022 = vmatpush2.bf16.msra.mxu0 0
    %2023 = vmatprep.subr.bf16.mxu0 0
    %2024 = vmatpush2.bf16.msra.mxu0 0
    %2025 = vmatprep.subr.bf16.mxu0 0
    %2026 = vmatpush2.bf16.msra.mxu0 0
    %2027 = vmatprep.subr.bf16.mxu0 0
    %2028 = vmatpush2.bf16.msra.mxu0 0
    %2029 = vmatprep.mubr.bf16.mxu0 0
    %2030 = vmatmul.mubr.bf16.gmra.mxu0 %v1925
    %v2031 = vpop.f32.mrf.mxu0
    %v2032 = vadd.f32 %v1947, %v2031
    %v2033 = vpop.f32.mrf.mxu0
    %v2034 = vpop.f32.mrf.mxu0
    %v2035 = vpop.f32.mrf.mxu0
    %2036 = vdwg.mxu0
    %2037 = vst [vmem:[#allocation14] sm:$0xff] %v2032
    // Predicated region
    $region66: #{tpu_custom_call.1} parent=1 // pred_check
      _
    $region67: #{tpu_custom_call.1} parent=1 // pred_check_branch
      %2039 = sbr.rel (0) target = $region69
    $region68: #{tpu_custom_call.1} parent=1 // pred_region
      %s2041 = ssub.s32 128, 128
      %2042 = vsyncadd [#allocation7], %s2041
      %s2044 = sshll.u32 [#allocation14], 4
      %s2045 = int_to_ptr.vmem [resolvable:$true] %s2044
      %2047 = dma.vmem_to_hbm [thread:$0]  %s2045, 128, %s11, [#allocation7]
    $region69: #{tpu_custom_call.1} parent=1 // pred_fallthru
      _
    // Predicated region
    $region70: #{tpu_custom_call.1} parent=1 // pred_check
      _
    $region71: #{tpu_custom_call.1} parent=1 // pred_check_branch
      %2049 = sbr.rel (0) target = $region73
    $region72: #{tpu_custom_call.1} parent=1 // pred_region
      %2050 = dma.done [#allocation7], 128
    $region73: #{tpu_custom_call.1} parent=1 // pred_fallthru
      _
    %2051 = vsyncpa [#allocation6], 1
    %2052 = vsyncpa [#allocation9], 1
    %2053 = vsyncpa [#allocation12], 1
    %2054 = vsyncpa [#allocation7], 1

// kernel: tpu_custom_call.1
$region0: #{tpu_custom_call.1}
  #allocation0 [shape = 'u32[]', space=smem, size = 0x4, offset = 0x4, fixed_abs, tag = 'smem constant byte address 0x4 - core index']
  #allocation1 [shape = 'u32[144,128]{1,0:T(1,128)}', space=vmem, size = 0x12000, scoped, tag = 'internal scratch']
  #allocation2 [shape = 'bf16[8,8,384]{2,1,0:T(8,128)(2,1)}', space=vmem, size = 0xc000, scoped, tag = 'scratch operand']
  #allocation3 [shape = 'bf16[8,8,128]{2,1,0:T(8,128)(2,1)}', space=vmem, size = 0x4000, scoped, tag = 'scratch operand']
  #allocation4 [shape = 'f32[8,8]{1,0:T(8,128)}', space=vmem, size = 0x1000, scoped, tag = 'scratch operand']
  %s0 = inlined_call_operand.hbm [shape: bf16[8,8,16], index: 0, kind: input, shape index: {}]
  %s1 = inlined_call_operand.vmem [shape: s32[8,1], index: 1, kind: input, shape index: {}]
  %s2 = inlined_call_operand.hbm [shape: bf16[16,384], index: 2, kind: input, shape index: {}]
  %s3 = inlined_call_operand.hbm [shape: bf16[128,384], index: 3, kind: input, shape index: {}]
  %s4 = inlined_call_operand.vmem [shape: f32[1,384], index: 4, kind: input, shape index: {}]
  %s5 = inlined_call_operand.vmem [shape: f32[1,384], index: 5, kind: input, shape index: {}]
  %s6 = inlined_call_operand.hbm [shape: bf16[128,128], index: 6, kind: input, shape index: {}]
  %s7 = inlined_call_operand.vmem [shape: f32[1,128], index: 7, kind: input, shape index: {}]
  %s8 = inlined_call_operand.vmem [shape: f32[1,128], index: 8, kind: input, shape index: {}]
  %s9 = inlined_call_operand.hbm [shape: bf16[128,128], index: 9, kind: input, shape index: {}]
  %s10 = inlined_call_operand.vmem [shape: f32[1,128], index: 10, kind: input, shape index: {}]
  %s11 = inlined_call_operand.hbm [shape: f32[8,128], index: 11, kind: output, shape index: {}]
  %s12 = sld [smem:[#allocation0]]
  $region74: #{tpu_custom_call.1} parent=0
    _
  %s14 = ssub.s32 1, %s12
  %s15 = scalar_select 0, %s14, %s12
  $region1: #{tpu_custom_call.1} parent=0
    #allocation5 [shape = 'u8[16384]{0}', space=vmem, size = 0x4000, scoped, tag = 'input window, operand 0, single buffered']
    #allocation6 [shape = 's32[1]{0}', space=sflag, size = 0x4, scoped, tag = 'scoped memory for tpu_custom_call.1']
    #allocation7 [shape = 's32[1]{0}', space=sflag, size = 0x4, scoped, tag = 'scoped memory for tpu_custom_call.1']
    #allocation8 [shape = 'u8[12288]{0}', space=vmem, size = 0x3000, scoped, tag = 'input window, operand 2, single buffered']
    #allocation9 [shape = 's32[1]{0}', space=sflag, size = 0x4, scoped, tag = 'scoped memory for tpu_custom_call.1']
    #allocation10 [shape = 'u8[98304]{0}', space=vmem, size = 0x18000, scoped, tag = 'input window, operand 3, single buffered']
    #allocation11 [shape = 'u8[32768]{0}', space=vmem, size = 0x8000, scoped, tag = 'input window, operand 6, single buffered']
    #allocation12 [shape = 's32[1]{0}', space=sflag, size = 0x4, scoped, tag = 'scoped memory for tpu_custom_call.1']
    #allocation13 [shape = 'u8[32768]{0}', space=vmem, size = 0x8000, scoped, tag = 'input window, operand 9, single buffered']
    #allocation14 [shape = 'u8[4096]{0}', space=vmem, size = 0x1000, scoped, tag = 'output window, operand 0, single buffered']
    %16 = vsyncpa [#allocation6], 0
    %17 = vsyncpa [#allocation9], 0
    %18 = vsyncpa [#allocation12], 0
    %19 = vsyncpa [#allocation7], 0
    // Predicated region
    $region2: #{tpu_custom_call.1} parent=1 // pred_check
      _
    $region3: #{tpu_custom_call.1} parent=1 // pred_check_branch
      %21 = sbr.rel (0) target = $region5
    $region4: #{tpu_custom_call.1} parent=1 // pred_region
      %s23 = ssub.s32 512, 512
      %24 = vsyncadd [#allocation6], %s23
      %s25 = sshll.u32 [#allocation5], 4
      %s26 = int_to_ptr.vmem [resolvable:$true] %s25
      %31 = dma.hbm_to_vmem [thread:$0]  %s0, 512, %s26, [#allocation6], 64, 64, 4
    $region5: #{tpu_custom_call.1} parent=1 // pred_fallthru
      _
    // Predicated region
    $region6: #{tpu_custom_call.1} parent=1 // pred_check
      _
    $region7: #{tpu_custom_call.1} parent=1 // pred_check_branch
      %33 = sbr.rel (0) target = $region9
    $region8: #{tpu_custom_call.1} parent=1 // pred_region
      _
    $region9: #{tpu_custom_call.1} parent=1 // pred_fallthru
      _
    // Predicated region
    $region10: #{tpu_custom_call.1} parent=1 // pred_check
      _
    $region11: #{tpu_custom_call.1} parent=1 // pred_check_branch
      %35 = sbr.rel (0) target = $region13
    $region12: #{tpu_custom_call.1} parent=1 // pred_region
      %s37 = ssub.s32 384, 384
      %38 = vsyncadd [#allocation9], %s37
      %s39 = sshll.u32 [#allocation8], 4
      %s40 = int_to_ptr.vmem [resolvable:$true] %s39
      %45 = dma.hbm_to_vmem [thread:$0]  %s2, 384, %s40, [#allocation9], 192, 192, 12
    $region13: #{tpu_custom_call.1} parent=1 // pred_fallthru
      _
    // Predicated region
    $region14: #{tpu_custom_call.1} parent=1 // pred_check
      _
    $region15: #{tpu_custom_call.1} parent=1 // pred_check_branch
      %47 = sbr.rel (0) target = $region17
    $region16: #{tpu_custom_call.1} parent=1 // pred_region
      %s49 = ssub.s32 3072, 3072
      %50 = vsyncadd [#allocation9], %s49
      %s51 = sshll.u32 [#allocation10], 4
      %s52 = int_to_ptr.vmem [resolvable:$true] %s51
      %57 = dma.hbm_to_vmem [thread:$0]  %s3, 3072, %s52, [#allocation9], 192, 192, 12
    $region17: #{tpu_custom_call.1} parent=1 // pred_fallthru
      _
    // Predicated region
    $region18: #{tpu_custom_call.1} parent=1 // pred_check
      _
    $region19: #{tpu_custom_call.1} parent=1 // pred_check_branch
      %59 = sbr.rel (0) target = $region21
    $region20: #{tpu_custom_call.1} parent=1 // pred_region
      _
    $region21: #{tpu_custom_call.1} parent=1 // pred_fallthru
      _
    // Predicated region
    $region22: #{tpu_custom_call.1} parent=1 // pred_check
      _
    $region23: #{tpu_custom_call.1} parent=1 // pred_check_branch
      %61 = sbr.rel (0) target = $region25
    $region24: #{tpu_custom_call.1} parent=1 // pred_region
      _
    $region25: #{tpu_custom_call.1} parent=1 // pred_fallthru
      _
    // Predicated region
    $region26: #{tpu_custom_call.1} parent=1 // pred_check
      _
    $region27: #{tpu_custom_call.1} parent=1 // pred_check_branch
      %63 = sbr.rel (0) target = $region29
    $region28: #{tpu_custom_call.1} parent=1 // pred_region
      %s65 = ssub.s32 1024, 1024
      %66 = vsyncadd [#allocation12], %s65
      %s67 = sshll.u32 [#allocation11], 4
      %s68 = int_to_ptr.vmem [resolvable:$true] %s67
      %73 = dma.hbm_to_vmem [thread:$0]  %s6, 1024, %s68, [#allocation12], 64, 64, 4
    $region29: #{tpu_custom_call.1} parent=1 // pred_fallthru
      _
    // Predicated region
    $region30: #{tpu_custom_call.1} parent=1 // pred_check
      _
    $region31: #{tpu_custom_call.1} parent=1 // pred_check_branch
      %75 = sbr.rel (0) target = $region33
    $region32: #{tpu_custom_call.1} parent=1 // pred_region
      _
    $region33: #{tpu_custom_call.1} parent=1 // pred_fallthru
      _
    // Predicated region
    $region34: #{tpu_custom_call.1} parent=1 // pred_check
      _
    $region35: #{tpu_custom_call.1} parent=1 // pred_check_branch
      %77 = sbr.rel (0) target = $region37
    $region36: #{tpu_custom_call.1} parent=1 // pred_region
      _
    $region37: #{tpu_custom_call.1} parent=1 // pred_fallthru
      _
    // Predicated region
    $region38: #{tpu_custom_call.1} parent=1 // pred_check
      _
    $region39: #{tpu_custom_call.1} parent=1 // pred_check_branch
      %79 = sbr.rel (0) target = $region41
    $region40: #{tpu_custom_call.1} parent=1 // pred_region
      %s81 = ssub.s32 1024, 1024
      %82 = vsyncadd [#allocation12], %s81
      %s83 = sshll.u32 [#allocation13], 4
      %s84 = int_to_ptr.vmem [resolvable:$true] %s83
      %89 = dma.hbm_to_vmem [thread:$0]  %s9, 1024, %s84, [#allocation12], 64, 64, 4
    $region41: #{tpu_custom_call.1} parent=1 // pred_fallthru
      _
    // Predicated region
    $region42: #{tpu_custom_call.1} parent=1 // pred_check
      _
    $region43: #{tpu_custom_call.1} parent=1 // pred_check_branch
      %91 = sbr.rel (0) target = $region45
    $region44: #{tpu_custom_call.1} parent=1 // pred_region
      _
    $region45: #{tpu_custom_call.1} parent=1 // pred_fallthru
      _
    // Predicated region
    $region46: #{tpu_custom_call.1} parent=1 // pred_check
      _
    $region47: #{tpu_custom_call.1} parent=1 // pred_check_branch
      %93 = sbr.rel (0) target = $region49
    $region48: #{tpu_custom_call.1} parent=1 // pred_region
      %94 = dma.done [#allocation6], 512
    $region49: #{tpu_custom_call.1} parent=1 // pred_fallthru
      _
    // Predicated region
    $region50: #{tpu_custom_call.1} parent=1 // pred_check
      _
    $region51: #{tpu_custom_call.1} parent=1 // pred_check_branch
      %96 = sbr.rel (0) target = $region53
    $region52: #{tpu_custom_call.1} parent=1 // pred_region
      %97 = dma.done [#allocation9], 384
    $region53: #{tpu_custom_call.1} parent=1 // pred_fallthru
      _
    // Predicated region
    $region54: #{tpu_custom_call.1} parent=1 // pred_check
      _
    $region55: #{tpu_custom_call.1} parent=1 // pred_check_branch
      %99 = sbr.rel (0) target = $region57
    $region56: #{tpu_custom_call.1} parent=1 // pred_region
      %100 = dma.done [#allocation9], 3072
    $region57: #{tpu_custom_call.1} parent=1 // pred_fallthru
      _
    // Predicated region
    $region58: #{tpu_custom_call.1} parent=1 // pred_check
      _
    $region59: #{tpu_custom_call.1} parent=1 // pred_check_branch
      %102 = sbr.rel (0) target = $region61
    $region60: #{tpu_custom_call.1} parent=1 // pred_region
      %103 = dma.done [#allocation12], 1024
    $region61: #{tpu_custom_call.1} parent=1 // pred_fallthru
      _
    // Predicated region
    $region62: #{tpu_custom_call.1} parent=1 // pred_check
      _
    $region63: #{tpu_custom_call.1} parent=1 // pred_check_branch
      %105 = sbr.rel (0) target = $region65
    $region64: #{tpu_custom_call.1} parent=1 // pred_region
      %106 = dma.done [#allocation12], 1024
    $region65: #{tpu_custom_call.1} parent=1 // pred_fallthru
      _
    %v108 = vld [vmem:[#allocation8] sm:$0xff]
    %v109 = vld [vmem:[#allocation8 + $0x8] sm:$0xf]
    %v110 = vld [vmem:[#allocation8 + $0xc] sm:$0xff]
    %v111 = vld [vmem:[#allocation8 + $0x14] sm:$0xf]
    %v112 = vld [vmem:[%s4] sm:$0x7]
    %v113 = vld [vmem:[#allocation10] sm:$0xff]
    %v114 = vld [vmem:[#allocation10 + $0x8] sm:$0xf]
    %v115 = vld [vmem:[#allocation10 + $0xc] sm:$0xff]
    %v116 = vld [vmem:[#allocation10 + $0x14] sm:$0xf]
    %v117 = vld [vmem:[#allocation10 + $0x18] sm:$0xff]
    %v118 = vld [vmem:[#allocation10 + $0x20] sm:$0xf]
    %v119 = vld [vmem:[#allocation10 + $0x24] sm:$0xff]
    %v120 = vld [vmem:[#allocation10 + $0x2c] sm:$0xf]
    %v121 = vld [vmem:[#allocation10 + $0x30] sm:$0xff]
    %v122 = vld [vmem:[#allocation10 + $0x38] sm:$0xf]
    %v123 = vld [vmem:[#allocation10 + $0x3c] sm:$0xff]
    %v124 = vld [vmem:[#allocation10 + $0x44] sm:$0xf]
    %v125 = vld [vmem:[#allocation10 + $0x48] sm:$0xff]
    %v126 = vld [vmem:[#allocation10 + $0x50] sm:$0xf]
    %v127 = vld [vmem:[#allocation10 + $0x54] sm:$0xff]
    %v128 = vld [vmem:[#allocation10 + $0x5c] sm:$0xf]
    %v129 = vld [vmem:[#allocation10 + $0x60] sm:$0xff]
    %v130 = vld [vmem:[#allocation10 + $0x68] sm:$0xf]
    %v131 = vld [vmem:[#allocation10 + $0x6c] sm:$0xff]
    %v132 = vld [vmem:[#allocation10 + $0x74] sm:$0xf]
    %v133 = vld [vmem:[#allocation10 + $0x78] sm:$0xff]
    %v134 = vld [vmem:[#allocation10 + $0x80] sm:$0xf]
    %v135 = vld [vmem:[#allocation10 + $0x84] sm:$0xff]
    %v136 = vld [vmem:[#allocation10 + $0x8c] sm:$0xf]
    %v137 = vld [vmem:[#allocation10 + $0x90] sm:$0xff]
    %v138 = vld [vmem:[#allocation10 + $0x98] sm:$0xf]
    %v139 = vld [vmem:[#allocation10 + $0x9c] sm:$0xff]
    %v140 = vld [vmem:[#allocation10 + $0xa4] sm:$0xf]
    %v141 = vld [vmem:[#allocation10 + $0xa8] sm:$0xff]
    %v142 = vld [vmem:[#allocation10 + $0xb0] sm:$0xf]
    %v143 = vld [vmem:[#allocation10 + $0xb4] sm:$0xff]
    %v144 = vld [vmem:[#allocation10 + $0xbc] sm:$0xf]
    %v145 = vld [vmem:[%s5] sm:$0x7]
    %v146 = vld [vmem:[#allocation11] sm:$0xf]
    %v147 = vld [vmem:[#allocation11 + $0x4] sm:$0xf]
    %v148 = vld [vmem:[#allocation11 + $0x8] sm:$0xf]
    %v149 = vld [vmem:[#allocation11 + $0xc] sm:$0xf]
    %v150 = vld [vmem:[#allocation11 + $0x10] sm:$0xf]
    %v151 = vld [vmem:[#allocation11 + $0x14] sm:$0xf]
    %v152 = vld [vmem:[#allocation11 + $0x18] sm:$0xf]
    %v153 = vld [vmem:[#allocation11 + $0x1c] sm:$0xf]
    %v154 = vld [vmem:[#allocation11 + $0x20] sm:$0xf]
    %v155 = vld [vmem:[#allocation11 + $0x24] sm:$0xf]
    %v156 = vld [vmem:[#allocation11 + $0x28] sm:$0xf]
    %v157 = vld [vmem:[#allocation11 + $0x2c] sm:$0xf]
    %v158 = vld [vmem:[#allocation11 + $0x30] sm:$0xf]
    %v159 = vld [vmem:[#allocation11 + $0x34] sm:$0xf]
    %v160 = vld [vmem:[#allocation11 + $0x38] sm:$0xf]
    %v161 = vld [vmem:[#allocation11 + $0x3c] sm:$0xf]
    %v162 = vld [vmem:[%s7] sm:$0x1]
    %v163 = vld [vmem:[%s8] sm:$0x1]
    %v164 = vld [vmem:[#allocation5] sm:$0xf]
    %v165 = vld [vmem:[#allocation5 + $0x4] sm:$0xf]
    %v166 = vld [vmem:[#allocation5 + $0x8] sm:$0xf]
    %v167 = vld [vmem:[#allocation5 + $0xc] sm:$0xf]
    %v168 = vld [vmem:[#allocation5 + $0x10] sm:$0xf]
    %v169 = vld [vmem:[#allocation5 + $0x14] sm:$0xf]
    %v170 = vld [vmem:[#allocation5 + $0x18] sm:$0xf]
    %v171 = vld [vmem:[#allocation5 + $0x1c] sm:$0xf]
    %v173 = vlaneseq
    %v174 = vshrl.u32 %v173, 7
    %v175 = vsub.s32 0, %v174
    %v176 = vrot.slane %v112, %v175
    %v177 = vlaneseq
    %v178 = vshrl.u32 %v177, 7
    %v179 = vsub.s32 1, %v178
    %v180 = vrot.slane %v112, %v179
    %v181 = vlaneseq
    %v182 = vshrl.u32 %v181, 7
    %v183 = vsub.s32 2, %v182
    %v184 = vrot.slane %v112, %v183
    %v196 = vunpack.c.l.b16 %v164
    %v197 = vunpack.c.l.b16 %v165
    %v198 = vunpack.c.l.b16 %v166
    %v199 = vunpack.c.l.b16 %v167
    %v200 = vunpack.c.l.b16 %v168
    %v201 = vunpack.c.l.b16 %v169
    %v202 = vunpack.c.l.b16 %v170
    %v203 = vunpack.c.l.b16 %v171
    %v204 = vpack.c.b16 %v197, %v196
    %v205 = vpack.c.b16 %v199, %v198
    %v206 = vpack.c.b16 %v201, %v200
    %v207 = vpack.c.b16 %v203, %v202
    %v212 = vunpack.c.l.b16 %v108
    %v213 = vunpack.c.h.b16 %v108
    %v214 = vunpack.c.l.b16 %v109
    %v215 = vunpack.c.l.b16 %v110
    %v216 = vunpack.c.h.b16 %v110
    %v217 = vunpack.c.l.b16 %v111
    %v218 = vpack.c.b16 %v215, %v212
    %v219 = vpack.c.b16 %v216, %v213
    %v220 = vpack.c.b16 %v217, %v214
    %vm224 = vcmask 130048
    %v226 = vsel %vm224, %v204, 0
    %v229 = vsel %vm224, %v205, 0
    %v232 = vsel %vm224, %v206, 0
    %v235 = vsel %vm224, %v207, 0
    %237 = vmatprep.subr.bf16.mxu0 0
    %238 = vmatpush1.bf16.msra.mxu0 0
    %239 = vmatprep.subr.bf16.mxu0 0
    %240 = vmatpush1.bf16.msra.mxu0 0
    %241 = vmatprep.subr.bf16.mxu0 0
    %242 = vmatpush1.bf16.msra.mxu0 0
    %243 = vmatprep.subr.bf16.mxu0 0
    %244 = vmatpush1.bf16.msra.mxu0 0
    %245 = vmatprep.subr.bf16.mxu0 0
    %246 = vmatpush1.bf16.msra.mxu0 0
    %247 = vmatprep.subr.bf16.mxu0 0
    %248 = vmatpush1.bf16.msra.mxu0 0
    %249 = vmatprep.subr.bf16.mxu0 0
    %250 = vmatpush1.bf16.msra.mxu0 0
    %251 = vmatprep.subr.bf16.mxu0 %v219
    %252 = vmatpush1.bf16.msra.mxu0 %v218
    %253 = vmatprep.subr.bf16.mxu0 0
    %254 = vmatpush2.bf16.msra.mxu0 0
    %255 = vmatprep.subr.bf16.mxu0 0
    %256 = vmatpush2.bf16.msra.mxu0 0
    %257 = vmatprep.subr.bf16.mxu0 0
    %258 = vmatpush2.bf16.msra.mxu0 0
    %259 = vmatprep.subr.bf16.mxu0 0
    %260 = vmatpush2.bf16.msra.mxu0 0
    %261 = vmatprep.subr.bf16.mxu0 0
    %262 = vmatpush2.bf16.msra.mxu0 0
    %263 = vmatprep.subr.bf16.mxu0 0
    %264 = vmatpush2.bf16.msra.mxu0 0
    %265 = vmatprep.subr.bf16.mxu0 0
    %266 = vmatpush2.bf16.msra.mxu0 0
    %267 = vmatprep.subr.bf16.mxu0 0
    %268 = vmatpush2.bf16.msra.mxu0 0
    %269 = vmatprep.mubr.bf16.mxu0 0
    %270 = vmatmul.mubr.bf16.gmra.mxu0 %v226
    %v271 = vpop.f32.mrf.mxu0
    %v272 = vadd.f32 %v176, %v271
    %v273 = vpop.f32.mrf.mxu0
    %v274 = vadd.f32 %v180, %v273
    %v275 = vpop.f32.mrf.mxu0
    %v276 = vadd.f32 %v176, %v275
    %v277 = vpop.f32.mrf.mxu0
    %v278 = vadd.f32 %v180, %v277
    %279 = vmatprep.mubr.bf16.mxu0 0
    %280 = vmatmul.mubr.bf16.gmra.mxu0 %v229
    %v281 = vpop.f32.mrf.mxu0
    %v282 = vadd.f32 %v176, %v281
    %v283 = vpop.f32.mrf.mxu0
    %v284 = vadd.f32 %v180, %v283
    %v285 = vpop.f32.mrf.mxu0
    %v286 = vadd.f32 %v176, %v285
    %v287 = vpop.f32.mrf.mxu0
    %v288 = vadd.f32 %v180, %v287
    %289 = vmatprep.mubr.bf16.mxu0 0
    %290 = vmatmul.mubr.bf16.gmra.mxu0 %v232
    %v291 = vpop.f32.mrf.mxu0
    %v292 = vadd.f32 %v176, %v291
    %v293 = vpop.f32.mrf.mxu0
    %v294 = vadd.f32 %v180, %v293
    %v295 = vpop.f32.mrf.mxu0
    %v296 = vadd.f32 %v176, %v295
    %v297 = vpop.f32.mrf.mxu0
    %v298 = vadd.f32 %v180, %v297
    %299 = vmatprep.mubr.bf16.mxu0 0
    %300 = vmatmul.mubr.bf16.gmra.mxu0 %v235
    %v301 = vpop.f32.mrf.mxu0
    %v302 = vadd.f32 %v176, %v301
    %v303 = vpop.f32.mrf.mxu0
    %v304 = vadd.f32 %v180, %v303
    %v305 = vpop.f32.mrf.mxu0
    %v306 = vadd.f32 %v176, %v305
    %v307 = vpop.f32.mrf.mxu0
    %v308 = vadd.f32 %v180, %v307
    %309 = vdwg.mxu0
    %310 = vmatprep.subr.bf16.mxu0 0
    %311 = vmatpush1.bf16.msra.mxu0 0
    %312 = vmatprep.subr.bf16.mxu0 0
    %313 = vmatpush1.bf16.msra.mxu0 0
    %314 = vmatprep.subr.bf16.mxu0 0
    %315 = vmatpush1.bf16.msra.mxu0 0
    %316 = vmatprep.subr.bf16.mxu0 0
    %317 = vmatpush1.bf16.msra.mxu0 0
    %318 = vmatprep.subr.bf16.mxu0 0
    %319 = vmatpush1.bf16.msra.mxu0 0
    %320 = vmatprep.subr.bf16.mxu0 0
    %321 = vmatpush1.bf16.msra.mxu0 0
    %322 = vmatprep.subr.bf16.mxu0 0
    %323 = vmatpush1.bf16.msra.mxu0 0
    %324 = vmatprep.subr.bf16.mxu0 0
    %325 = vmatpush1.bf16.msra.mxu0 %v220
    %326 = vmatprep.subr.bf16.mxu0 0
    %327 = vmatpush2.bf16.msra.mxu0 0
    %328 = vmatprep.subr.bf16.mxu0 0
    %329 = vmatpush2.bf16.msra.mxu0 0
    %330 = vmatprep.subr.bf16.mxu0 0
    %331 = vmatpush2.bf16.msra.mxu0 0
    %332 = vmatprep.subr.bf16.mxu0 0
    %333 = vmatpush2.bf16.msra.mxu0 0
    %334 = vmatprep.subr.bf16.mxu0 0
    %335 = vmatpush2.bf16.msra.mxu0 0
    %336 = vmatprep.subr.bf16.mxu0 0
    %337 = vmatpush2.bf16.msra.mxu0 0
    %338 = vmatprep.subr.bf16.mxu0 0
    %339 = vmatpush2.bf16.msra.mxu0 0
    %340 = vmatprep.subr.bf16.mxu0 0
    %341 = vmatpush2.bf16.msra.mxu0 0
    %342 = vmatprep.mubr.bf16.mxu0 0
    %343 = vmatmul.mubr.bf16.gmra.mxu0 %v226
    %v344 = vpop.f32.mrf.mxu0
    %v345 = vadd.f32 %v184, %v344
    %v346 = vpop.f32.mrf.mxu0
    %v347 = vpop.f32.mrf.mxu0
    %v348 = vadd.f32 %v184, %v347
    %v349 = vpop.f32.mrf.mxu0
    %350 = vmatprep.mubr.bf16.mxu0 0
    %351 = vmatmul.mubr.bf16.gmra.mxu0 %v229
    %v352 = vpop.f32.mrf.mxu0
    %v353 = vadd.f32 %v184, %v352
    %v354 = vpop.f32.mrf.mxu0
    %v355 = vpop.f32.mrf.mxu0
    %v356 = vadd.f32 %v184, %v355
    %v357 = vpop.f32.mrf.mxu0
    %358 = vmatprep.mubr.bf16.mxu0 0
    %359 = vmatmul.mubr.bf16.gmra.mxu0 %v232
    %v360 = vpop.f32.mrf.mxu0
    %v361 = vadd.f32 %v184, %v360
    %v362 = vpop.f32.mrf.mxu0
    %v363 = vpop.f32.mrf.mxu0
    %v364 = vadd.f32 %v184, %v363
    %v365 = vpop.f32.mrf.mxu0
    %366 = vmatprep.mubr.bf16.mxu0 0
    %367 = vmatmul.mubr.bf16.gmra.mxu0 %v235
    %v368 = vpop.f32.mrf.mxu0
    %v369 = vadd.f32 %v184, %v368
    %v370 = vpop.f32.mrf.mxu0
    %v371 = vpop.f32.mrf.mxu0
    %v372 = vadd.f32 %v184, %v371
    %v373 = vpop.f32.mrf.mxu0
    %374 = vdwg.mxu0
    %v375 = vpack.c.bf16 %v272, %v272
    %v376 = vpack.c.bf16 %v274, %v274
    %v377 = vpack.c.bf16 %v345, %v345
    %v378 = vpack.c.bf16 %v276, %v276
    %v379 = vpack.c.bf16 %v278, %v278
    %v380 = vpack.c.bf16 %v348, %v348
    %v381 = vpack.c.bf16 %v282, %v282
    %v382 = vpack.c.bf16 %v284, %v284
    %v383 = vpack.c.bf16 %v353, %v353
    %v384 = vpack.c.bf16 %v286, %v286
    %v385 = vpack.c.bf16 %v288, %v288
    %v386 = vpack.c.bf16 %v356, %v356
    %v387 = vpack.c.bf16 %v292, %v292
    %v388 = vpack.c.bf16 %v294, %v294
    %v389 = vpack.c.bf16 %v361, %v361
    %v390 = vpack.c.bf16 %v296, %v296
    %v391 = vpack.c.bf16 %v298, %v298
    %v392 = vpack.c.bf16 %v364, %v364
    %v393 = vpack.c.bf16 %v302, %v302
    %v394 = vpack.c.bf16 %v304, %v304
    %v395 = vpack.c.bf16 %v369, %v369
    %v396 = vpack.c.bf16 %v306, %v306
    %v397 = vpack.c.bf16 %v308, %v308
    %v398 = vpack.c.bf16 %v372, %v372
    %v423 = vunpack.c.l.b16 %v375
    %v424 = vunpack.c.l.b16 %v376
    %v425 = vunpack.c.l.b16 %v377
    %v426 = vunpack.c.l.b16 %v378
    %v427 = vunpack.c.l.b16 %v379
    %v428 = vunpack.c.l.b16 %v380
    %v429 = vunpack.c.l.b16 %v381
    %v430 = vunpack.c.l.b16 %v382
    %v431 = vunpack.c.l.b16 %v383
    %v432 = vunpack.c.l.b16 %v384
    %v433 = vunpack.c.l.b16 %v385
    %v434 = vunpack.c.l.b16 %v386
    %v435 = vunpack.c.l.b16 %v387
    %v436 = vunpack.c.l.b16 %v388
    %v437 = vunpack.c.l.b16 %v389
    %v438 = vunpack.c.l.b16 %v390
    %v439 = vunpack.c.l.b16 %v391
    %v440 = vunpack.c.l.b16 %v392
    %v441 = vunpack.c.l.b16 %v393
    %v442 = vunpack.c.l.b16 %v394
    %v443 = vunpack.c.l.b16 %v395
    %v444 = vunpack.c.l.b16 %v396
    %v445 = vunpack.c.l.b16 %v397
    %v446 = vunpack.c.l.b16 %v398
    %v447 = vpack.c.b16 %v424, %v423
    %v448 = vpack.c.b16 %v425, %v425
    %v449 = vpack.c.b16 %v427, %v426
    %v450 = vpack.c.b16 %v428, %v428
    %v451 = vpack.c.b16 %v430, %v429
    %v452 = vpack.c.b16 %v431, %v431
    %v453 = vpack.c.b16 %v433, %v432
    %v454 = vpack.c.b16 %v434, %v434
    %v455 = vpack.c.b16 %v436, %v435
    %v456 = vpack.c.b16 %v437, %v437
    %v457 = vpack.c.b16 %v439, %v438
    %v458 = vpack.c.b16 %v440, %v440
    %v459 = vpack.c.b16 %v442, %v441
    %v460 = vpack.c.b16 %v443, %v443
    %v461 = vpack.c.b16 %v445, %v444
    %v462 = vpack.c.b16 %v446, %v446
    %s479 = smul.u32 0, 3
    %s480 = smul.addr %s479, 4
    %s481 = scalar_lea.vmem [#allocation2], %s480
    %482 = vst [vmem:[%s481] sm:$0xff] %v447
    %483 = vst [vmem:[%s481 + $0x8] sm:$0xf] %v448
    %484 = vst [vmem:[%s481 + $0xc] sm:$0xff] %v449
    %485 = vst [vmem:[%s481 + $0x14] sm:$0xf] %v450
    %486 = vst [vmem:[%s481 + $0x18] sm:$0xff] %v451
    %487 = vst [vmem:[%s481 + $0x20] sm:$0xf] %v452
    %488 = vst [vmem:[%s481 + $0x24] sm:$0xff] %v453
    %489 = vst [vmem:[%s481 + $0x2c] sm:$0xf] %v454
    %490 = vst [vmem:[%s481 + $0x30] sm:$0xff] %v455
    %491 = vst [vmem:[%s481 + $0x38] sm:$0xf] %v456
    %492 = vst [vmem:[%s481 + $0x3c] sm:$0xff] %v457
    %493 = vst [vmem:[%s481 + $0x44] sm:$0xf] %v458
    %494 = vst [vmem:[%s481 + $0x48] sm:$0xff] %v459
    %495 = vst [vmem:[%s481 + $0x50] sm:$0xf] %v460
    %496 = vst [vmem:[%s481 + $0x54] sm:$0xff] %v461
    %497 = vst [vmem:[%s481 + $0x5c] sm:$0xf] %v462
    %v498 = vld [vmem:[#allocation2] sm:$0xff]
    %v499 = vld [vmem:[#allocation2 + $0x8] sm:$0xf]
    %v500 = vunpack.c.l.bf16 %v498
    %v501 = vunpack.c.h.bf16 %v498
    %v502 = vunpack.c.l.bf16 %v499
    %v504 = vlaneseq
    %v505 = vshrl.u32 %v504, 7
    %v506 = vsub.s32 0, %v505
    %v507 = vrot.slane %v145, %v506
    %v508 = vlaneseq
    %v509 = vshrl.u32 %v508, 7
    %v510 = vsub.s32 1, %v509
    %v511 = vrot.slane %v145, %v510
    %v512 = vlaneseq
    %v513 = vshrl.u32 %v512, 7
    %v514 = vsub.s32 2, %v513
    %v515 = vrot.slane %v145, %v514
    %v551 = vunpack.c.l.b16 %v113
    %v552 = vunpack.c.h.b16 %v113
    %v553 = vunpack.c.l.b16 %v114
    %v554 = vunpack.c.l.b16 %v115
    %v555 = vunpack.c.h.b16 %v115
    %v556 = vunpack.c.l.b16 %v116
    %v557 = vunpack.c.l.b16 %v117
    %v558 = vunpack.c.h.b16 %v117
    %v559 = vunpack.c.l.b16 %v118
    %v560 = vunpack.c.l.b16 %v119
    %v561 = vunpack.c.h.b16 %v119
    %v562 = vunpack.c.l.b16 %v120
    %v563 = vunpack.c.l.b16 %v121
    %v564 = vunpack.c.h.b16 %v121
    %v565 = vunpack.c.l.b16 %v122
    %v566 = vunpack.c.l.b16 %v123
    %v567 = vunpack.c.h.b16 %v123
    %v568 = vunpack.c.l.b16 %v124
    %v569 = vunpack.c.l.b16 %v125
    %v570 = vunpack.c.h.b16 %v125
    %v571 = vunpack.c.l.b16 %v126
    %v572 = vunpack.c.l.b16 %v127
    %v573 = vunpack.c.h.b16 %v127
    %v574 = vunpack.c.l.b16 %v128
    %v575 = vunpack.c.l.b16 %v129
    %v576 = vunpack.c.h.b16 %v129
    %v577 = vunpack.c.l.b16 %v130
    %v578 = vunpack.c.l.b16 %v131
    %v579 = vunpack.c.h.b16 %v131
    %v580 = vunpack.c.l.b16 %v132
    %v581 = vunpack.c.l.b16 %v133
    %v582 = vunpack.c.h.b16 %v133
    %v583 = vunpack.c.l.b16 %v134
    %v584 = vunpack.c.l.b16 %v135
    %v585 = vunpack.c.h.b16 %v135
    %v586 = vunpack.c.l.b16 %v136
    %v587 = vunpack.c.l.b16 %v137
    %v588 = vunpack.c.h.b16 %v137
    %v589 = vunpack.c.l.b16 %v138
    %v590 = vunpack.c.l.b16 %v139
    %v591 = vunpack.c.h.b16 %v139
    %v592 = vunpack.c.l.b16 %v140
    %v593 = vunpack.c.l.b16 %v141
    %v594 = vunpack.c.h.b16 %v141
    %v595 = vunpack.c.l.b16 %v142
    %v596 = vunpack.c.l.b16 %v143
    %v597 = vunpack.c.h.b16 %v143
    %v598 = vunpack.c.l.b16 %v144
    %v599 = vpack.c.b16 %v554, %v551
    %v600 = vpack.c.b16 %v555, %v552
    %v601 = vpack.c.b16 %v556, %v553
    %v602 = vpack.c.b16 %v560, %v557
    %v603 = vpack.c.b16 %v561, %v558
    %v604 = vpack.c.b16 %v562, %v559
    %v605 = vpack.c.b16 %v566, %v563
    %v606 = vpack.c.b16 %v567, %v564
    %v607 = vpack.c.b16 %v568, %v565
    %v608 = vpack.c.b16 %v572, %v569
    %v609 = vpack.c.b16 %v573, %v570
    %v610 = vpack.c.b16 %v574, %v571
    %v611 = vpack.c.b16 %v578, %v575
    %v612 = vpack.c.b16 %v579, %v576
    %v613 = vpack.c.b16 %v580, %v577
    %v614 = vpack.c.b16 %v584, %v581
    %v615 = vpack.c.b16 %v585, %v582
    %v616 = vpack.c.b16 %v586, %v583
    %v617 = vpack.c.b16 %v590, %v587
    %v618 = vpack.c.b16 %v591, %v588
    %v619 = vpack.c.b16 %v592, %v589
    %v620 = vpack.c.b16 %v596, %v593
    %v621 = vpack.c.b16 %v597, %v594
    %v622 = vpack.c.b16 %v598, %v595
    %647 = vmatprep.subr.bf16.mxu0 %v621
    %648 = vmatpush1.bf16.msra.mxu0 %v620
    %649 = vmatprep.subr.bf16.mxu0 %v618
    %650 = vmatpush1.bf16.msra.mxu0 %v617
    %651 = vmatprep.subr.bf16.mxu0 %v615
    %652 = vmatpush1.bf16.msra.mxu0 %v614
    %653 = vmatprep.subr.bf16.mxu0 %v612
    %654 = vmatpush1.bf16.msra.mxu0 %v611
    %655 = vmatprep.subr.bf16.mxu0 %v609
    %656 = vmatpush1.bf16.msra.mxu0 %v608
    %657 = vmatprep.subr.bf16.mxu0 %v606
    %658 = vmatpush1.bf16.msra.mxu0 %v605
    %659 = vmatprep.subr.bf16.mxu0 %v603
    %660 = vmatpush1.bf16.msra.mxu0 %v602
    %661 = vmatprep.subr.bf16.mxu0 %v600
    %662 = vmatpush1.bf16.msra.mxu0 %v599
    %663 = vmatprep.subr.bf16.mxu0 0
    %664 = vmatpush2.bf16.msra.mxu0 0
    %665 = vmatprep.subr.bf16.mxu0 0
    %666 = vmatpush2.bf16.msra.mxu0 0
    %667 = vmatprep.subr.bf16.mxu0 0
    %668 = vmatpush2.bf16.msra.mxu0 0
    %669 = vmatprep.subr.bf16.mxu0 0
    %670 = vmatpush2.bf16.msra.mxu0 0
    %671 = vmatprep.subr.bf16.mxu0 0
    %672 = vmatpush2.bf16.msra.mxu0 0
    %673 = vmatprep.subr.bf16.mxu0 0
    %674 = vmatpush2.bf16.msra.mxu0 0
    %675 = vmatprep.subr.bf16.mxu0 0
    %676 = vmatpush2.bf16.msra.mxu0 0
    %677 = vmatprep.subr.bf16.mxu0 0
    %678 = vmatpush2.bf16.msra.mxu0 0
    %679 = vmatprep.mubr.bf16.mxu0 0
    %680 = vmatmul.mubr.bf16.gmra.mxu0 0
    %v681 = vpop.f32.mrf.mxu0
    %v682 = vadd.f32 %v507, %v681
    %v683 = vpop.f32.mrf.mxu0
    %v684 = vadd.f32 %v511, %v683
    %v685 = vpop.f32.mrf.mxu0
    %v686 = vpop.f32.mrf.mxu0
    %687 = vdwg.mxu0
    %688 = vmatprep.subr.bf16.mxu0 0
    %689 = vmatpush1.bf16.msra.mxu0 %v622
    %690 = vmatprep.subr.bf16.mxu0 0
    %691 = vmatpush1.bf16.msra.mxu0 %v619
    %692 = vmatprep.subr.bf16.mxu0 0
    %693 = vmatpush1.bf16.msra.mxu0 %v616
    %694 = vmatprep.subr.bf16.mxu0 0
    %695 = vmatpush1.bf16.msra.mxu0 %v613
    %696 = vmatprep.subr.bf16.mxu0 0
    %697 = vmatpush1.bf16.msra.mxu0 %v610
    %698 = vmatprep.subr.bf16.mxu0 0
    %699 = vmatpush1.bf16.msra.mxu0 %v607
    %700 = vmatprep.subr.bf16.mxu0 0
    %701 = vmatpush1.bf16.msra.mxu0 %v604
    %702 = vmatprep.subr.bf16.mxu0 0
    %703 = vmatpush1.bf16.msra.mxu0 %v601
    %704 = vmatprep.subr.bf16.mxu0 0
    %705 = vmatpush2.bf16.msra.mxu0 0
    %706 = vmatprep.subr.bf16.mxu0 0
    %707 = vmatpush2.bf16.msra.mxu0 0
    %708 = vmatprep.subr.bf16.mxu0 0
    %709 = vmatpush2.bf16.msra.mxu0 0
    %710 = vmatprep.subr.bf16.mxu0 0
    %711 = vmatpush2.bf16.msra.mxu0 0
    %712 = vmatprep.subr.bf16.mxu0 0
    %713 = vmatpush2.bf16.msra.mxu0 0
    %714 = vmatprep.subr.bf16.mxu0 0
    %715 = vmatpush2.bf16.msra.mxu0 0
    %716 = vmatprep.subr.bf16.mxu0 0
    %717 = vmatpush2.bf16.msra.mxu0 0
    %718 = vmatprep.subr.bf16.mxu0 0
    %719 = vmatpush2.bf16.msra.mxu0 0
    %720 = vmatprep.mubr.bf16.mxu0 0
    %721 = vmatmul.mubr.bf16.gmra.mxu0 0
    %v722 = vpop.f32.mrf.mxu0
    %v723 = vadd.f32 %v515, %v722
    %v724 = vpop.f32.mrf.mxu0
    %v725 = vpop.f32.mrf.mxu0
    %v726 = vpop.f32.mrf.mxu0
    %727 = vdwg.mxu0
    %v728 = vadd.f32 %v500, %v682
    %v729 = vxor.u32 %v728, 2147483648
    %v730 = vmul.f32 %v729, 1.442695
    %v731 = vpow.pop %v730
    %v732 = vadd.f32 %v731, 1.0
    %v733 = vrcp.pop %v732
    %v734 = vmul.f32 1.0, %v733
    %v735 = vadd.f32 %v501, %v684
    %v736 = vxor.u32 %v735, 2147483648
    %v737 = vmul.f32 %v736, 1.442695
    %v738 = vpow.pop %v737
    %v739 = vadd.f32 %v738, 1.0
    %v740 = vrcp.pop %v739
    %v741 = vmul.f32 1.0, %v740
    %v742 = vmul.f32 %v734, %v723
    %v743 = vadd.f32 %v502, %v742
    %v744 = vtanh.pop %v743
    %v745 = vsub.f32 1.0, %v741
    %v746 = vmul.f32 %v745, %v744
    %v747 = vmul.f32 %v741, 0.0
    %v748 = vadd.f32 %v746, %v747
    %v749 = vpack.c.bf16 %v748, %v748
    %750 = vst [vmem:[#allocation3] sm:$0xf] %v749
    %s751 = scalar_lea.vmem [#allocation2], 12
    %v752 = vld [vmem:[%s751] sm:$0xff]
    %v753 = vld [vmem:[%s751 + $0x8] sm:$0xf]
    %v754 = vunpack.c.l.bf16 %v752
    %v755 = vunpack.c.h.bf16 %v752
    %v756 = vunpack.c.l.bf16 %v753
    %757 = vmatprep.subr.bf16.mxu0 %v621
    %758 = vmatpush1.bf16.msra.mxu0 %v620
    %759 = vmatprep.subr.bf16.mxu0 %v618
    %760 = vmatpush1.bf16.msra.mxu0 %v617
    %761 = vmatprep.subr.bf16.mxu0 %v615
    %762 = vmatpush1.bf16.msra.mxu0 %v614
    %763 = vmatprep.subr.bf16.mxu0 %v612
    %764 = vmatpush1.bf16.msra.mxu0 %v611
    %765 = vmatprep.subr.bf16.mxu0 %v609
    %766 = vmatpush1.bf16.msra.mxu0 %v608
    %767 = vmatprep.subr.bf16.mxu0 %v606
    %768 = vmatpush1.bf16.msra.mxu0 %v605
    %769 = vmatprep.subr.bf16.mxu0 %v603
    %770 = vmatpush1.bf16.msra.mxu0 %v602
    %771 = vmatprep.subr.bf16.mxu0 %v600
    %772 = vmatpush1.bf16.msra.mxu0 %v599
    %773 = vmatprep.subr.bf16.mxu0 0
    %774 = vmatpush2.bf16.msra.mxu0 0
    %775 = vmatprep.subr.bf16.mxu0 0
    %776 = vmatpush2.bf16.msra.mxu0 0
    %777 = vmatprep.subr.bf16.mxu0 0
    %778 = vmatpush2.bf16.msra.mxu0 0
    %779 = vmatprep.subr.bf16.mxu0 0
    %780 = vmatpush2.bf16.msra.mxu0 0
    %781 = vmatprep.subr.bf16.mxu0 0
    %782 = vmatpush2.bf16.msra.mxu0 0
    %783 = vmatprep.subr.bf16.mxu0 0
    %784 = vmatpush2.bf16.msra.mxu0 0
    %785 = vmatprep.subr.bf16.mxu0 0
    %786 = vmatpush2.bf16.msra.mxu0 0
    %787 = vmatprep.subr.bf16.mxu0 0
    %788 = vmatpush2.bf16.msra.mxu0 0
    %789 = vmatprep.mubr.bf16.mxu0 0
    %790 = vmatmul.mubr.bf16.gmra.mxu0 %v749
    %v791 = vpop.f32.mrf.mxu0
    %v792 = vadd.f32 %v507, %v791
    %v793 = vpop.f32.mrf.mxu0
    %v794 = vadd.f32 %v511, %v793
    %v795 = vpop.f32.mrf.mxu0
    %v796 = vpop.f32.mrf.mxu0
    %797 = vdwg.mxu0
    %798 = vmatprep.subr.bf16.mxu0 0
    %799 = vmatpush1.bf16.msra.mxu0 %v622
    %800 = vmatprep.subr.bf16.mxu0 0
    %801 = vmatpush1.bf16.msra.mxu0 %v619
    %802 = vmatprep.subr.bf16.mxu0 0
    %803 = vmatpush1.bf16.msra.mxu0 %v616
    %804 = vmatprep.subr.bf16.mxu0 0
    %805 = vmatpush1.bf16.msra.mxu0 %v613
    %806 = vmatprep.subr.bf16.mxu0 0
    %807 = vmatpush1.bf16.msra.mxu0 %v610
    %808 = vmatprep.subr.bf16.mxu0 0
    %809 = vmatpush1.bf16.msra.mxu0 %v607
    %810 = vmatprep.subr.bf16.mxu0 0
    %811 = vmatpush1.bf16.msra.mxu0 %v604
    %812 = vmatprep.subr.bf16.mxu0 0
    %813 = vmatpush1.bf16.msra.mxu0 %v601
    %814 = vmatprep.subr.bf16.mxu0 0
    %815 = vmatpush2.bf16.msra.mxu0 0
    %816 = vmatprep.subr.bf16.mxu0 0
    %817 = vmatpush2.bf16.msra.mxu0 0
    %818 = vmatprep.subr.bf16.mxu0 0
    %819 = vmatpush2.bf16.msra.mxu0 0
    %820 = vmatprep.subr.bf16.mxu0 0
    %821 = vmatpush2.bf16.msra.mxu0 0
    %822 = vmatprep.subr.bf16.mxu0 0
    %823 = vmatpush2.bf16.msra.mxu0 0
    %824 = vmatprep.subr.bf16.mxu0 0
    %825 = vmatpush2.bf16.msra.mxu0 0
    %826 = vmatprep.subr.bf16.mxu0 0
    %827 = vmatpush2.bf16.msra.mxu0 0
    %828 = vmatprep.subr.bf16.mxu0 0
    %829 = vmatpush2.bf16.msra.mxu0 0
    %830 = vmatprep.mubr.bf16.mxu0 0
    %831 = vmatmul.mubr.bf16.gmra.mxu0 %v749
    %v832 = vpop.f32.mrf.mxu0
    %v833 = vadd.f32 %v515, %v832
    %v834 = vpop.f32.mrf.mxu0
    %v835 = vpop.f32.mrf.mxu0
    %v836 = vpop.f32.mrf.mxu0
    %837 = vdwg.mxu0
    %v838 = vadd.f32 %v754, %v792
    %v839 = vxor.u32 %v838, 2147483648
    %v840 = vmul.f32 %v839, 1.442695
    %v841 = vpow.pop %v840
    %v842 = vadd.f32 %v841, 1.0
    %v843 = vrcp.pop %v842
    %v844 = vmul.f32 1.0, %v843
    %v845 = vadd.f32 %v755, %v794
    %v846 = vxor.u32 %v845, 2147483648
    %v847 = vmul.f32 %v846, 1.442695
    %v848 = vpow.pop %v847
    %v849 = vadd.f32 %v848, 1.0
    %v850 = vrcp.pop %v849
    %v851 = vmul.f32 1.0, %v850
    %v852 = vmul.f32 %v844, %v833
    %v853 = vadd.f32 %v756, %v852
    %v854 = vtanh.pop %v853
    %v855 = vsub.f32 1.0, %v851
    %v856 = vmul.f32 %v855, %v854
    %v857 = vmul.f32 %v851, %v748
    %v858 = vadd.f32 %v856, %v857
    %v859 = vpack.c.bf16 %v858, %v858
    %s860 = scalar_lea.vmem [#allocation3], 4
    %861 = vst [vmem:[%s860] sm:$0xf] %v859
    %s862 = scalar_lea.vmem [#allocation2], 24
    %v863 = vld [vmem:[%s862] sm:$0xff]
    %v864 = vld [vmem:[%s862 + $0x8] sm:$0xf]
    %v865 = vunpack.c.l.bf16 %v863
    %v866 = vunpack.c.h.bf16 %v863
    %v867 = vunpack.c.l.bf16 %v864
    %868 = vmatprep.subr.bf16.mxu0 %v621
    %869 = vmatpush1.bf16.msra.mxu0 %v620
    %870 = vmatprep.subr.bf16.mxu0 %v618
    %871 = vmatpush1.bf16.msra.mxu0 %v617
    %872 = vmatprep.subr.bf16.mxu0 %v615
    %873 = vmatpush1.bf16.msra.mxu0 %v614
    %874 = vmatprep.subr.bf16.mxu0 %v612
    %875 = vmatpush1.bf16.msra.mxu0 %v611
    %876 = vmatprep.subr.bf16.mxu0 %v609
    %877 = vmatpush1.bf16.msra.mxu0 %v608
    %878 = vmatprep.subr.bf16.mxu0 %v606
    %879 = vmatpush1.bf16.msra.mxu0 %v605
    %880 = vmatprep.subr.bf16.mxu0 %v603
    %881 = vmatpush1.bf16.msra.mxu0 %v602
    %882 = vmatprep.subr.bf16.mxu0 %v600
    %883 = vmatpush1.bf16.msra.mxu0 %v599
    %884 = vmatprep.subr.bf16.mxu0 0
    %885 = vmatpush2.bf16.msra.mxu0 0
    %886 = vmatprep.subr.bf16.mxu0 0
    %887 = vmatpush2.bf16.msra.mxu0 0
    %888 = vmatprep.subr.bf16.mxu0 0
    %889 = vmatpush2.bf16.msra.mxu0 0
    %890 = vmatprep.subr.bf16.mxu0 0
    %891 = vmatpush2.bf16.msra.mxu0 0
    %892 = vmatprep.subr.bf16.mxu0 0
    %893 = vmatpush2.bf16.msra.mxu0 0
    %894 = vmatprep.subr.bf16.mxu0 0
    %895 = vmatpush2.bf16.msra.mxu0 0
    %896 = vmatprep.subr.bf16.mxu0 0
    %897 = vmatpush2.bf16.msra.mxu0 0
    %898 = vmatprep.subr.bf16.mxu0 0
    %899 = vmatpush2.bf16.msra.mxu0 0
    %900 = vmatprep.mubr.bf16.mxu0 0
    %901 = vmatmul.mubr.bf16.gmra.mxu0 %v859
    %v902 = vpop.f32.mrf.mxu0
    %v903 = vadd.f32 %v507, %v902
    %v904 = vpop.f32.mrf.mxu0
    %v905 = vadd.f32 %v511, %v904
    %v906 = vpop.f32.mrf.mxu0
    %v907 = vpop.f32.mrf.mxu0
    %908 = vdwg.mxu0
    %909 = vmatprep.subr.bf16.mxu0 0
    %910 = vmatpush1.bf16.msra.mxu0 %v622
    %911 = vmatprep.subr.bf16.mxu0 0
    %912 = vmatpush1.bf16.msra.mxu0 %v619
    %913 = vmatprep.subr.bf16.mxu0 0
    %914 = vmatpush1.bf16.msra.mxu0 %v616
    %915 = vmatprep.subr.bf16.mxu0 0
    %916 = vmatpush1.bf16.msra.mxu0 %v613
    %917 = vmatprep.subr.bf16.mxu0 0
    %918 = vmatpush1.bf16.msra.mxu0 %v610
    %919 = vmatprep.subr.bf16.mxu0 0
    %920 = vmatpush1.bf16.msra.mxu0 %v607
    %921 = vmatprep.subr.bf16.mxu0 0
    %922 = vmatpush1.bf16.msra.mxu0 %v604
    %923 = vmatprep.subr.bf16.mxu0 0
    %924 = vmatpush1.bf16.msra.mxu0 %v601
    %925 = vmatprep.subr.bf16.mxu0 0
    %926 = vmatpush2.bf16.msra.mxu0 0
    %927 = vmatprep.subr.bf16.mxu0 0
    %928 = vmatpush2.bf16.msra.mxu0 0
    %929 = vmatprep.subr.bf16.mxu0 0
    %930 = vmatpush2.bf16.msra.mxu0 0
    %931 = vmatprep.subr.bf16.mxu0 0
    %932 = vmatpush2.bf16.msra.mxu0 0
    %933 = vmatprep.subr.bf16.mxu0 0
    %934 = vmatpush2.bf16.msra.mxu0 0
    %935 = vmatprep.subr.bf16.mxu0 0
    %936 = vmatpush2.bf16.msra.mxu0 0
    %937 = vmatprep.subr.bf16.mxu0 0
    %938 = vmatpush2.bf16.msra.mxu0 0
    %939 = vmatprep.subr.bf16.mxu0 0
    %940 = vmatpush2.bf16.msra.mxu0 0
    %941 = vmatprep.mubr.bf16.mxu0 0
    %942 = vmatmul.mubr.bf16.gmra.mxu0 %v859
    %v943 = vpop.f32.mrf.mxu0
    %v944 = vadd.f32 %v515, %v943
    %v945 = vpop.f32.mrf.mxu0
    %v946 = vpop.f32.mrf.mxu0
    %v947 = vpop.f32.mrf.mxu0
    %948 = vdwg.mxu0
    %v949 = vadd.f32 %v865, %v903
    %v950 = vxor.u32 %v949, 2147483648
    %v951 = vmul.f32 %v950, 1.442695
    %v952 = vpow.pop %v951
    %v953 = vadd.f32 %v952, 1.0
    %v954 = vrcp.pop %v953
    %v955 = vmul.f32 1.0, %v954
    %v956 = vadd.f32 %v866, %v905
    %v957 = vxor.u32 %v956, 2147483648
    %v958 = vmul.f32 %v957, 1.442695
    %v959 = vpow.pop %v958
    %v960 = vadd.f32 %v959, 1.0
    %v961 = vrcp.pop %v960
    %v962 = vmul.f32 1.0, %v961
    %v963 = vmul.f32 %v955, %v944
    %v964 = vadd.f32 %v867, %v963
    %v965 = vtanh.pop %v964
    %v966 = vsub.f32 1.0, %v962
    %v967 = vmul.f32 %v966, %v965
    %v968 = vmul.f32 %v962, %v858
    %v969 = vadd.f32 %v967, %v968
    %v970 = vpack.c.bf16 %v969, %v969
    %s971 = scalar_lea.vmem [#allocation3], 8
    %972 = vst [vmem:[%s971] sm:$0xf] %v970
    %s973 = scalar_lea.vmem [#allocation2], 36
    %v974 = vld [vmem:[%s973] sm:$0xff]
    %v975 = vld [vmem:[%s973 + $0x8] sm:$0xf]
    %v976 = vunpack.c.l.bf16 %v974
    %v977 = vunpack.c.h.bf16 %v974
    %v978 = vunpack.c.l.bf16 %v975
    %979 = vmatprep.subr.bf16.mxu0 %v621
    %980 = vmatpush1.bf16.msra.mxu0 %v620
    %981 = vmatprep.subr.bf16.mxu0 %v618
    %982 = vmatpush1.bf16.msra.mxu0 %v617
    %983 = vmatprep.subr.bf16.mxu0 %v615
    %984 = vmatpush1.bf16.msra.mxu0 %v614
    %985 = vmatprep.subr.bf16.mxu0 %v612
    %986 = vmatpush1.bf16.msra.mxu0 %v611
    %987 = vmatprep.subr.bf16.mxu0 %v609
    %988 = vmatpush1.bf16.msra.mxu0 %v608
    %989 = vmatprep.subr.bf16.mxu0 %v606
    %990 = vmatpush1.bf16.msra.mxu0 %v605
    %991 = vmatprep.subr.bf16.mxu0 %v603
    %992 = vmatpush1.bf16.msra.mxu0 %v602
    %993 = vmatprep.subr.bf16.mxu0 %v600
    %994 = vmatpush1.bf16.msra.mxu0 %v599
    %995 = vmatprep.subr.bf16.mxu0 0
    %996 = vmatpush2.bf16.msra.mxu0 0
    %997 = vmatprep.subr.bf16.mxu0 0
    %998 = vmatpush2.bf16.msra.mxu0 0
    %999 = vmatprep.subr.bf16.mxu0 0
    %1000 = vmatpush2.bf16.msra.mxu0 0
    %1001 = vmatprep.subr.bf16.mxu0 0
    %1002 = vmatpush2.bf16.msra.mxu0 0
    %1003 = vmatprep.subr.bf16.mxu0 0
    %1004 = vmatpush2.bf16.msra.mxu0 0
    %1005 = vmatprep.subr.bf16.mxu0 0
    %1006 = vmatpush2.bf16.msra.mxu0 0
    %1007 = vmatprep.subr.bf16.mxu0 0
    %1008 = vmatpush2.bf16.msra.mxu0 0
    %1009 = vmatprep.subr.bf16.mxu0 0
    %1010 = vmatpush2.bf16.msra.mxu0 0
    %1011 = vmatprep.mubr.bf16.mxu0 0
    %1012 = vmatmul.mubr.bf16.gmra.mxu0 %v970
    %v1013 = vpop.f32.mrf.mxu0
    %v1014 = vadd.f32 %v507, %v1013
    %v1015 = vpop.f32.mrf.mxu0
    %v1016 = vadd.f32 %v511, %v1015
    %v1017 = vpop.f32.mrf.mxu0
    %v1018 = vpop.f32.mrf.mxu0
    %1019 = vdwg.mxu0
    %1020 = vmatprep.subr.bf16.mxu0 0
    %1021 = vmatpush1.bf16.msra.mxu0 %v622
    %1022 = vmatprep.subr.bf16.mxu0 0
    %1023 = vmatpush1.bf16.msra.mxu0 %v619
    %1024 = vmatprep.subr.bf16.mxu0 0
    %1025 = vmatpush1.bf16.msra.mxu0 %v616
    %1026 = vmatprep.subr.bf16.mxu0 0
    %1027 = vmatpush1.bf16.msra.mxu0 %v613
    %1028 = vmatprep.subr.bf16.mxu0 0
    %1029 = vmatpush1.bf16.msra.mxu0 %v610
    %1030 = vmatprep.subr.bf16.mxu0 0
    %1031 = vmatpush1.bf16.msra.mxu0 %v607
    %1032 = vmatprep.subr.bf16.mxu0 0
    %1033 = vmatpush1.bf16.msra.mxu0 %v604
    %1034 = vmatprep.subr.bf16.mxu0 0
    %1035 = vmatpush1.bf16.msra.mxu0 %v601
    %1036 = vmatprep.subr.bf16.mxu0 0
    %1037 = vmatpush2.bf16.msra.mxu0 0
    %1038 = vmatprep.subr.bf16.mxu0 0
    %1039 = vmatpush2.bf16.msra.mxu0 0
    %1040 = vmatprep.subr.bf16.mxu0 0
    %1041 = vmatpush2.bf16.msra.mxu0 0
    %1042 = vmatprep.subr.bf16.mxu0 0
    %1043 = vmatpush2.bf16.msra.mxu0 0
    %1044 = vmatprep.subr.bf16.mxu0 0
    %1045 = vmatpush2.bf16.msra.mxu0 0
    %1046 = vmatprep.subr.bf16.mxu0 0
    %1047 = vmatpush2.bf16.msra.mxu0 0
    %1048 = vmatprep.subr.bf16.mxu0 0
    %1049 = vmatpush2.bf16.msra.mxu0 0
    %1050 = vmatprep.subr.bf16.mxu0 0
    %1051 = vmatpush2.bf16.msra.mxu0 0
    %1052 = vmatprep.mubr.bf16.mxu0 0
    %1053 = vmatmul.mubr.bf16.gmra.mxu0 %v970
    %v1054 = vpop.f32.mrf.mxu0
    %v1055 = vadd.f32 %v515, %v1054
    %v1056 = vpop.f32.mrf.mxu0
    %v1057 = vpop.f32.mrf.mxu0
    %v1058 = vpop.f32.mrf.mxu0
    %1059 = vdwg.mxu0
    %v1060 = vadd.f32 %v976, %v1014
    %v1061 = vxor.u32 %v1060, 2147483648
    %v1062 = vmul.f32 %v1061, 1.442695
    %v1063 = vpow.pop %v1062
    %v1064 = vadd.f32 %v1063, 1.0
    %v1065 = vrcp.pop %v1064
    %v1066 = vmul.f32 1.0, %v1065
    %v1067 = vadd.f32 %v977, %v1016
    %v1068 = vxor.u32 %v1067, 2147483648
    %v1069 = vmul.f32 %v1068, 1.442695
    %v1070 = vpow.pop %v1069
    %v1071 = vadd.f32 %v1070, 1.0
    %v1072 = vrcp.pop %v1071
    %v1073 = vmul.f32 1.0, %v1072
    %v1074 = vmul.f32 %v1066, %v1055
    %v1075 = vadd.f32 %v978, %v1074
    %v1076 = vtanh.pop %v1075
    %v1077 = vsub.f32 1.0, %v1073
    %v1078 = vmul.f32 %v1077, %v1076
    %v1079 = vmul.f32 %v1073, %v969
    %v1080 = vadd.f32 %v1078, %v1079
    %v1081 = vpack.c.bf16 %v1080, %v1080
    %s1082 = scalar_lea.vmem [#allocation3], 12
    %1083 = vst [vmem:[%s1082] sm:$0xf] %v1081
    %s1084 = scalar_lea.vmem [#allocation2], 48
    %v1085 = vld [vmem:[%s1084] sm:$0xff]
    %v1086 = vld [vmem:[%s1084 + $0x8] sm:$0xf]
    %v1087 = vunpack.c.l.bf16 %v1085
    %v1088 = vunpack.c.h.bf16 %v1085
    %v1089 = vunpack.c.l.bf16 %v1086
    %1090 = vmatprep.subr.bf16.mxu0 %v621
    %1091 = vmatpush1.bf16.msra.mxu0 %v620
    %1092 = vmatprep.subr.bf16.mxu0 %v618
    %1093 = vmatpush1.bf16.msra.mxu0 %v617
    %1094 = vmatprep.subr.bf16.mxu0 %v615
    %1095 = vmatpush1.bf16.msra.mxu0 %v614
    %1096 = vmatprep.subr.bf16.mxu0 %v612
    %1097 = vmatpush1.bf16.msra.mxu0 %v611
    %1098 = vmatprep.subr.bf16.mxu0 %v609
    %1099 = vmatpush1.bf16.msra.mxu0 %v608
    %1100 = vmatprep.subr.bf16.mxu0 %v606
    %1101 = vmatpush1.bf16.msra.mxu0 %v605
    %1102 = vmatprep.subr.bf16.mxu0 %v603
    %1103 = vmatpush1.bf16.msra.mxu0 %v602
    %1104 = vmatprep.subr.bf16.mxu0 %v600
    %1105 = vmatpush1.bf16.msra.mxu0 %v599
    %1106 = vmatprep.subr.bf16.mxu0 0
    %1107 = vmatpush2.bf16.msra.mxu0 0
    %1108 = vmatprep.subr.bf16.mxu0 0
    %1109 = vmatpush2.bf16.msra.mxu0 0
    %1110 = vmatprep.subr.bf16.mxu0 0
    %1111 = vmatpush2.bf16.msra.mxu0 0
    %1112 = vmatprep.subr.bf16.mxu0 0
    %1113 = vmatpush2.bf16.msra.mxu0 0
    %1114 = vmatprep.subr.bf16.mxu0 0
    %1115 = vmatpush2.bf16.msra.mxu0 0
    %1116 = vmatprep.subr.bf16.mxu0 0
    %1117 = vmatpush2.bf16.msra.mxu0 0
    %1118 = vmatprep.subr.bf16.mxu0 0
    %1119 = vmatpush2.bf16.msra.mxu0 0
    %1120 = vmatprep.subr.bf16.mxu0 0
    %1121 = vmatpush2.bf16.msra.mxu0 0
    %1122 = vmatprep.mubr.bf16.mxu0 0
    %1123 = vmatmul.mubr.bf16.gmra.mxu0 %v1081
    %v1124 = vpop.f32.mrf.mxu0
    %v1125 = vadd.f32 %v507, %v1124
    %v1126 = vpop.f32.mrf.mxu0
    %v1127 = vadd.f32 %v511, %v1126
    %v1128 = vpop.f32.mrf.mxu0
    %v1129 = vpop.f32.mrf.mxu0
    %1130 = vdwg.mxu0
    %1131 = vmatprep.subr.bf16.mxu0 0
    %1132 = vmatpush1.bf16.msra.mxu0 %v622
    %1133 = vmatprep.subr.bf16.mxu0 0
    %1134 = vmatpush1.bf16.msra.mxu0 %v619
    %1135 = vmatprep.subr.bf16.mxu0 0
    %1136 = vmatpush1.bf16.msra.mxu0 %v616
    %1137 = vmatprep.subr.bf16.mxu0 0
    %1138 = vmatpush1.bf16.msra.mxu0 %v613
    %1139 = vmatprep.subr.bf16.mxu0 0
    %1140 = vmatpush1.bf16.msra.mxu0 %v610
    %1141 = vmatprep.subr.bf16.mxu0 0
    %1142 = vmatpush1.bf16.msra.mxu0 %v607
    %1143 = vmatprep.subr.bf16.mxu0 0
    %1144 = vmatpush1.bf16.msra.mxu0 %v604
    %1145 = vmatprep.subr.bf16.mxu0 0
    %1146 = vmatpush1.bf16.msra.mxu0 %v601
    %1147 = vmatprep.subr.bf16.mxu0 0
    %1148 = vmatpush2.bf16.msra.mxu0 0
    %1149 = vmatprep.subr.bf16.mxu0 0
    %1150 = vmatpush2.bf16.msra.mxu0 0
    %1151 = vmatprep.subr.bf16.mxu0 0
    %1152 = vmatpush2.bf16.msra.mxu0 0
    %1153 = vmatprep.subr.bf16.mxu0 0
    %1154 = vmatpush2.bf16.msra.mxu0 0
    %1155 = vmatprep.subr.bf16.mxu0 0
    %1156 = vmatpush2.bf16.msra.mxu0 0
    %1157 = vmatprep.subr.bf16.mxu0 0
    %1158 = vmatpush2.bf16.msra.mxu0 0
    %1159 = vmatprep.subr.bf16.mxu0 0
    %1160 = vmatpush2.bf16.msra.mxu0 0
    %1161 = vmatprep.subr.bf16.mxu0 0
    %1162 = vmatpush2.bf16.msra.mxu0 0
    %1163 = vmatprep.mubr.bf16.mxu0 0
    %1164 = vmatmul.mubr.bf16.gmra.mxu0 %v1081
    %v1165 = vpop.f32.mrf.mxu0
    %v1166 = vadd.f32 %v515, %v1165
    %v1167 = vpop.f32.mrf.mxu0
    %v1168 = vpop.f32.mrf.mxu0
    %v1169 = vpop.f32.mrf.mxu0
    %1170 = vdwg.mxu0
    %v1171 = vadd.f32 %v1087, %v1125
    %v1172 = vxor.u32 %v1171, 2147483648
    %v1173 = vmul.f32 %v1172, 1.442695
    %v1174 = vpow.pop %v1173
    %v1175 = vadd.f32 %v1174, 1.0
    %v1176 = vrcp.pop %v1175
    %v1177 = vmul.f32 1.0, %v1176
    %v1178 = vadd.f32 %v1088, %v1127
    %v1179 = vxor.u32 %v1178, 2147483648
    %v1180 = vmul.f32 %v1179, 1.442695
    %v1181 = vpow.pop %v1180
    %v1182 = vadd.f32 %v1181, 1.0
    %v1183 = vrcp.pop %v1182
    %v1184 = vmul.f32 1.0, %v1183
    %v1185 = vmul.f32 %v1177, %v1166
    %v1186 = vadd.f32 %v1089, %v1185
    %v1187 = vtanh.pop %v1186
    %v1188 = vsub.f32 1.0, %v1184
    %v1189 = vmul.f32 %v1188, %v1187
    %v1190 = vmul.f32 %v1184, %v1080
    %v1191 = vadd.f32 %v1189, %v1190
    %v1192 = vpack.c.bf16 %v1191, %v1191
    %s1193 = scalar_lea.vmem [#allocation3], 16
    %1194 = vst [vmem:[%s1193] sm:$0xf] %v1192
    %s1195 = scalar_lea.vmem [#allocation2], 60
    %v1196 = vld [vmem:[%s1195] sm:$0xff]
    %v1197 = vld [vmem:[%s1195 + $0x8] sm:$0xf]
    %v1198 = vunpack.c.l.bf16 %v1196
    %v1199 = vunpack.c.h.bf16 %v1196
    %v1200 = vunpack.c.l.bf16 %v1197
    %1201 = vmatprep.subr.bf16.mxu0 %v621
    %1202 = vmatpush1.bf16.msra.mxu0 %v620
    %1203 = vmatprep.subr.bf16.mxu0 %v618
    %1204 = vmatpush1.bf16.msra.mxu0 %v617
    %1205 = vmatprep.subr.bf16.mxu0 %v615
    %1206 = vmatpush1.bf16.msra.mxu0 %v614
    %1207 = vmatprep.subr.bf16.mxu0 %v612
    %1208 = vmatpush1.bf16.msra.mxu0 %v611
    %1209 = vmatprep.subr.bf16.mxu0 %v609
    %1210 = vmatpush1.bf16.msra.mxu0 %v608
    %1211 = vmatprep.subr.bf16.mxu0 %v606
    %1212 = vmatpush1.bf16.msra.mxu0 %v605
    %1213 = vmatprep.subr.bf16.mxu0 %v603
    %1214 = vmatpush1.bf16.msra.mxu0 %v602
    %1215 = vmatprep.subr.bf16.mxu0 %v600
    %1216 = vmatpush1.bf16.msra.mxu0 %v599
    %1217 = vmatprep.subr.bf16.mxu0 0
    %1218 = vmatpush2.bf16.msra.mxu0 0
    %1219 = vmatprep.subr.bf16.mxu0 0
    %1220 = vmatpush2.bf16.msra.mxu0 0
    %1221 = vmatprep.subr.bf16.mxu0 0
    %1222 = vmatpush2.bf16.msra.mxu0 0
    %1223 = vmatprep.subr.bf16.mxu0 0
    %1224 = vmatpush2.bf16.msra.mxu0 0
    %1225 = vmatprep.subr.bf16.mxu0 0
    %1226 = vmatpush2.bf16.msra.mxu0 0
    %1227 = vmatprep.subr.bf16.mxu0 0
    %1228 = vmatpush2.bf16.msra.mxu0 0
    %1229 = vmatprep.subr.bf16.mxu0 0
    %1230 = vmatpush2.bf16.msra.mxu0 0
    %1231 = vmatprep.subr.bf16.mxu0 0
    %1232 = vmatpush2.bf16.msra.mxu0 0
    %1233 = vmatprep.mubr.bf16.mxu0 0
    %1234 = vmatmul.mubr.bf16.gmra.mxu0 %v1192
    %v1235 = vpop.f32.mrf.mxu0
    %v1236 = vadd.f32 %v507, %v1235
    %v1237 = vpop.f32.mrf.mxu0
    %v1238 = vadd.f32 %v511, %v1237
    %v1239 = vpop.f32.mrf.mxu0
    %v1240 = vpop.f32.mrf.mxu0
    %1241 = vdwg.mxu0
    %1242 = vmatprep.subr.bf16.mxu0 0
    %1243 = vmatpush1.bf16.msra.mxu0 %v622
    %1244 = vmatprep.subr.bf16.mxu0 0
    %1245 = vmatpush1.bf16.msra.mxu0 %v619
    %1246 = vmatprep.subr.bf16.mxu0 0
    %1247 = vmatpush1.bf16.msra.mxu0 %v616
    %1248 = vmatprep.subr.bf16.mxu0 0
    %1249 = vmatpush1.bf16.msra.mxu0 %v613
    %1250 = vmatprep.subr.bf16.mxu0 0
    %1251 = vmatpush1.bf16.msra.mxu0 %v610
    %1252 = vmatprep.subr.bf16.mxu0 0
    %1253 = vmatpush1.bf16.msra.mxu0 %v607
    %1254 = vmatprep.subr.bf16.mxu0 0
    %1255 = vmatpush1.bf16.msra.mxu0 %v604
    %1256 = vmatprep.subr.bf16.mxu0 0
    %1257 = vmatpush1.bf16.msra.mxu0 %v601
    %1258 = vmatprep.subr.bf16.mxu0 0
    %1259 = vmatpush2.bf16.msra.mxu0 0
    %1260 = vmatprep.subr.bf16.mxu0 0
    %1261 = vmatpush2.bf16.msra.mxu0 0
    %1262 = vmatprep.subr.bf16.mxu0 0
    %1263 = vmatpush2.bf16.msra.mxu0 0
    %1264 = vmatprep.subr.bf16.mxu0 0
    %1265 = vmatpush2.bf16.msra.mxu0 0
    %1266 = vmatprep.subr.bf16.mxu0 0
    %1267 = vmatpush2.bf16.msra.mxu0 0
    %1268 = vmatprep.subr.bf16.mxu0 0
    %1269 = vmatpush2.bf16.msra.mxu0 0
    %1270 = vmatprep.subr.bf16.mxu0 0
    %1271 = vmatpush2.bf16.msra.mxu0 0
    %1272 = vmatprep.subr.bf16.mxu0 0
    %1273 = vmatpush2.bf16.msra.mxu0 0
    %1274 = vmatprep.mubr.bf16.mxu0 0
    %1275 = vmatmul.mubr.bf16.gmra.mxu0 %v1192
    %v1276 = vpop.f32.mrf.mxu0
    %v1277 = vadd.f32 %v515, %v1276
    %v1278 = vpop.f32.mrf.mxu0
    %v1279 = vpop.f32.mrf.mxu0
    %v1280 = vpop.f32.mrf.mxu0
    %1281 = vdwg.mxu0
    %v1282 = vadd.f32 %v1198, %v1236
    %v1283 = vxor.u32 %v1282, 2147483648
    %v1284 = vmul.f32 %v1283, 1.442695
    %v1285 = vpow.pop %v1284
    %v1286 = vadd.f32 %v1285, 1.0
    %v1287 = vrcp.pop %v1286
    %v1288 = vmul.f32 1.0, %v1287
    %v1289 = vadd.f32 %v1199, %v1238
    %v1290 = vxor.u32 %v1289, 2147483648
    %v1291 = vmul.f32 %v1290, 1.442695
    %v1292 = vpow.pop %v1291
    %v1293 = vadd.f32 %v1292, 1.0
    %v1294 = vrcp.pop %v1293
    %v1295 = vmul.f32 1.0, %v1294
    %v1296 = vmul.f32 %v1288, %v1277
    %v1297 = vadd.f32 %v1200, %v1296
    %v1298 = vtanh.pop %v1297
    %v1299 = vsub.f32 1.0, %v1295
    %v1300 = vmul.f32 %v1299, %v1298
    %v1301 = vmul.f32 %v1295, %v1191
    %v1302 = vadd.f32 %v1300, %v1301
    %v1303 = vpack.c.bf16 %v1302, %v1302
    %s1304 = scalar_lea.vmem [#allocation3], 20
    %1305 = vst [vmem:[%s1304] sm:$0xf] %v1303
    %s1306 = scalar_lea.vmem [#allocation2], 72
    %v1307 = vld [vmem:[%s1306] sm:$0xff]
    %v1308 = vld [vmem:[%s1306 + $0x8] sm:$0xf]
    %v1309 = vunpack.c.l.bf16 %v1307
    %v1310 = vunpack.c.h.bf16 %v1307
    %v1311 = vunpack.c.l.bf16 %v1308
    %1312 = vmatprep.subr.bf16.mxu0 %v621
    %1313 = vmatpush1.bf16.msra.mxu0 %v620
    %1314 = vmatprep.subr.bf16.mxu0 %v618
    %1315 = vmatpush1.bf16.msra.mxu0 %v617
    %1316 = vmatprep.subr.bf16.mxu0 %v615
    %1317 = vmatpush1.bf16.msra.mxu0 %v614
    %1318 = vmatprep.subr.bf16.mxu0 %v612
    %1319 = vmatpush1.bf16.msra.mxu0 %v611
    %1320 = vmatprep.subr.bf16.mxu0 %v609
    %1321 = vmatpush1.bf16.msra.mxu0 %v608
    %1322 = vmatprep.subr.bf16.mxu0 %v606
    %1323 = vmatpush1.bf16.msra.mxu0 %v605
    %1324 = vmatprep.subr.bf16.mxu0 %v603
    %1325 = vmatpush1.bf16.msra.mxu0 %v602
    %1326 = vmatprep.subr.bf16.mxu0 %v600
    %1327 = vmatpush1.bf16.msra.mxu0 %v599
    %1328 = vmatprep.subr.bf16.mxu0 0
    %1329 = vmatpush2.bf16.msra.mxu0 0
    %1330 = vmatprep.subr.bf16.mxu0 0
    %1331 = vmatpush2.bf16.msra.mxu0 0
    %1332 = vmatprep.subr.bf16.mxu0 0
    %1333 = vmatpush2.bf16.msra.mxu0 0
    %1334 = vmatprep.subr.bf16.mxu0 0
    %1335 = vmatpush2.bf16.msra.mxu0 0
    %1336 = vmatprep.subr.bf16.mxu0 0
    %1337 = vmatpush2.bf16.msra.mxu0 0
    %1338 = vmatprep.subr.bf16.mxu0 0
    %1339 = vmatpush2.bf16.msra.mxu0 0
    %1340 = vmatprep.subr.bf16.mxu0 0
    %1341 = vmatpush2.bf16.msra.mxu0 0
    %1342 = vmatprep.subr.bf16.mxu0 0
    %1343 = vmatpush2.bf16.msra.mxu0 0
    %1344 = vmatprep.mubr.bf16.mxu0 0
    %1345 = vmatmul.mubr.bf16.gmra.mxu0 %v1303
    %v1346 = vpop.f32.mrf.mxu0
    %v1347 = vadd.f32 %v507, %v1346
    %v1348 = vpop.f32.mrf.mxu0
    %v1349 = vadd.f32 %v511, %v1348
    %v1350 = vpop.f32.mrf.mxu0
    %v1351 = vpop.f32.mrf.mxu0
    %1352 = vdwg.mxu0
    %1353 = vmatprep.subr.bf16.mxu0 0
    %1354 = vmatpush1.bf16.msra.mxu0 %v622
    %1355 = vmatprep.subr.bf16.mxu0 0
    %1356 = vmatpush1.bf16.msra.mxu0 %v619
    %1357 = vmatprep.subr.bf16.mxu0 0
    %1358 = vmatpush1.bf16.msra.mxu0 %v616
    %1359 = vmatprep.subr.bf16.mxu0 0
    %1360 = vmatpush1.bf16.msra.mxu0 %v613
    %1361 = vmatprep.subr.bf16.mxu0 0
    %1362 = vmatpush1.bf16.msra.mxu0 %v610
    %1363 = vmatprep.subr.bf16.mxu0 0
    %1364 = vmatpush1.bf16.msra.mxu0 %v607
    %1365 = vmatprep.subr.bf16.mxu0 0
    %1366 = vmatpush1.bf16.msra.mxu0 %v604
    %1367 = vmatprep.subr.bf16.mxu0 0
    %1368 = vmatpush1.bf16.msra.mxu0 %v601
    %1369 = vmatprep.subr.bf16.mxu0 0
    %1370 = vmatpush2.bf16.msra.mxu0 0
    %1371 = vmatprep.subr.bf16.mxu0 0
    %1372 = vmatpush2.bf16.msra.mxu0 0
    %1373 = vmatprep.subr.bf16.mxu0 0
    %1374 = vmatpush2.bf16.msra.mxu0 0
    %1375 = vmatprep.subr.bf16.mxu0 0
    %1376 = vmatpush2.bf16.msra.mxu0 0
    %1377 = vmatprep.subr.bf16.mxu0 0
    %1378 = vmatpush2.bf16.msra.mxu0 0
    %1379 = vmatprep.subr.bf16.mxu0 0
    %1380 = vmatpush2.bf16.msra.mxu0 0
    %1381 = vmatprep.subr.bf16.mxu0 0
    %1382 = vmatpush2.bf16.msra.mxu0 0
    %1383 = vmatprep.subr.bf16.mxu0 0
    %1384 = vmatpush2.bf16.msra.mxu0 0
    %1385 = vmatprep.mubr.bf16.mxu0 0
    %1386 = vmatmul.mubr.bf16.gmra.mxu0 %v1303
    %v1387 = vpop.f32.mrf.mxu0
    %v1388 = vadd.f32 %v515, %v1387
    %v1389 = vpop.f32.mrf.mxu0
    %v1390 = vpop.f32.mrf.mxu0
    %v1391 = vpop.f32.mrf.mxu0
    %1392 = vdwg.mxu0
    %v1393 = vadd.f32 %v1309, %v1347
    %v1394 = vxor.u32 %v1393, 2147483648
    %v1395 = vmul.f32 %v1394, 1.442695
    %v1396 = vpow.pop %v1395
    %v1397 = vadd.f32 %v1396, 1.0
    %v1398 = vrcp.pop %v1397
    %v1399 = vmul.f32 1.0, %v1398
    %v1400 = vadd.f32 %v1310, %v1349
    %v1401 = vxor.u32 %v1400, 2147483648
    %v1402 = vmul.f32 %v1401, 1.442695
    %v1403 = vpow.pop %v1402
    %v1404 = vadd.f32 %v1403, 1.0
    %v1405 = vrcp.pop %v1404
    %v1406 = vmul.f32 1.0, %v1405
    %v1407 = vmul.f32 %v1399, %v1388
    %v1408 = vadd.f32 %v1311, %v1407
    %v1409 = vtanh.pop %v1408
    %v1410 = vsub.f32 1.0, %v1406
    %v1411 = vmul.f32 %v1410, %v1409
    %v1412 = vmul.f32 %v1406, %v1302
    %v1413 = vadd.f32 %v1411, %v1412
    %v1414 = vpack.c.bf16 %v1413, %v1413
    %s1415 = scalar_lea.vmem [#allocation3], 24
    %1416 = vst [vmem:[%s1415] sm:$0xf] %v1414
    %s1417 = scalar_lea.vmem [#allocation2], 84
    %v1418 = vld [vmem:[%s1417] sm:$0xff]
    %v1419 = vld [vmem:[%s1417 + $0x8] sm:$0xf]
    %v1420 = vunpack.c.l.bf16 %v1418
    %v1421 = vunpack.c.h.bf16 %v1418
    %v1422 = vunpack.c.l.bf16 %v1419
    %1423 = vmatprep.subr.bf16.mxu0 %v621
    %1424 = vmatpush1.bf16.msra.mxu0 %v620
    %1425 = vmatprep.subr.bf16.mxu0 %v618
    %1426 = vmatpush1.bf16.msra.mxu0 %v617
    %1427 = vmatprep.subr.bf16.mxu0 %v615
    %1428 = vmatpush1.bf16.msra.mxu0 %v614
    %1429 = vmatprep.subr.bf16.mxu0 %v612
    %1430 = vmatpush1.bf16.msra.mxu0 %v611
    %1431 = vmatprep.subr.bf16.mxu0 %v609
    %1432 = vmatpush1.bf16.msra.mxu0 %v608
    %1433 = vmatprep.subr.bf16.mxu0 %v606
    %1434 = vmatpush1.bf16.msra.mxu0 %v605
    %1435 = vmatprep.subr.bf16.mxu0 %v603
    %1436 = vmatpush1.bf16.msra.mxu0 %v602
    %1437 = vmatprep.subr.bf16.mxu0 %v600
    %1438 = vmatpush1.bf16.msra.mxu0 %v599
    %1439 = vmatprep.subr.bf16.mxu0 0
    %1440 = vmatpush2.bf16.msra.mxu0 0
    %1441 = vmatprep.subr.bf16.mxu0 0
    %1442 = vmatpush2.bf16.msra.mxu0 0
    %1443 = vmatprep.subr.bf16.mxu0 0
    %1444 = vmatpush2.bf16.msra.mxu0 0
    %1445 = vmatprep.subr.bf16.mxu0 0
    %1446 = vmatpush2.bf16.msra.mxu0 0
    %1447 = vmatprep.subr.bf16.mxu0 0
    %1448 = vmatpush2.bf16.msra.mxu0 0
    %1449 = vmatprep.subr.bf16.mxu0 0
    %1450 = vmatpush2.bf16.msra.mxu0 0
    %1451 = vmatprep.subr.bf16.mxu0 0
    %1452 = vmatpush2.bf16.msra.mxu0 0
    %1453 = vmatprep.subr.bf16.mxu0 0
    %1454 = vmatpush2.bf16.msra.mxu0 0
    %1455 = vmatprep.mubr.bf16.mxu0 0
    %1456 = vmatmul.mubr.bf16.gmra.mxu0 %v1414
    %v1457 = vpop.f32.mrf.mxu0
    %v1458 = vadd.f32 %v507, %v1457
    %v1459 = vpop.f32.mrf.mxu0
    %v1460 = vadd.f32 %v511, %v1459
    %v1461 = vpop.f32.mrf.mxu0
    %v1462 = vpop.f32.mrf.mxu0
    %1463 = vdwg.mxu0
    %1464 = vmatprep.subr.bf16.mxu0 0
    %1465 = vmatpush1.bf16.msra.mxu0 %v622
    %1466 = vmatprep.subr.bf16.mxu0 0
    %1467 = vmatpush1.bf16.msra.mxu0 %v619
    %1468 = vmatprep.subr.bf16.mxu0 0
    %1469 = vmatpush1.bf16.msra.mxu0 %v616
    %1470 = vmatprep.subr.bf16.mxu0 0
    %1471 = vmatpush1.bf16.msra.mxu0 %v613
    %1472 = vmatprep.subr.bf16.mxu0 0
    %1473 = vmatpush1.bf16.msra.mxu0 %v610
    %1474 = vmatprep.subr.bf16.mxu0 0
    %1475 = vmatpush1.bf16.msra.mxu0 %v607
    %1476 = vmatprep.subr.bf16.mxu0 0
    %1477 = vmatpush1.bf16.msra.mxu0 %v604
    %1478 = vmatprep.subr.bf16.mxu0 0
    %1479 = vmatpush1.bf16.msra.mxu0 %v601
    %1480 = vmatprep.subr.bf16.mxu0 0
    %1481 = vmatpush2.bf16.msra.mxu0 0
    %1482 = vmatprep.subr.bf16.mxu0 0
    %1483 = vmatpush2.bf16.msra.mxu0 0
    %1484 = vmatprep.subr.bf16.mxu0 0
    %1485 = vmatpush2.bf16.msra.mxu0 0
    %1486 = vmatprep.subr.bf16.mxu0 0
    %1487 = vmatpush2.bf16.msra.mxu0 0
    %1488 = vmatprep.subr.bf16.mxu0 0
    %1489 = vmatpush2.bf16.msra.mxu0 0
    %1490 = vmatprep.subr.bf16.mxu0 0
    %1491 = vmatpush2.bf16.msra.mxu0 0
    %1492 = vmatprep.subr.bf16.mxu0 0
    %1493 = vmatpush2.bf16.msra.mxu0 0
    %1494 = vmatprep.subr.bf16.mxu0 0
    %1495 = vmatpush2.bf16.msra.mxu0 0
    %1496 = vmatprep.mubr.bf16.mxu0 0
    %1497 = vmatmul.mubr.bf16.gmra.mxu0 %v1414
    %v1498 = vpop.f32.mrf.mxu0
    %v1499 = vadd.f32 %v515, %v1498
    %v1500 = vpop.f32.mrf.mxu0
    %v1501 = vpop.f32.mrf.mxu0
    %v1502 = vpop.f32.mrf.mxu0
    %1503 = vdwg.mxu0
    %v1504 = vadd.f32 %v1420, %v1458
    %v1505 = vxor.u32 %v1504, 2147483648
    %v1506 = vmul.f32 %v1505, 1.442695
    %v1507 = vpow.pop %v1506
    %v1508 = vadd.f32 %v1507, 1.0
    %v1509 = vrcp.pop %v1508
    %v1510 = vmul.f32 1.0, %v1509
    %v1511 = vadd.f32 %v1421, %v1460
    %v1512 = vxor.u32 %v1511, 2147483648
    %v1513 = vmul.f32 %v1512, 1.442695
    %v1514 = vpow.pop %v1513
    %v1515 = vadd.f32 %v1514, 1.0
    %v1516 = vrcp.pop %v1515
    %v1517 = vmul.f32 1.0, %v1516
    %v1518 = vmul.f32 %v1510, %v1499
    %v1519 = vadd.f32 %v1422, %v1518
    %v1520 = vtanh.pop %v1519
    %v1521 = vsub.f32 1.0, %v1517
    %v1522 = vmul.f32 %v1521, %v1520
    %v1523 = vmul.f32 %v1517, %v1413
    %v1524 = vadd.f32 %v1522, %v1523
    %v1525 = vpack.c.bf16 %v1524, %v1524
    %s1526 = scalar_lea.vmem [#allocation3], 28
    %1527 = vst [vmem:[%s1526] sm:$0xf] %v1525
    %v1528 = vld [vmem:[#allocation3] sm:$0xf]
    %v1529 = vld [vmem:[#allocation3 + $0x4] sm:$0xf]
    %v1530 = vld [vmem:[#allocation3 + $0x8] sm:$0xf]
    %v1531 = vld [vmem:[#allocation3 + $0xc] sm:$0xf]
    %v1532 = vld [vmem:[#allocation3 + $0x10] sm:$0xf]
    %v1533 = vld [vmem:[#allocation3 + $0x14] sm:$0xf]
    %v1534 = vld [vmem:[#allocation3 + $0x18] sm:$0xf]
    %v1535 = vld [vmem:[#allocation3 + $0x1c] sm:$0xf]
    %v1537 = vlaneseq
    %v1538 = vshrl.u32 %v1537, 7
    %v1539 = vsub.s32 0, %v1538
    %v1540 = vrot.slane %v162, %v1539
    %v1550 = vunpack.c.l.b16 %v1528
    %v1551 = vunpack.c.l.b16 %v1529
    %v1552 = vunpack.c.l.b16 %v1530
    %v1553 = vunpack.c.l.b16 %v1531
    %v1554 = vunpack.c.l.b16 %v1532
    %v1555 = vunpack.c.l.b16 %v1533
    %v1556 = vunpack.c.l.b16 %v1534
    %v1557 = vunpack.c.l.b16 %v1535
    %v1558 = vpack.c.b16 %v1551, %v1550
    %v1559 = vpack.c.b16 %v1553, %v1552
    %v1560 = vpack.c.b16 %v1555, %v1554
    %v1561 = vpack.c.b16 %v1557, %v1556
    %v1582 = vunpack.c.l.b16 %v146
    %v1583 = vunpack.c.l.b16 %v147
    %v1584 = vunpack.c.l.b16 %v148
    %v1585 = vunpack.c.l.b16 %v149
    %v1586 = vunpack.c.l.b16 %v150
    %v1587 = vunpack.c.l.b16 %v151
    %v1588 = vunpack.c.l.b16 %v152
    %v1589 = vunpack.c.l.b16 %v153
    %v1590 = vunpack.c.l.b16 %v154
    %v1591 = vunpack.c.l.b16 %v155
    %v1592 = vunpack.c.l.b16 %v156
    %v1593 = vunpack.c.l.b16 %v157
    %v1594 = vunpack.c.l.b16 %v158
    %v1595 = vunpack.c.l.b16 %v159
    %v1596 = vunpack.c.l.b16 %v160
    %v1597 = vunpack.c.l.b16 %v161
    %v1598 = vpack.c.b16 %v1583, %v1582
    %v1599 = vpack.c.b16 %v1585, %v1584
    %v1600 = vpack.c.b16 %v1587, %v1586
    %v1601 = vpack.c.b16 %v1589, %v1588
    %v1602 = vpack.c.b16 %v1591, %v1590
    %v1603 = vpack.c.b16 %v1593, %v1592
    %v1604 = vpack.c.b16 %v1595, %v1594
    %v1605 = vpack.c.b16 %v1597, %v1596
    %1614 = vmatprep.subr.bf16.mxu0 0
    %1615 = vmatpush1.bf16.msra.mxu0 %v1605
    %1616 = vmatprep.subr.bf16.mxu0 0
    %1617 = vmatpush1.bf16.msra.mxu0 %v1604
    %1618 = vmatprep.subr.bf16.mxu0 0
    %1619 = vmatpush1.bf16.msra.mxu0 %v1603
    %1620 = vmatprep.subr.bf16.mxu0 0
    %1621 = vmatpush1.bf16.msra.mxu0 %v1602
    %1622 = vmatprep.subr.bf16.mxu0 0
    %1623 = vmatpush1.bf16.msra.mxu0 %v1601
    %1624 = vmatprep.subr.bf16.mxu0 0
    %1625 = vmatpush1.bf16.msra.mxu0 %v1600
    %1626 = vmatprep.subr.bf16.mxu0 0
    %1627 = vmatpush1.bf16.msra.mxu0 %v1599
    %1628 = vmatprep.subr.bf16.mxu0 0
    %1629 = vmatpush1.bf16.msra.mxu0 %v1598
    %1630 = vmatprep.subr.bf16.mxu0 0
    %1631 = vmatpush2.bf16.msra.mxu0 0
    %1632 = vmatprep.subr.bf16.mxu0 0
    %1633 = vmatpush2.bf16.msra.mxu0 0
    %1634 = vmatprep.subr.bf16.mxu0 0
    %1635 = vmatpush2.bf16.msra.mxu0 0
    %1636 = vmatprep.subr.bf16.mxu0 0
    %1637 = vmatpush2.bf16.msra.mxu0 0
    %1638 = vmatprep.subr.bf16.mxu0 0
    %1639 = vmatpush2.bf16.msra.mxu0 0
    %1640 = vmatprep.subr.bf16.mxu0 0
    %1641 = vmatpush2.bf16.msra.mxu0 0
    %1642 = vmatprep.subr.bf16.mxu0 0
    %1643 = vmatpush2.bf16.msra.mxu0 0
    %1644 = vmatprep.subr.bf16.mxu0 0
    %1645 = vmatpush2.bf16.msra.mxu0 0
    %1646 = vmatprep.mubr.bf16.mxu0 0
    %1647 = vmatmul.mubr.bf16.gmra.mxu0 %v1558
    %v1648 = vpop.f32.mrf.mxu0
    %v1649 = vadd.f32 %v1540, %v1648
    %v1650 = vpop.f32.mrf.mxu0
    %v1651 = vpop.f32.mrf.mxu0
    %v1652 = vadd.f32 %v1540, %v1651
    %v1653 = vpop.f32.mrf.mxu0
    %1654 = vmatprep.mubr.bf16.mxu0 0
    %1655 = vmatmul.mubr.bf16.gmra.mxu0 %v1559
    %v1656 = vpop.f32.mrf.mxu0
    %v1657 = vadd.f32 %v1540, %v1656
    %v1658 = vpop.f32.mrf.mxu0
    %v1659 = vpop.f32.mrf.mxu0
    %v1660 = vadd.f32 %v1540, %v1659
    %v1661 = vpop.f32.mrf.mxu0
    %1662 = vmatprep.mubr.bf16.mxu0 0
    %1663 = vmatmul.mubr.bf16.gmra.mxu0 %v1560
    %v1664 = vpop.f32.mrf.mxu0
    %v1665 = vadd.f32 %v1540, %v1664
    %v1666 = vpop.f32.mrf.mxu0
    %v1667 = vpop.f32.mrf.mxu0
    %v1668 = vadd.f32 %v1540, %v1667
    %v1669 = vpop.f32.mrf.mxu0
    %1670 = vmatprep.mubr.bf16.mxu0 0
    %1671 = vmatmul.mubr.bf16.gmra.mxu0 %v1561
    %v1672 = vpop.f32.mrf.mxu0
    %v1673 = vadd.f32 %v1540, %v1672
    %v1674 = vpop.f32.mrf.mxu0
    %v1675 = vpop.f32.mrf.mxu0
    %v1676 = vadd.f32 %v1540, %v1675
    %v1677 = vpop.f32.mrf.mxu0
    %1678 = vdwg.mxu0
    %v1679 = vtanh.pop %v1649
    %v1680 = vtanh.pop %v1652
    %v1681 = vtanh.pop %v1657
    %v1682 = vtanh.pop %v1660
    %v1683 = vtanh.pop %v1665
    %v1684 = vtanh.pop %v1668
    %v1685 = vtanh.pop %v1673
    %v1686 = vtanh.pop %v1676
    %v1688 = vlaneseq
    %v1689 = vshrl.u32 %v1688, 7
    %v1690 = vsub.s32 0, %v1689
    %v1691 = vrot.slane %v163, %v1690
    %v1693 = vmul.f32 %v1679, %v1691
    %v1694 = vmul.f32 %v1680, %v1691
    %v1695 = vmul.f32 %v1681, %v1691
    %v1696 = vmul.f32 %v1682, %v1691
    %v1697 = vmul.f32 %v1683, %v1691
    %v1698 = vmul.f32 %v1684, %v1691
    %v1699 = vmul.f32 %v1685, %v1691
    %v1700 = vmul.f32 %v1686, %v1691
    %1701 = vadd.xlane.f32.xlu0 %v1693
    %v1702 = vpop.xlane.xlu0 %1701
    %1703 = vadd.xlane.f32.xlu0 %v1694
    %v1704 = vpop.xlane.xlu0 %1703
    %1705 = vadd.xlane.f32.xlu0 %v1695
    %v1706 = vpop.xlane.xlu0 %1705
    %1707 = vadd.xlane.f32.xlu0 %v1696
    %v1708 = vpop.xlane.xlu0 %1707
    %1709 = vadd.xlane.f32.xlu0 %v1697
    %v1710 = vpop.xlane.xlu0 %1709
    %1711 = vadd.xlane.f32.xlu0 %v1698
    %v1712 = vpop.xlane.xlu0 %1711
    %1713 = vadd.xlane.f32.xlu0 %v1699
    %v1714 = vpop.xlane.xlu0 %1713
    %1715 = vadd.xlane.f32.xlu0 %v1700
    %v1716 = vpop.xlane.xlu0 %1715
    %v1725 = vlaneseq
    %v1726 = vand.u32 %v1725, 127
    %v1727 = vlaneseq
    %v1728 = vshrl.u32 %v1727, 7
    %v1729 = vsub.s32 %v1726, %v1728
    %v1730 = vrot.slane %v1702, %v1729
    %v1731 = vlaneseq
    %v1732 = vshrl.u32 %v1731, 7
    %v1733 = vsub.s32 %v1726, %v1732
    %v1734 = vrot.slane %v1704, %v1733
    %v1735 = vlaneseq
    %v1736 = vshrl.u32 %v1735, 7
    %v1737 = vsub.s32 %v1726, %v1736
    %v1738 = vrot.slane %v1706, %v1737
    %v1739 = vlaneseq
    %v1740 = vshrl.u32 %v1739, 7
    %v1741 = vsub.s32 %v1726, %v1740
    %v1742 = vrot.slane %v1708, %v1741
    %v1743 = vlaneseq
    %v1744 = vshrl.u32 %v1743, 7
    %v1745 = vsub.s32 %v1726, %v1744
    %v1746 = vrot.slane %v1710, %v1745
    %v1747 = vlaneseq
    %v1748 = vshrl.u32 %v1747, 7
    %v1749 = vsub.s32 %v1726, %v1748
    %v1750 = vrot.slane %v1712, %v1749
    %v1751 = vlaneseq
    %v1752 = vshrl.u32 %v1751, 7
    %v1753 = vsub.s32 %v1726, %v1752
    %v1754 = vrot.slane %v1714, %v1753
    %v1755 = vlaneseq
    %v1756 = vshrl.u32 %v1755, 7
    %v1757 = vsub.s32 %v1726, %v1756
    %v1758 = vrot.slane %v1716, %v1757
    %vm1759 = vcmask 1041409
    %v1760 = vsel %vm1759, %v1734, %v1730
    %vm1761 = vcmask 1042434
    %v1762 = vsel %vm1761, %v1738, %v1760
    %vm1763 = vcmask 1043459
    %v1764 = vsel %vm1763, %v1742, %v1762
    %vm1765 = vcmask 1044484
    %v1766 = vsel %vm1765, %v1746, %v1764
    %vm1767 = vcmask 1045509
    %v1768 = vsel %vm1767, %v1750, %v1766
    %vm1769 = vcmask 1046534
    %v1770 = vsel %vm1769, %v1754, %v1768
    %vm1771 = vcmask 1047559
    %v1772 = vsel %vm1771, %v1758, %v1770
    %vm1774 = vcmask 64512
    %1775 = vst.msk [vmem:[#allocation4] sm:$0xff] %vm1774, %v1772
    %v1776 = vld [vmem:[%s1] sm:$0xff]
    %1777 = vset.pattern.permute.xlu0 0
    %1778 = vperm.xlu0 %1777, %v1776
    %v1779 = vpop.permute.xlu0 %1778
    %vm1780 = vcmp.ge.s32.totalorder %v1726, %v1779
    %v1781 = vsel %vm1780, -1e+30, 0.0
    %1782 = vxpose.xlu0.b32.start [1/16] %v1781, 128
    %1783 = vxpose.xlu0.b32.cont [2/16] 0.0, 128
    %1784 = vxpose.xlu0.b32.cont [3/16] 0.0, 128
    %1785 = vxpose.xlu0.b32.cont [4/16] 0.0, 128
    %1786 = vxpose.xlu0.b32.cont [5/16] 0.0, 128
    %1787 = vxpose.xlu0.b32.cont [6/16] 0.0, 128
    %1788 = vxpose.xlu0.b32.cont [7/16] 0.0, 128
    %1789 = vxpose.xlu0.b32.cont [8/16] 0.0, 128
    %1790 = vxpose.xlu0.b32.cont [9/16] 0.0, 128
    %1791 = vxpose.xlu0.b32.cont [10/16] 0.0, 128
    %1792 = vxpose.xlu0.b32.cont [11/16] 0.0, 128
    %1793 = vxpose.xlu0.b32.cont [12/16] 0.0, 128
    %1794 = vxpose.xlu0.b32.cont [13/16] 0.0, 128
    %1795 = vxpose.xlu0.b32.cont [14/16] 0.0, 128
    %1796 = vxpose.xlu0.b32.cont [15/16] 0.0, 128
    %1797 = vxpose.xlu0.b32.end [16/16] 0.0, 128
    %v1798 = vpop.trf.xlu0
    %v1799 = vpop.trf.xlu0
    %v1800 = vpop.trf.xlu0
    %v1801 = vpop.trf.xlu0
    %v1802 = vpop.trf.xlu0
    %v1803 = vpop.trf.xlu0
    %v1804 = vpop.trf.xlu0
    %v1805 = vpop.trf.xlu0
    %v1806 = vpop.trf.xlu0
    %v1807 = vpop.trf.xlu0
    %v1808 = vpop.trf.xlu0
    %v1809 = vpop.trf.xlu0
    %v1810 = vpop.trf.xlu0
    %v1811 = vpop.trf.xlu0
    %v1812 = vpop.trf.xlu0
    %v1813 = vpop.trf.xlu0
    %v1814 = vld [vmem:[#allocation4] sm:$0xff]
    %v1815 = vadd.f32 %v1814, %v1798
    %v1816 = vsel %vm1774, %v1815, -inf
    %v1817 = vrot.slane %v1816, 4
    %v1818 = vmax.f32 %v1816, %v1817
    %v1819 = vrot.slane %v1818, 2
    %v1820 = vmax.f32 %v1818, %v1819
    %v1821 = vrot.slane %v1820, 1
    %v1822 = vmax.f32 %v1820, %v1821
    %v1823 = vsub.f32 %v1815, %v1822
    %v1824 = vmul.f32 %v1823, 1.442695
    %v1825 = vpow.pop %v1824
    %v1826 = vsel %vm1774, %v1825, 0.0
    %v1827 = vrot.slane %v1826, 4
    %v1828 = vadd.f32 %v1826, %v1827
    %v1829 = vrot.slane %v1828, 2
    %v1830 = vadd.f32 %v1828, %v1829
    %v1831 = vrot.slane %v1830, 1
    %v1832 = vadd.f32 %v1830, %v1831
    %v1833 = vrcp.pop %v1832
    %v1834 = vmul.f32 %v1825, %v1833
    %1835 = vst.msk [vmem:[#allocation4] sm:$0xff] %vm1774, %v1834
    %v1836 = vld [vmem:[#allocation4] sm:$0xff]
    %v1837 = vld [vmem:[#allocation3] sm:$0xf]
    %v1838 = vld [vmem:[#allocation3 + $0x4] sm:$0xf]
    %v1839 = vld [vmem:[#allocation3 + $0x8] sm:$0xf]
    %v1840 = vld [vmem:[#allocation3 + $0xc] sm:$0xf]
    %v1841 = vld [vmem:[#allocation3 + $0x10] sm:$0xf]
    %v1842 = vld [vmem:[#allocation3 + $0x14] sm:$0xf]
    %v1843 = vld [vmem:[#allocation3 + $0x18] sm:$0xf]
    %v1844 = vld [vmem:[#allocation3 + $0x1c] sm:$0xf]
    %v1845 = vunpack.c.l.bf16 %v1837
    %v1846 = vunpack.c.l.bf16 %v1838
    %v1847 = vunpack.c.l.bf16 %v1839
    %v1848 = vunpack.c.l.bf16 %v1840
    %v1849 = vunpack.c.l.bf16 %v1841
    %v1850 = vunpack.c.l.bf16 %v1842
    %v1851 = vunpack.c.l.bf16 %v1843
    %v1852 = vunpack.c.l.bf16 %v1844
    %v1853 = vlaneseq
    %v1854 = vshrl.u32 %v1853, 7
    %v1855 = vsub.s32 0, %v1854
    %v1856 = vrot.slane %v1836, %v1855
    %1858 = vbcast.lane.b32.xlu0 %v1856, 256
    %v1859 = vpop.permute.xlu0 %1858
    %v1860 = vlaneseq
    %v1861 = vshrl.u32 %v1860, 7
    %v1862 = vsub.s32 1, %v1861
    %v1863 = vrot.slane %v1836, %v1862
    %1865 = vbcast.lane.b32.xlu0 %v1863, 256
    %v1866 = vpop.permute.xlu0 %1865
    %v1867 = vlaneseq
    %v1868 = vshrl.u32 %v1867, 7
    %v1869 = vsub.s32 2, %v1868
    %v1870 = vrot.slane %v1836, %v1869
    %1872 = vbcast.lane.b32.xlu0 %v1870, 256
    %v1873 = vpop.permute.xlu0 %1872
    %v1874 = vlaneseq
    %v1875 = vshrl.u32 %v1874, 7
    %v1876 = vsub.s32 3, %v1875
    %v1877 = vrot.slane %v1836, %v1876
    %1879 = vbcast.lane.b32.xlu0 %v1877, 256
    %v1880 = vpop.permute.xlu0 %1879
    %v1881 = vlaneseq
    %v1882 = vshrl.u32 %v1881, 7
    %v1883 = vsub.s32 4, %v1882
    %v1884 = vrot.slane %v1836, %v1883
    %1886 = vbcast.lane.b32.xlu0 %v1884, 256
    %v1887 = vpop.permute.xlu0 %1886
    %v1888 = vlaneseq
    %v1889 = vshrl.u32 %v1888, 7
    %v1890 = vsub.s32 5, %v1889
    %v1891 = vrot.slane %v1836, %v1890
    %1893 = vbcast.lane.b32.xlu0 %v1891, 256
    %v1894 = vpop.permute.xlu0 %1893
    %v1895 = vlaneseq
    %v1896 = vshrl.u32 %v1895, 7
    %v1897 = vsub.s32 6, %v1896
    %v1898 = vrot.slane %v1836, %v1897
    %1900 = vbcast.lane.b32.xlu0 %v1898, 256
    %v1901 = vpop.permute.xlu0 %1900
    %v1902 = vlaneseq
    %v1903 = vshrl.u32 %v1902, 7
    %v1904 = vsub.s32 7, %v1903
    %v1905 = vrot.slane %v1836, %v1904
    %1907 = vbcast.lane.b32.xlu0 %v1905, 256
    %v1908 = vpop.permute.xlu0 %1907
    %v1909 = vmul.f32 %v1859, %v1845
    %v1910 = vmul.f32 %v1866, %v1846
    %v1911 = vmul.f32 %v1873, %v1847
    %v1912 = vmul.f32 %v1880, %v1848
    %v1913 = vmul.f32 %v1887, %v1849
    %v1914 = vmul.f32 %v1894, %v1850
    %v1915 = vmul.f32 %v1901, %v1851
    %v1916 = vmul.f32 %v1908, %v1852
    %v1917 = vadd.f32 %v1909, %v1910
    %v1918 = vadd.f32 %v1917, %v1911
    %v1919 = vadd.f32 %v1918, %v1912
    %v1920 = vadd.f32 %v1919, %v1913
    %v1921 = vadd.f32 %v1920, %v1914
    %v1922 = vadd.f32 %v1921, %v1915
    %v1923 = vadd.f32 %v1922, %v1916
    %v1924 = vadd.f32 %v1923, 0.0
    %v1925 = vpack.c.bf16 %v1924, %v1924
    %v1926 = vld [vmem:[#allocation13] sm:$0xf]
    %v1927 = vld [vmem:[#allocation13 + $0x4] sm:$0xf]
    %v1928 = vld [vmem:[#allocation13 + $0x8] sm:$0xf]
    %v1929 = vld [vmem:[#allocation13 + $0xc] sm:$0xf]
    %v1930 = vld [vmem:[#allocation13 + $0x10] sm:$0xf]
    %v1931 = vld [vmem:[#allocation13 + $0x14] sm:$0xf]
    %v1932 = vld [vmem:[#allocation13 + $0x18] sm:$0xf]
    %v1933 = vld [vmem:[#allocation13 + $0x1c] sm:$0xf]
    %v1934 = vld [vmem:[#allocation13 + $0x20] sm:$0xf]
    %v1935 = vld [vmem:[#allocation13 + $0x24] sm:$0xf]
    %v1936 = vld [vmem:[#allocation13 + $0x28] sm:$0xf]
    %v1937 = vld [vmem:[#allocation13 + $0x2c] sm:$0xf]
    %v1938 = vld [vmem:[#allocation13 + $0x30] sm:$0xf]
    %v1939 = vld [vmem:[#allocation13 + $0x34] sm:$0xf]
    %v1940 = vld [vmem:[#allocation13 + $0x38] sm:$0xf]
    %v1941 = vld [vmem:[#allocation13 + $0x3c] sm:$0xf]
    %v1942 = vld [vmem:[%s10] sm:$0x1]
    %v1944 = vlaneseq
    %v1945 = vshrl.u32 %v1944, 7
    %v1946 = vsub.s32 0, %v1945
    %v1947 = vrot.slane %v1942, %v1946
    %v1965 = vunpack.c.l.b16 %v1926
    %v1966 = vunpack.c.l.b16 %v1927
    %v1967 = vunpack.c.l.b16 %v1928
    %v1968 = vunpack.c.l.b16 %v1929
    %v1969 = vunpack.c.l.b16 %v1930
    %v1970 = vunpack.c.l.b16 %v1931
    %v1971 = vunpack.c.l.b16 %v1932
    %v1972 = vunpack.c.l.b16 %v1933
    %v1973 = vunpack.c.l.b16 %v1934
    %v1974 = vunpack.c.l.b16 %v1935
    %v1975 = vunpack.c.l.b16 %v1936
    %v1976 = vunpack.c.l.b16 %v1937
    %v1977 = vunpack.c.l.b16 %v1938
    %v1978 = vunpack.c.l.b16 %v1939
    %v1979 = vunpack.c.l.b16 %v1940
    %v1980 = vunpack.c.l.b16 %v1941
    %v1981 = vpack.c.b16 %v1966, %v1965
    %v1982 = vpack.c.b16 %v1968, %v1967
    %v1983 = vpack.c.b16 %v1970, %v1969
    %v1984 = vpack.c.b16 %v1972, %v1971
    %v1985 = vpack.c.b16 %v1974, %v1973
    %v1986 = vpack.c.b16 %v1976, %v1975
    %v1987 = vpack.c.b16 %v1978, %v1977
    %v1988 = vpack.c.b16 %v1980, %v1979
    %1997 = vmatprep.subr.bf16.mxu0 0
    %1998 = vmatpush1.bf16.msra.mxu0 %v1988
    %1999 = vmatprep.subr.bf16.mxu0 0
    %2000 = vmatpush1.bf16.msra.mxu0 %v1987
    %2001 = vmatprep.subr.bf16.mxu0 0
    %2002 = vmatpush1.bf16.msra.mxu0 %v1986
    %2003 = vmatprep.subr.bf16.mxu0 0
    %2004 = vmatpush1.bf16.msra.mxu0 %v1985
    %2005 = vmatprep.subr.bf16.mxu0 0
    %2006 = vmatpush1.bf16.msra.mxu0 %v1984
    %2007 = vmatprep.subr.bf16.mxu0 0
    %2008 = vmatpush1.bf16.msra.mxu0 %v1983
    %2009 = vmatprep.subr.bf16.mxu0 0
    %2010 = vmatpush1.bf16.msra.mxu0 %v1982
    %2011 = vmatprep.subr.bf16.mxu0 0
    %2012 = vmatpush1.bf16.msra.mxu0 %v1981
    %2013 = vmatprep.subr.bf16.mxu0 0
    %2014 = vmatpush2.bf16.msra.mxu0 0
    %2015 = vmatprep.subr.bf16.mxu0 0
    %2016 = vmatpush2.bf16.msra.mxu0 0
    %2017 = vmatprep.subr.bf16.mxu0 0
    %2018 = vmatpush2.bf16.msra.mxu0 0
    %2019 = vmatprep.subr.bf16.mxu0 0
    %2020 = vmatpush2.bf16.msra.mxu0 0
    %2021 = vmatprep.subr.bf16.mxu0 0
    %2022 = vmatpush2.bf16.msra.mxu0 0
    %2023 = vmatprep.subr.bf16.mxu0 0
    %2024 = vmatpush2.bf16.msra.mxu0 0
    %2025 = vmatprep.subr.bf16.mxu0 0
    %2026 = vmatpush2.bf16.msra.mxu0 0
    %2027 = vmatprep.subr.bf16.mxu0 0
    %2028 = vmatpush2.bf16.msra.mxu0 0
    %2029 = vmatprep.mubr.bf16.mxu0 0
    %2030 = vmatmul.mubr.bf16.gmra.mxu0 %v1925
    %v2031 = vpop.f32.mrf.mxu0
    %v2032 = vadd.f32 %v1947, %v2031
    %v2033 = vpop.f32.mrf.mxu0
    %v2034 = vpop.f32.mrf.mxu0
    %v2035 = vpop.f32.mrf.mxu0
    %2036 = vdwg.mxu0
    %2037 = vst [vmem:[#allocation14] sm:$0xff] %v2032
    // Predicated region
    $region66: #{tpu_custom_call.1} parent=1 // pred_check
      _
    $region67: #{tpu_custom_call.1} parent=1 // pred_check_branch
      %2039 = sbr.rel (0) target = $region69
    $region68: #{tpu_custom_call.1} parent=1 // pred_region
      %s2041 = ssub.s32 128, 128
      %2042 = vsyncadd [#allocation7], %s2041
      %s2044 = sshll.u32 [#allocation14], 4
      %s2045 = int_to_ptr.vmem [resolvable:$true] %s2044
      %2047 = dma.vmem_to_hbm [thread:$0]  %s2045, 128, %s11, [#allocation7]
    $region69: #{tpu_custom_call.1} parent=1 // pred_fallthru
      _
    // Predicated region
    $region70: #{tpu_custom_call.1} parent=1 // pred_check
      _
    $region71: #{tpu_custom_call.1} parent=1 // pred_check_branch
      %2049 = sbr.rel (0) target = $region73
    $region72: #{tpu_custom_call.1} parent=1 // pred_region
      %2050 = dma.done [#allocation7], 128
    $region73: #{tpu_custom_call.1} parent=1 // pred_fallthru
      _
    %2051 = vsyncpa [#allocation6], 1
    %2052 = vsyncpa [#allocation9], 1
    %2053 = vsyncpa [#allocation12], 1
    %2054 = vsyncpa [#allocation7], 1

</llo_original>
